<compile_context>
chip_gen: v5e
topology: v5e:2x2
jax: 0.10.0
libtpu: 0.0.40
codegen_flags: <defaults>
</compile_context>

<pallas_src>
import jax
import jax.numpy as jnp
import numpy as np
from jax.experimental import pallas as pl
from jax.experimental.pallas import tpu as pltpu

# ---------------- small-shape config (consistent with the module structure) ---------
RESIZE_INPUT = 128          # module default 448 (kept small)
DOWN_FACTOR  = 32
PATCH        = DOWN_FACTOR
GRID_HW      = RESIZE_INPUT // DOWN_FACTOR
NUM_TOKENS   = GRID_HW * GRID_HW            # 16
FEAT_DIM     = 256          # module hardcodes 768 (convnext_tiny feature dim) — scaled down
HIDDEN_DIM   = 256          # module hardcodes 512 — scaled down
OUT_DIM      = 128          # module default 768 — scaled down
PATCH_DIM    = 3 * PATCH * PATCH            # 3072  (full K — no reduction grid)


# ---------------- fused Pallas kernel ------------------------------------------------
# TODO(synk): the pretrained convnext_tiny backbone is not reproduced; the stand-in is a
# single stride-32 patch-embedding conv (expressed as a matmul) producing the same
# (B, FEAT_DIM, R/32, R/32) feature-map shape the rest of the forward expects.
def _position_net_kernel(patches_ref, mask_ref, pe_w_ref, bias_ref, npos_ref,
                         w1_ref, b1_ref, w2_ref, b2_ref, w3_ref, b3_ref, out_ref):
    # Single-shot per row tile: full-K patch-embed matmul (bf16 operands, f32 acc).
    feat = jnp.dot(patches_ref[...], pe_w_ref[...],
                   preferred_element_type=jnp.float32)              # (R, C) f32

    # Broadcast the single (NUM_TOKENS, C) null+pos slab across the batches that this
    # row tile spans (tile is always a whole-batch multiple of NUM_TOKENS rows).
    nb = patches_ref.shape[0] // npos_ref.shape[0]
    npos = jnp.tile(npos_ref[...], (nb, 1))                         # (R, C) f32

    # objs = (feat + pe_b)*m + null*(1-m) + pos  ==  (feat + (pe_b - null))*m + (null + pos)
    objs = (feat + bias_ref[...]) * mask_ref[...] + npos            # (R, C) f32

    h = jnp.dot(objs.astype(jnp.bfloat16), w1_ref[...],
                preferred_element_type=jnp.float32) + b1_ref[...]
    h = h * jax.nn.sigmoid(h)                                        # SiLU (f32)
    h = jnp.dot(h.astype(jnp.bfloat16), w2_ref[...],
                preferred_element_type=jnp.float32) + b2_ref[...]
    h = h * jax.nn.sigmoid(h)                                        # SiLU (f32)
    o = jnp.dot(h.astype(jnp.bfloat16), w3_ref[...],
                preferred_element_type=jnp.float32) + b3_ref[...]
    out_ref[...] = o.astype(out_ref.dtype)


def _pick_row_tile(bt):
    """Row tile = whole-batch multiple of NUM_TOKENS, dividing bt, targeting ~128 rows."""
    n_batches = bt // NUM_TOKENS
    target_nb = max(1, 128 // NUM_TOKENS)
    nb = 1
    for d in range(1, n_batches + 1):
        if n_batches % d == 0 and d <= target_nb:
            nb = d
    return nb * NUM_TOKENS


def position_net_fused(patches, mask_rows, bias_eff, npos, params):
    bt = patches.shape[0]                                  # B * NUM_TOKENS
    row_tile = _pick_row_tile(bt)                          # demo: 32 -> grid of 1 step
    grid = (bt // row_tile,)
    return pl.pallas_call(
        _position_net_kernel,
        out_shape=jax.ShapeDtypeStruct((bt, OUT_DIM), jnp.float32),
        grid_spec=pltpu.PrefetchScalarGridSpec(
            num_scalar_prefetch=0,
            grid=grid,
            in_specs=[
                # row-indexed streams
                pl.BlockSpec((row_tile, PATCH_DIM), lambda r: (r, 0)),     # patches (bf16)
                pl.BlockSpec((row_tile, 1), lambda r: (r, 0)),             # per-row mask (f32)
                # VMEM-resident weights / small constants (constant index_map)
                pl.BlockSpec((PATCH_DIM, FEAT_DIM), lambda r: (0, 0)),     # pe_w (bf16)
                pl.BlockSpec((1, FEAT_DIM), lambda r: (0, 0)),             # pe_b - null (f32)
                pl.BlockSpec((NUM_TOKENS, FEAT_DIM), lambda r: (0, 0)),    # null + pos (f32)
                pl.BlockSpec((FEAT_DIM, HIDDEN_DIM), lambda r: (0, 0)),    # W1 (bf16)
                pl.BlockSpec((1, HIDDEN_DIM), lambda r: (0, 0)),           # b1
                pl.BlockSpec((HIDDEN_DIM, HIDDEN_DIM), lambda r: (0, 0)),  # W2 (bf16)
                pl.BlockSpec((1, HIDDEN_DIM), lambda r: (0, 0)),           # b2
                pl.BlockSpec((HIDDEN_DIM, OUT_DIM), lambda r: (0, 0)),     # W3 (bf16)
                pl.BlockSpec((1, OUT_DIM), lambda r: (0, 0)),              # b3
            ],
            out_specs=pl.BlockSpec((row_tile, OUT_DIM), lambda r: (r, 0)),
        ),
        # Row axis is embarrassingly parallel -> shardable across v7x TensorCores once
        # bt is large enough that per-core compute amortizes the duplicated weight DMA.
        compiler_params=pltpu.CompilerParams(dimension_semantics=("parallel",)),
    )(patches, mask_rows, params["pe_w"], bias_eff, npos,
      params["w1"], params["b1"], params["w2"], params["b2"],
      params["w3"], params["b3"])


# ---------------- glue: nearest interpolate + patchify (plain JAX) -------------------
def nearest_resize(x, out_hw):
    # matches torch.nn.functional.interpolate(x, out_hw) default mode='nearest'
    B, C, H, W = x.shape
    rows = (jnp.arange(out_hw) * H) // out_hw
    cols = (jnp.arange(out_hw) * W) // out_hw
    return x[:, :, rows[:, None], cols[None, :]]


def patchify(x):
    # (B, 3, R, R) -> (B*T, 3*P*P), token order = row-major spatial flatten
    B = x.shape[0]
    p = x.reshape(B, 3, GRID_HW, PATCH, GRID_HW, PATCH)
    p = p.transpose(0, 2, 4, 1, 3, 5)
    return p.reshape(B * NUM_TOKENS, PATCH_DIM)


def position_net_forward(normal, mask, params):
    B = normal.shape[0]
    x = nearest_resize(normal, RESIZE_INPUT)
    patches = patchify(x).astype(jnp.bfloat16)                        # bf16 dot operand
    bt = B * NUM_TOKENS
    # fold batch into tokens: per-row mask vector (B*T, 1)
    mask_rows = jnp.repeat(mask.astype(jnp.float32), NUM_TOKENS).reshape(bt, 1)
    # fold additive constants once (outside the kernel); NO batch tiling of pos.
    bias_eff = params["pe_b"] - params["null"]                        # (1, C) f32
    npos = params["null"] + params["pos"]                             # (T, C) f32
    objs = position_net_fused(patches, mask_rows, bias_eff, npos, params)
    return objs.reshape(B, NUM_TOKENS, OUT_DIM)


# ---------------- pure-JAX reference (same bf16 dot precision) -----------------------
def ref_forward(normal, mask, p):
    B = normal.shape[0]
    x = nearest_resize(normal, RESIZE_INPUT)
    patches = patchify(x).astype(jnp.bfloat16)
    feat = jnp.dot(patches, p["pe_w"], preferred_element_type=jnp.float32) + p["pe_b"]
    feat = feat.reshape(B, NUM_TOKENS, FEAT_DIM)
    m = mask.reshape(B, 1, 1).astype(jnp.float32)
    # original PyTorch form: objs*m + null*(1-m) + pos
    objs = feat * m + p["null"][None] * (1.0 - m) + p["pos"][None]
    h = jnp.dot(objs.astype(jnp.bfloat16), p["w1"], preferred_element_type=jnp.float32) + p["b1"]
    h = h * jax.nn.sigmoid(h)
    h = jnp.dot(h.astype(jnp.bfloat16), p["w2"], preferred_element_type=jnp.float32) + p["b2"]
    h = h * jax.nn.sigmoid(h)
    return jnp.dot(h.astype(jnp.bfloat16), p["w3"], preferred_element_type=jnp.float32) + p["b3"]


def init_params(key):
    ks = jax.random.split(key, 8)

    def lin(k, fan_in, fan_out):
        w = jax.random.normal(k, (fan_in, fan_out), jnp.float32) / np.sqrt(fan_in)
        return w.astype(jnp.bfloat16)            # weights stored/streamed in bf16

    return {
        "pe_w": lin(ks[0], PATCH_DIM, FEAT_DIM),
        "pe_b": jnp.zeros((1, FEAT_DIM), jnp.float32),
        "pos": 0.02 * jax.random.normal(ks[1], (NUM_TOKENS, FEAT_DIM), jnp.float32),
        "null": jnp.zeros((1, FEAT_DIM), jnp.float32),   # nn.Parameter(zeros)
        "w1": lin(ks[2], FEAT_DIM, HIDDEN_DIM),
        "b1": 0.01 * jax.random.normal(ks[3], (1, HIDDEN_DIM), jnp.float32),
        "w2": lin(ks[4], HIDDEN_DIM, HIDDEN_DIM),
        "b2": 0.01 * jax.random.normal(ks[5], (1, HIDDEN_DIM), jnp.float32),
        "w3": lin(ks[6], HIDDEN_DIM, OUT_DIM),
        "b3": 0.01 * jax.random.normal(ks[7], (1, OUT_DIM), jnp.float32),
    }


if __name__ == "__main__":
    key = jax.random.PRNGKey(0)
    k_par, k_norm = jax.random.split(key)
    params = init_params(k_par)

    B = 2
    normal = jax.random.normal(k_norm, (B, 3, 32, 32), jnp.float32)   # NCHW like PyTorch
    mask = jnp.array([1.0, 0.0], jnp.float32)                          # per-batch grounding mask

    out = jax.block_until_ready(position_net_forward(normal, mask, params))
    ref = jax.block_until_ready(ref_forward(normal, mask, params))

    assert out.shape == (B, NUM_TOKENS, OUT_DIM)
    np.testing.assert_allclose(np.asarray(out), np.asarray(ref), rtol=2e-3, atol=2e-3)

    print("KERNEL_OK")
</pallas_src>

<mosaic_0001>
module attributes {stable_mosaic.version = 11 : i64} {
  func.func @_position_net_kernel(%arg0: i32, %arg1: memref<32x3072xbf16, #tpu.memory_space<vmem>>, %arg2: memref<32x1xf32, #tpu.memory_space<vmem>>, %arg3: memref<3072x256xbf16, #tpu.memory_space<vmem>>, %arg4: memref<1x256xf32, #tpu.memory_space<vmem>>, %arg5: memref<16x256xf32, #tpu.memory_space<vmem>>, %arg6: memref<256x256xbf16, #tpu.memory_space<vmem>>, %arg7: memref<1x256xf32, #tpu.memory_space<vmem>>, %arg8: memref<256x256xbf16, #tpu.memory_space<vmem>>, %arg9: memref<1x256xf32, #tpu.memory_space<vmem>>, %arg10: memref<256x128xbf16, #tpu.memory_space<vmem>>, %arg11: memref<1x128xf32, #tpu.memory_space<vmem>>, %arg12: memref<32x128xf32, #tpu.memory_space<vmem>>) attributes {dimension_semantics = [#tpu.dimension_semantics<parallel>], iteration_bounds = array<i64: 1>, scalar_prefetch = 0 : i64, scratch_operands = 0 : i64, tpu.core_type = #tpu.core_type<tc>, window_params = [{transform_indices = @transform_0, window_bounds = array<i64: 32, 3072>}, {transform_indices = @transform_1, window_bounds = array<i64: 32, 1>}, {pipeline_mode = #tpu.pipeline_mode<synchronous>, transform_indices = @transform_2, window_bounds = array<i64: 3072, 256>}, {pipeline_mode = #tpu.pipeline_mode<synchronous>, transform_indices = @transform_3, window_bounds = array<i64: 1, 256>}, {pipeline_mode = #tpu.pipeline_mode<synchronous>, transform_indices = @transform_4, window_bounds = array<i64: 16, 256>}, {pipeline_mode = #tpu.pipeline_mode<synchronous>, transform_indices = @transform_5, window_bounds = array<i64: 256, 256>}, {pipeline_mode = #tpu.pipeline_mode<synchronous>, transform_indices = @transform_6, window_bounds = array<i64: 1, 256>}, {pipeline_mode = #tpu.pipeline_mode<synchronous>, transform_indices = @transform_7, window_bounds = array<i64: 256, 256>}, {pipeline_mode = #tpu.pipeline_mode<synchronous>, transform_indices = @transform_8, window_bounds = array<i64: 1, 256>}, {pipeline_mode = #tpu.pipeline_mode<synchronous>, transform_indices = @transform_9, window_bounds = array<i64: 256, 128>}, {pipeline_mode = #tpu.pipeline_mode<synchronous>, transform_indices = @transform_10, window_bounds = array<i64: 1, 128>}, {transform_indices = @transform_11, window_bounds = array<i64: 32, 128>}]} {
    %c0 = arith.constant 0 : index
    %c0_0 = arith.constant 0 : index
    %0 = vector.load %arg1[%c0, %c0_0] : memref<32x3072xbf16, #tpu.memory_space<vmem>>, vector<32x3072xbf16>
    %c0_1 = arith.constant 0 : index
    %c0_2 = arith.constant 0 : index
    %1 = vector.load %arg3[%c0_1, %c0_2] : memref<3072x256xbf16, #tpu.memory_space<vmem>>, vector<3072x256xbf16>
    %cst = arith.constant dense<0.000000e+00> : vector<32x256xf32>
    %2 = tpu.matmul %0, %1, %cst {dimension_numbers = #tpu.dot_dimension_numbers<[1], [0], [0], [1], [0, 0, 1, 1], [], []>} : vector<32x3072xbf16>, vector<3072x256xbf16>, vector<32x256xf32> -> vector<32x256xf32>
    %c0_3 = arith.constant 0 : index
    %c0_4 = arith.constant 0 : index
    %3 = vector.load %arg5[%c0_3, %c0_4] : memref<16x256xf32, #tpu.memory_space<vmem>>, vector<16x256xf32>
    %4 = tpu.concatenate %3, %3 in 0 : vector<16x256xf32>, vector<16x256xf32> -> vector<32x256xf32>
    %c0_5 = arith.constant 0 : index
    %c0_6 = arith.constant 0 : index
    %5 = vector.load %arg4[%c0_5, %c0_6] : memref<1x256xf32, #tpu.memory_space<vmem>>, vector<1x256xf32>
    %6 = vector.broadcast %5 : vector<1x256xf32> to vector<32x256xf32>
    %7 = arith.addf %2, %6 : vector<32x256xf32>
    %c0_7 = arith.constant 0 : index
    %c0_8 = arith.constant 0 : index
    %8 = vector.load %arg2[%c0_7, %c0_8] : memref<32x1xf32, #tpu.memory_space<vmem>>, vector<32x1xf32>
    %9 = vector.broadcast %8 : vector<32x1xf32> to vector<32x256xf32>
    %10 = arith.mulf %7, %9 : vector<32x256xf32>
    %11 = arith.addf %10, %4 : vector<32x256xf32>
    %12 = arith.truncf %11 : vector<32x256xf32> to vector<32x256xbf16>
    %c0_9 = arith.constant 0 : index
    %c0_10 = arith.constant 0 : index
    %13 = vector.load %arg6[%c0_9, %c0_10] : memref<256x256xbf16, #tpu.memory_space<vmem>>, vector<256x256xbf16>
    %cst_11 = arith.constant dense<0.000000e+00> : vector<32x256xf32>
    %14 = tpu.matmul %12, %13, %cst_11 {dimension_numbers = #tpu.dot_dimension_numbers<[1], [0], [0], [1], [0, 0, 1, 1], [], []>} : vector<32x256xbf16>, vector<256x256xbf16>, vector<32x256xf32> -> vector<32x256xf32>
    %c0_12 = arith.constant 0 : index
    %c0_13 = arith.constant 0 : index
    %15 = vector.load %arg7[%c0_12, %c0_13] : memref<1x256xf32, #tpu.memory_space<vmem>>, vector<1x256xf32>
    %16 = vector.broadcast %15 : vector<1x256xf32> to vector<32x256xf32>
    %17 = arith.addf %14, %16 : vector<32x256xf32>
    %18 = arith.negf %17 : vector<32x256xf32>
    %19 = math.exp %18 : vector<32x256xf32>
    %cst_14 = arith.constant 1.000000e+00 : f32
    %20 = vector.broadcast %cst_14 : f32 to vector<32x256xf32>
    %21 = arith.addf %20, %19 : vector<32x256xf32>
    %22 = arith.divf %20, %21 : vector<32x256xf32>
    %23 = arith.mulf %17, %22 : vector<32x256xf32>
    %24 = arith.truncf %23 : vector<32x256xf32> to vector<32x256xbf16>
    %c0_15 = arith.constant 0 : index
    %c0_16 = arith.constant 0 : index
    %25 = vector.load %arg8[%c0_15, %c0_16] : memref<256x256xbf16, #tpu.memory_space<vmem>>, vector<256x256xbf16>
    %cst_17 = arith.constant dense<0.000000e+00> : vector<32x256xf32>
    %26 = tpu.matmul %24, %25, %cst_17 {dimension_numbers = #tpu.dot_dimension_numbers<[1], [0], [0], [1], [0, 0, 1, 1], [], []>} : vector<32x256xbf16>, vector<256x256xbf16>, vector<32x256xf32> -> vector<32x256xf32>
    %c0_18 = arith.constant 0 : index
    %c0_19 = arith.constant 0 : index
    %27 = vector.load %arg9[%c0_18, %c0_19] : memref<1x256xf32, #tpu.memory_space<vmem>>, vector<1x256xf32>
    %28 = vector.broadcast %27 : vector<1x256xf32> to vector<32x256xf32>
    %29 = arith.addf %26, %28 : vector<32x256xf32>
    %30 = arith.negf %29 : vector<32x256xf32>
    %31 = math.exp %30 : vector<32x256xf32>
    %cst_20 = arith.constant 1.000000e+00 : f32
    %32 = vector.broadcast %cst_20 : f32 to vector<32x256xf32>
    %33 = arith.addf %32, %31 : vector<32x256xf32>
    %34 = arith.divf %32, %33 : vector<32x256xf32>
    %35 = arith.mulf %29, %34 : vector<32x256xf32>
    %36 = arith.truncf %35 : vector<32x256xf32> to vector<32x256xbf16>
    %c0_21 = arith.constant 0 : index
    %c0_22 = arith.constant 0 : index
    %37 = vector.load %arg10[%c0_21, %c0_22] : memref<256x128xbf16, #tpu.memory_space<vmem>>, vector<256x128xbf16>
    %cst_23 = arith.constant dense<0.000000e+00> : vector<32x128xf32>
    %38 = tpu.matmul %36, %37, %cst_23 {dimension_numbers = #tpu.dot_dimension_numbers<[1], [0], [0], [1], [0, 0, 1, 1], [], []>} : vector<32x256xbf16>, vector<256x128xbf16>, vector<32x128xf32> -> vector<32x128xf32>
    %c0_24 = arith.constant 0 : index
    %c0_25 = arith.constant 0 : index
    %39 = vector.load %arg11[%c0_24, %c0_25] : memref<1x128xf32, #tpu.memory_space<vmem>>, vector<1x128xf32>
    %40 = vector.broadcast %39 : vector<1x128xf32> to vector<32x128xf32>
    %41 = arith.addf %38, %40 : vector<32x128xf32>
    %c0_26 = arith.constant 0 : index
    %c0_27 = arith.constant 0 : index
    %42 = vector.load %arg12[%c0_26, %c0_27] : memref<32x128xf32, #tpu.memory_space<vmem>>, vector<32x128xf32>
    tpu.vector_store %arg12[%c0_26, %c0_27], %41 {strides = array<i32>} : memref<32x128xf32, #tpu.memory_space<vmem>>, vector<32x128xf32>,
    return
  }
  func.func @transform_0(%arg0: i32) -> (i32, i32) {
    %c0_i32 = arith.constant 0 : i32
    %c0_i32_0 = arith.constant 0 : i32
    return %arg0, %c0_i32 : i32, i32
  }
  func.func @transform_1(%arg0: i32) -> (i32, i32) {
    %c0_i32 = arith.constant 0 : i32
    %c0_i32_0 = arith.constant 0 : i32
    return %arg0, %c0_i32 : i32, i32
  }
  func.func @transform_2(%arg0: i32) -> (i32, i32) {
    %c0_i32 = arith.constant 0 : i32
    %c0_i32_0 = arith.constant 0 : i32
    %c0_i32_1 = arith.constant 0 : i32
    return %c0_i32, %c0_i32_0 : i32, i32
  }
  func.func @transform_3(%arg0: i32) -> (i32, i32) {
    %c0_i32 = arith.constant 0 : i32
    %c0_i32_0 = arith.constant 0 : i32
    %c0_i32_1 = arith.constant 0 : i32
    return %c0_i32, %c0_i32_0 : i32, i32
  }
  func.func @transform_4(%arg0: i32) -> (i32, i32) {
    %c0_i32 = arith.constant 0 : i32
    %c0_i32_0 = arith.constant 0 : i32
    %c0_i32_1 = arith.constant 0 : i32
    return %c0_i32, %c0_i32_0 : i32, i32
  }
  func.func @transform_5(%arg0: i32) -> (i32, i32) {
    %c0_i32 = arith.constant 0 : i32
    %c0_i32_0 = arith.constant 0 : i32
    %c0_i32_1 = arith.constant 0 : i32
    return %c0_i32, %c0_i32_0 : i32, i32
  }
  func.func @transform_6(%arg0: i32) -> (i32, i32) {
    %c0_i32 = arith.constant 0 : i32
    %c0_i32_0 = arith.constant 0 : i32
    %c0_i32_1 = arith.constant 0 : i32
    return %c0_i32, %c0_i32_0 : i32, i32
  }
  func.func @transform_7(%arg0: i32) -> (i32, i32) {
    %c0_i32 = arith.constant 0 : i32
    %c0_i32_0 = arith.constant 0 : i32
    %c0_i32_1 = arith.constant 0 : i32
    return %c0_i32, %c0_i32_0 : i32, i32
  }
  func.func @transform_8(%arg0: i32) -> (i32, i32) {
    %c0_i32 = arith.constant 0 : i32
    %c0_i32_0 = arith.constant 0 : i32
    %c0_i32_1 = arith.constant 0 : i32
    return %c0_i32, %c0_i32_0 : i32, i32
  }
  func.func @transform_9(%arg0: i32) -> (i32, i32) {
    %c0_i32 = arith.constant 0 : i32
    %c0_i32_0 = arith.constant 0 : i32
    %c0_i32_1 = arith.constant 0 : i32
    return %c0_i32, %c0_i32_0 : i32, i32
  }
  func.func @transform_10(%arg0: i32) -> (i32, i32) {
    %c0_i32 = arith.constant 0 : i32
    %c0_i32_0 = arith.constant 0 : i32
    %c0_i32_1 = arith.constant 0 : i32
    return %c0_i32, %c0_i32_0 : i32, i32
  }
  func.func @transform_11(%arg0: i32) -> (i32, i32) {
    %c0_i32 = arith.constant 0 : i32
    %c0_i32_0 = arith.constant 0 : i32
    return %arg0, %c0_i32 : i32, i32
  }
}

</mosaic_0001>

<llo_original>
// kernel: tpu_custom_call.1
$region0: #{tpu_custom_call.1}
  #allocation0 [shape = 'u32[]', space=smem, size = 0x4, offset = 0x4, fixed_abs, tag = 'smem constant byte address 0x4 - core index']
  #allocation1 [shape = 'u32[72,128]{1,0:T(1,128)}', space=vmem, size = 0x9000, scoped, tag = 'internal scratch']
  %s0 = inlined_call_operand.hbm [shape: bf16[32,3072], index: 0, kind: input, shape index: {}]
  %s1 = inlined_call_operand.vmem [shape: f32[32,1], index: 1, kind: input, shape index: {}]
  %s2 = inlined_call_operand.hbm [shape: bf16[3072,256], index: 2, kind: input, shape index: {}]
  %s3 = inlined_call_operand.hbm [shape: f32[1,256], index: 3, kind: input, shape index: {}]
  %s4 = inlined_call_operand.hbm [shape: f32[16,256], index: 4, kind: input, shape index: {}]
  %s5 = inlined_call_operand.hbm [shape: bf16[256,256], index: 5, kind: input, shape index: {}]
  %s6 = inlined_call_operand.hbm [shape: f32[1,256], index: 6, kind: input, shape index: {}]
  %s7 = inlined_call_operand.hbm [shape: bf16[256,256], index: 7, kind: input, shape index: {}]
  %s8 = inlined_call_operand.hbm [shape: f32[1,256], index: 8, kind: input, shape index: {}]
  %s9 = inlined_call_operand.hbm [shape: bf16[256,128], index: 9, kind: input, shape index: {}]
  %s10 = inlined_call_operand.hbm [shape: f32[1,128], index: 10, kind: input, shape index: {}]
  %s11 = inlined_call_operand.hbm [shape: f32[32,128], index: 11, kind: output, shape index: {}]
  %s12 = sld [smem:[#allocation0]]
  $region94: #{tpu_custom_call.1} parent=0
    _
  %s14 = ssub.s32 1, %s12
  %s15 = scalar_select 0, %s14, %s12
  $region1: #{tpu_custom_call.1} parent=0
    #allocation2 [shape = 'u8[196608]{0}', space=vmem, size = 0x30000, scoped, tag = 'input window, operand 0, single buffered']
    #allocation3 [shape = 's32[1]{0}', space=sflag, size = 0x4, scoped, tag = 'scoped memory for tpu_custom_call.1']
    #allocation4 [shape = 's32[1]{0}', space=sflag, size = 0x4, scoped, tag = 'scoped memory for tpu_custom_call.1']
    #allocation5 [shape = 'u8[1572864]{0}', space=vmem, size = 0x180000, scoped, tag = 'input window, operand 2, single buffered']
    #allocation6 [shape = 's32[1]{0}', space=sflag, size = 0x4, scoped, tag = 'scoped memory for tpu_custom_call.1']
    #allocation7 [shape = 'u8[1024]{0}', space=vmem, size = 0x400, scoped, tag = 'input window, operand 3, single buffered']
    #allocation8 [shape = 'u8[16384]{0}', space=vmem, size = 0x4000, scoped, tag = 'input window, operand 4, single buffered']
    #allocation9 [shape = 's32[1]{0}', space=sflag, size = 0x4, scoped, tag = 'scoped memory for tpu_custom_call.1']
    #allocation10 [shape = 'u8[131072]{0}', space=vmem, size = 0x20000, scoped, tag = 'input window, operand 5, single buffered']
    #allocation11 [shape = 'u8[1024]{0}', space=vmem, size = 0x400, scoped, tag = 'input window, operand 6, single buffered']
    #allocation12 [shape = 's32[1]{0}', space=sflag, size = 0x4, scoped, tag = 'scoped memory for tpu_custom_call.1']
    #allocation13 [shape = 'u8[131072]{0}', space=vmem, size = 0x20000, scoped, tag = 'input window, operand 7, single buffered']
    #allocation14 [shape = 'u8[1024]{0}', space=vmem, size = 0x400, scoped, tag = 'input window, operand 8, single buffered']
    #allocation15 [shape = 's32[1]{0}', space=sflag, size = 0x4, scoped, tag = 'scoped memory for tpu_custom_call.1']
    #allocation16 [shape = 'u8[65536]{0}', space=vmem, size = 0x10000, scoped, tag = 'input window, operand 9, single buffered']
    #allocation17 [shape = 'u8[512]{0}', space=vmem, size = 0x400, scoped, tag = 'input window, operand 10, single buffered']
    #allocation18 [shape = 's32[1]{0}', space=sflag, size = 0x4, scoped, tag = 'scoped memory for tpu_custom_call.1']
    #allocation19 [shape = 'u8[16384]{0}', space=vmem, size = 0x4000, scoped, tag = 'output window, operand 0, single buffered']
    %16 = vsyncpa [#allocation3], 0
    %17 = vsyncpa [#allocation6], 0
    %18 = vsyncpa [#allocation9], 0
    %19 = vsyncpa [#allocation12], 0
    %20 = vsyncpa [#allocation15], 0
    %21 = vsyncpa [#allocation18], 0
    %22 = vsyncpa [#allocation4], 0
    // Predicated region
    $region2: #{tpu_custom_call.1} parent=1 // pred_check
      _
    $region3: #{tpu_custom_call.1} parent=1 // pred_check_branch
      %24 = sbr.rel (0) target = $region5
    $region4: #{tpu_custom_call.1} parent=1 // pred_region
      %26 = vsyncadd [#allocation3], 0
      %s27 = sshll.u32 %s0, 4
      %s28 = int_to_ptr.hbm [resolvable:$true] %s27
      %s29 = sshll.u32 [#allocation2], 4
      %s30 = int_to_ptr.vmem [resolvable:$true] %s29
      %35 = dma.hbm_to_vmem [thread:$0]  %s28, 6144, %s30, [#allocation3], 1536, 1536, 96
    $region5: #{tpu_custom_call.1} parent=1 // pred_fallthru
      _
    // Predicated region
    $region6: #{tpu_custom_call.1} parent=1 // pred_check
      _
    $region7: #{tpu_custom_call.1} parent=1 // pred_check_branch
      %37 = sbr.rel (0) target = $region9
    $region8: #{tpu_custom_call.1} parent=1 // pred_region
      _
    $region9: #{tpu_custom_call.1} parent=1 // pred_fallthru
      _
    // Predicated region
    $region10: #{tpu_custom_call.1} parent=1 // pred_check
      _
    $region11: #{tpu_custom_call.1} parent=1 // pred_check_branch
      %39 = sbr.rel (0) target = $region13
    $region12: #{tpu_custom_call.1} parent=1 // pred_region
      %41 = vsyncadd [#allocation6], 0
      %s42 = sshll.u32 %s2, 4
      %s43 = int_to_ptr.hbm [resolvable:$true] %s42
      %s44 = sshll.u32 [#allocation5], 4
      %s45 = int_to_ptr.vmem [resolvable:$true] %s44
      %50 = dma.hbm_to_vmem [thread:$0]  %s43, 49152, %s45, [#allocation6], 128, 128, 8
    $region13: #{tpu_custom_call.1} parent=1 // pred_fallthru
      _
    // Predicated region
    $region14: #{tpu_custom_call.1} parent=1 // pred_check
      _
    $region15: #{tpu_custom_call.1} parent=1 // pred_check_branch
      %52 = sbr.rel (0) target = $region17
    $region16: #{tpu_custom_call.1} parent=1 // pred_region
      %54 = vsyncadd [#allocation6], 0
      %s56 = sshll.u32 %s3, 4
      %s57 = int_to_ptr.hbm [resolvable:$true] %s56
      %s58 = sshll.u32 [#allocation7], 4
      %s59 = int_to_ptr.vmem [resolvable:$true] %s58
      %61 = dma.hbm_to_vmem [thread:$0]  %s57, 32, %s59, [#allocation6]
    $region17: #{tpu_custom_call.1} parent=1 // pred_fallthru
      _
    // Predicated region
    $region18: #{tpu_custom_call.1} parent=1 // pred_check
      _
    $region19: #{tpu_custom_call.1} parent=1 // pred_check_branch
      %63 = sbr.rel (0) target = $region21
    $region20: #{tpu_custom_call.1} parent=1 // pred_region
      %65 = vsyncadd [#allocation9], 0
      %s66 = sshll.u32 %s4, 4
      %s67 = int_to_ptr.hbm [resolvable:$true] %s66
      %s68 = sshll.u32 [#allocation8], 4
      %s69 = int_to_ptr.vmem [resolvable:$true] %s68
      %74 = dma.hbm_to_vmem [thread:$0]  %s67, 512, %s69, [#allocation9], 256, 256, 16
    $region21: #{tpu_custom_call.1} parent=1 // pred_fallthru
      _
    // Predicated region
    $region22: #{tpu_custom_call.1} parent=1 // pred_check
      _
    $region23: #{tpu_custom_call.1} parent=1 // pred_check_branch
      %76 = sbr.rel (0) target = $region25
    $region24: #{tpu_custom_call.1} parent=1 // pred_region
      %78 = vsyncadd [#allocation9], 0
      %s79 = sshll.u32 %s5, 4
      %s80 = int_to_ptr.hbm [resolvable:$true] %s79
      %s81 = sshll.u32 [#allocation10], 4
      %s82 = int_to_ptr.vmem [resolvable:$true] %s81
      %87 = dma.hbm_to_vmem [thread:$0]  %s80, 4096, %s82, [#allocation9], 128, 128, 8
    $region25: #{tpu_custom_call.1} parent=1 // pred_fallthru
      _
    // Predicated region
    $region26: #{tpu_custom_call.1} parent=1 // pred_check
      _
    $region27: #{tpu_custom_call.1} parent=1 // pred_check_branch
      %89 = sbr.rel (0) target = $region29
    $region28: #{tpu_custom_call.1} parent=1 // pred_region
      %91 = vsyncadd [#allocation12], 0
      %s93 = sshll.u32 %s6, 4
      %s94 = int_to_ptr.hbm [resolvable:$true] %s93
      %s95 = sshll.u32 [#allocation11], 4
      %s96 = int_to_ptr.vmem [resolvable:$true] %s95
      %98 = dma.hbm_to_vmem [thread:$0]  %s94, 32, %s96, [#allocation12]
    $region29: #{tpu_custom_call.1} parent=1 // pred_fallthru
      _
    // Predicated region
    $region30: #{tpu_custom_call.1} parent=1 // pred_check
      _
    $region31: #{tpu_custom_call.1} parent=1 // pred_check_branch
      %100 = sbr.rel (0) target = $region33
    $region32: #{tpu_custom_call.1} parent=1 // pred_region
      %102 = vsyncadd [#allocation12], 0
      %s103 = sshll.u32 %s7, 4
      %s104 = int_to_ptr.hbm [resolvable:$true] %s103
      %s105 = sshll.u32 [#allocation13], 4
      %s106 = int_to_ptr.vmem [resolvable:$true] %s105
      %111 = dma.hbm_to_vmem [thread:$0]  %s104, 4096, %s106, [#allocation12], 128, 128, 8
    $region33: #{tpu_custom_call.1} parent=1 // pred_fallthru
      _
    // Predicated region
    $region34: #{tpu_custom_call.1} parent=1 // pred_check
      _
    $region35: #{tpu_custom_call.1} parent=1 // pred_check_branch
      %113 = sbr.rel (0) target = $region37
    $region36: #{tpu_custom_call.1} parent=1 // pred_region
      %115 = vsyncadd [#allocation15], 0
      %s117 = sshll.u32 %s8, 4
      %s118 = int_to_ptr.hbm [resolvable:$true] %s117
      %s119 = sshll.u32 [#allocation14], 4
      %s120 = int_to_ptr.vmem [resolvable:$true] %s119
      %122 = dma.hbm_to_vmem [thread:$0]  %s118, 32, %s120, [#allocation15]
    $region37: #{tpu_custom_call.1} parent=1 // pred_fallthru
      _
    // Predicated region
    $region38: #{tpu_custom_call.1} parent=1 // pred_check
      _
    $region39: #{tpu_custom_call.1} parent=1 // pred_check_branch
      %124 = sbr.rel (0) target = $region41
    $region40: #{tpu_custom_call.1} parent=1 // pred_region
      %126 = vsyncadd [#allocation15], 0
      %s127 = sshll.u32 %s9, 4
      %s128 = int_to_ptr.hbm [resolvable:$true] %s127
      %s129 = sshll.u32 [#allocation16], 4
      %s130 = int_to_ptr.vmem [resolvable:$true] %s129
      %135 = dma.hbm_to_vmem [thread:$0]  %s128, 2048, %s130, [#allocation15], 64, 64, 4
    $region41: #{tpu_custom_call.1} parent=1 // pred_fallthru
      _
    // Predicated region
    $region42: #{tpu_custom_call.1} parent=1 // pred_check
      _
    $region43: #{tpu_custom_call.1} parent=1 // pred_check_branch
      %137 = sbr.rel (0) target = $region45
    $region44: #{tpu_custom_call.1} parent=1 // pred_region
      %139 = vsyncadd [#allocation18], 0
      %s141 = sshll.u32 %s10, 4
      %s142 = int_to_ptr.hbm [resolvable:$true] %s141
      %s143 = sshll.u32 [#allocation17], 4
      %s144 = int_to_ptr.vmem [resolvable:$true] %s143
      %146 = dma.hbm_to_vmem [thread:$0]  %s142, 16, %s144, [#allocation18]
    $region45: #{tpu_custom_call.1} parent=1 // pred_fallthru
      _
    // Predicated region
    $region46: #{tpu_custom_call.1} parent=1 // pred_check
      _
    $region47: #{tpu_custom_call.1} parent=1 // pred_check_branch
      %148 = sbr.rel (0) target = $region49
    $region48: #{tpu_custom_call.1} parent=1 // pred_region
      %150 = dma.done [#allocation3], 6144
    $region49: #{tpu_custom_call.1} parent=1 // pred_fallthru
      _
    // Predicated region
    $region50: #{tpu_custom_call.1} parent=1 // pred_check
      _
    $region51: #{tpu_custom_call.1} parent=1 // pred_check_branch
      %152 = sbr.rel (0) target = $region53
    $region52: #{tpu_custom_call.1} parent=1 // pred_region
      %154 = dma.done [#allocation6], 49152
    $region53: #{tpu_custom_call.1} parent=1 // pred_fallthru
      _
    // Predicated region
    $region54: #{tpu_custom_call.1} parent=1 // pred_check
      _
    $region55: #{tpu_custom_call.1} parent=1 // pred_check_branch
      %156 = sbr.rel (0) target = $region57
    $region56: #{tpu_custom_call.1} parent=1 // pred_region
      %158 = dma.done [#allocation6], 32
    $region57: #{tpu_custom_call.1} parent=1 // pred_fallthru
      _
    // Predicated region
    $region58: #{tpu_custom_call.1} parent=1 // pred_check
      _
    $region59: #{tpu_custom_call.1} parent=1 // pred_check_branch
      %160 = sbr.rel (0) target = $region61
    $region60: #{tpu_custom_call.1} parent=1 // pred_region
      %162 = dma.done [#allocation9], 512
    $region61: #{tpu_custom_call.1} parent=1 // pred_fallthru
      _
    // Predicated region
    $region62: #{tpu_custom_call.1} parent=1 // pred_check
      _
    $region63: #{tpu_custom_call.1} parent=1 // pred_check_branch
      %164 = sbr.rel (0) target = $region65
    $region64: #{tpu_custom_call.1} parent=1 // pred_region
      %166 = dma.done [#allocation9], 4096
    $region65: #{tpu_custom_call.1} parent=1 // pred_fallthru
      _
    // Predicated region
    $region66: #{tpu_custom_call.1} parent=1 // pred_check
      _
    $region67: #{tpu_custom_call.1} parent=1 // pred_check_branch
      %168 = sbr.rel (0) target = $region69
    $region68: #{tpu_custom_call.1} parent=1 // pred_region
      %170 = dma.done [#allocation12], 32
    $region69: #{tpu_custom_call.1} parent=1 // pred_fallthru
      _
    // Predicated region
    $region70: #{tpu_custom_call.1} parent=1 // pred_check
      _
    $region71: #{tpu_custom_call.1} parent=1 // pred_check_branch
      %172 = sbr.rel (0) target = $region73
    $region72: #{tpu_custom_call.1} parent=1 // pred_region
      %174 = dma.done [#allocation12], 4096
    $region73: #{tpu_custom_call.1} parent=1 // pred_fallthru
      _
    // Predicated region
    $region74: #{tpu_custom_call.1} parent=1 // pred_check
      _
    $region75: #{tpu_custom_call.1} parent=1 // pred_check_branch
      %176 = sbr.rel (0) target = $region77
    $region76: #{tpu_custom_call.1} parent=1 // pred_region
      %178 = dma.done [#allocation15], 32
    $region77: #{tpu_custom_call.1} parent=1 // pred_fallthru
      _
    // Predicated region
    $region78: #{tpu_custom_call.1} parent=1 // pred_check
      _
    $region79: #{tpu_custom_call.1} parent=1 // pred_check_branch
      %180 = sbr.rel (0) target = $region81
    $region80: #{tpu_custom_call.1} parent=1 // pred_region
      %182 = dma.done [#allocation15], 2048
    $region81: #{tpu_custom_call.1} parent=1 // pred_fallthru
      _
    // Predicated region
    $region82: #{tpu_custom_call.1} parent=1 // pred_check
      _
    $region83: #{tpu_custom_call.1} parent=1 // pred_check_branch
      %184 = sbr.rel (0) target = $region85
    $region84: #{tpu_custom_call.1} parent=1 // pred_region
      %186 = dma.done [#allocation18], 16
    $region85: #{tpu_custom_call.1} parent=1 // pred_fallthru
      _
    %v187 = vld [vmem:[#allocation2] sm:$0xff]
    %v188 = vld [vmem:[#allocation2 + $0x8] sm:$0xff]
    %v189 = vld [vmem:[#allocation2 + $0x10] sm:$0xff]
    %v190 = vld [vmem:[#allocation2 + $0x18] sm:$0xff]
    %v191 = vld [vmem:[#allocation2 + $0x20] sm:$0xff]
    %v192 = vld [vmem:[#allocation2 + $0x28] sm:$0xff]
    %v193 = vld [vmem:[#allocation2 + $0x30] sm:$0xff]
    %v194 = vld [vmem:[#allocation2 + $0x38] sm:$0xff]
    %v195 = vld [vmem:[#allocation2 + $0x40] sm:$0xff]
    %v196 = vld [vmem:[#allocation2 + $0x48] sm:$0xff]
    %v197 = vld [vmem:[#allocation2 + $0x50] sm:$0xff]
    %v198 = vld [vmem:[#allocation2 + $0x58] sm:$0xff]
    %v199 = vld [vmem:[#allocation2 + $0x60] sm:$0xff]
    %v200 = vld [vmem:[#allocation2 + $0x68] sm:$0xff]
    %v201 = vld [vmem:[#allocation2 + $0x70] sm:$0xff]
    %v202 = vld [vmem:[#allocation2 + $0x78] sm:$0xff]
    %v203 = vld [vmem:[#allocation2 + $0x80] sm:$0xff]
    %v204 = vld [vmem:[#allocation2 + $0x88] sm:$0xff]
    %v205 = vld [vmem:[#allocation2 + $0x90] sm:$0xff]
    %v206 = vld [vmem:[#allocation2 + $0x98] sm:$0xff]
    %v207 = vld [vmem:[#allocation2 + $0xa0] sm:$0xff]
    %v208 = vld [vmem:[#allocation2 + $0xa8] sm:$0xff]
    %v209 = vld [vmem:[#allocation2 + $0xb0] sm:$0xff]
    %v210 = vld [vmem:[#allocation2 + $0xb8] sm:$0xff]
    %v211 = vld [vmem:[#allocation2 + $0xc0] sm:$0xff]
    %v212 = vld [vmem:[#allocation2 + $0xc8] sm:$0xff]
    %v213 = vld [vmem:[#allocation2 + $0xd0] sm:$0xff]
    %v214 = vld [vmem:[#allocation2 + $0xd8] sm:$0xff]
    %v215 = vld [vmem:[#allocation2 + $0xe0] sm:$0xff]
    %v216 = vld [vmem:[#allocation2 + $0xe8] sm:$0xff]
    %v217 = vld [vmem:[#allocation2 + $0xf0] sm:$0xff]
    %v218 = vld [vmem:[#allocation2 + $0xf8] sm:$0xff]
    %v219 = vld [vmem:[#allocation2 + $0x100] sm:$0xff]
    %v220 = vld [vmem:[#allocation2 + $0x108] sm:$0xff]
    %v221 = vld [vmem:[#allocation2 + $0x110] sm:$0xff]
    %v222 = vld [vmem:[#allocation2 + $0x118] sm:$0xff]
    %v223 = vld [vmem:[#allocation2 + $0x120] sm:$0xff]
    %v224 = vld [vmem:[#allocation2 + $0x128] sm:$0xff]
    %v225 = vld [vmem:[#allocation2 + $0x130] sm:$0xff]
    %v226 = vld [vmem:[#allocation2 + $0x138] sm:$0xff]
    %v227 = vld [vmem:[#allocation2 + $0x140] sm:$0xff]
    %v228 = vld [vmem:[#allocation2 + $0x148] sm:$0xff]
    %v229 = vld [vmem:[#allocation2 + $0x150] sm:$0xff]
    %v230 = vld [vmem:[#allocation2 + $0x158] sm:$0xff]
    %v231 = vld [vmem:[#allocation2 + $0x160] sm:$0xff]
    %v232 = vld [vmem:[#allocation2 + $0x168] sm:$0xff]
    %v233 = vld [vmem:[#allocation2 + $0x170] sm:$0xff]
    %v234 = vld [vmem:[#allocation2 + $0x178] sm:$0xff]
    %v235 = vld [vmem:[#allocation5] sm:$0xff]
    %v236 = vld [vmem:[#allocation5 + $0x8] sm:$0xff]
    %v237 = vld [vmem:[#allocation5 + $0x10] sm:$0xff]
    %v238 = vld [vmem:[#allocation5 + $0x18] sm:$0xff]
    %v239 = vld [vmem:[#allocation5 + $0x20] sm:$0xff]
    %v240 = vld [vmem:[#allocation5 + $0x28] sm:$0xff]
    %v241 = vld [vmem:[#allocation5 + $0x30] sm:$0xff]
    %v242 = vld [vmem:[#allocation5 + $0x38] sm:$0xff]
    %v243 = vld [vmem:[#allocation5 + $0x40] sm:$0xff]
    %v244 = vld [vmem:[#allocation5 + $0x48] sm:$0xff]
    %v245 = vld [vmem:[#allocation5 + $0x50] sm:$0xff]
    %v246 = vld [vmem:[#allocation5 + $0x58] sm:$0xff]
    %v247 = vld [vmem:[#allocation5 + $0x60] sm:$0xff]
    %v248 = vld [vmem:[#allocation5 + $0x68] sm:$0xff]
    %v249 = vld [vmem:[#allocation5 + $0x70] sm:$0xff]
    %v250 = vld [vmem:[#allocation5 + $0x78] sm:$0xff]
    %v251 = vld [vmem:[#allocation5 + $0x80] sm:$0xff]
    %v252 = vld [vmem:[#allocation5 + $0x88] sm:$0xff]
    %v253 = vld [vmem:[#allocation5 + $0x90] sm:$0xff]
    %v254 = vld [vmem:[#allocation5 + $0x98] sm:$0xff]
    %v255 = vld [vmem:[#allocation5 + $0xa0] sm:$0xff]
    %v256 = vld [vmem:[#allocation5 + $0xa8] sm:$0xff]
    %v257 = vld [vmem:[#allocation5 + $0xb0] sm:$0xff]
    %v258 = vld [vmem:[#allocation5 + $0xb8] sm:$0xff]
    %v259 = vld [vmem:[#allocation5 + $0xc0] sm:$0xff]
    %v260 = vld [vmem:[#allocation5 + $0xc8] sm:$0xff]
    %v261 = vld [vmem:[#allocation5 + $0xd0] sm:$0xff]
    %v262 = vld [vmem:[#allocation5 + $0xd8] sm:$0xff]
    %v263 = vld [vmem:[#allocation5 + $0xe0] sm:$0xff]
    %v264 = vld [vmem:[#allocation5 + $0xe8] sm:$0xff]
    %v265 = vld [vmem:[#allocation5 + $0xf0] sm:$0xff]
    %v266 = vld [vmem:[#allocation5 + $0xf8] sm:$0xff]
    %v267 = vld [vmem:[#allocation5 + $0x100] sm:$0xff]
    %v268 = vld [vmem:[#allocation5 + $0x108] sm:$0xff]
    %v269 = vld [vmem:[#allocation5 + $0x110] sm:$0xff]
    %v270 = vld [vmem:[#allocation5 + $0x118] sm:$0xff]
    %v271 = vld [vmem:[#allocation5 + $0x120] sm:$0xff]
    %v272 = vld [vmem:[#allocation5 + $0x128] sm:$0xff]
    %v273 = vld [vmem:[#allocation5 + $0x130] sm:$0xff]
    %v274 = vld [vmem:[#allocation5 + $0x138] sm:$0xff]
    %v275 = vld [vmem:[#allocation5 + $0x140] sm:$0xff]
    %v276 = vld [vmem:[#allocation5 + $0x148] sm:$0xff]
    %v277 = vld [vmem:[#allocation5 + $0x150] sm:$0xff]
    %v278 = vld [vmem:[#allocation5 + $0x158] sm:$0xff]
    %v279 = vld [vmem:[#allocation5 + $0x160] sm:$0xff]
    %v280 = vld [vmem:[#allocation5 + $0x168] sm:$0xff]
    %v281 = vld [vmem:[#allocation5 + $0x170] sm:$0xff]
    %v282 = vld [vmem:[#allocation5 + $0x178] sm:$0xff]
    %v283 = vld [vmem:[#allocation5 + $0x180] sm:$0xff]
    %v284 = vld [vmem:[#allocation5 + $0x188] sm:$0xff]
    %v285 = vld [vmem:[#allocation5 + $0x190] sm:$0xff]
    %v286 = vld [vmem:[#allocation5 + $0x198] sm:$0xff]
    %v287 = vld [vmem:[#allocation5 + $0x1a0] sm:$0xff]
    %v288 = vld [vmem:[#allocation5 + $0x1a8] sm:$0xff]
    %v289 = vld [vmem:[#allocation5 + $0x1b0] sm:$0xff]
    %v290 = vld [vmem:[#allocation5 + $0x1b8] sm:$0xff]
    %v291 = vld [vmem:[#allocation5 + $0x1c0] sm:$0xff]
    %v292 = vld [vmem:[#allocation5 + $0x1c8] sm:$0xff]
    %v293 = vld [vmem:[#allocation5 + $0x1d0] sm:$0xff]
    %v294 = vld [vmem:[#allocation5 + $0x1d8] sm:$0xff]
    %v295 = vld [vmem:[#allocation5 + $0x1e0] sm:$0xff]
    %v296 = vld [vmem:[#allocation5 + $0x1e8] sm:$0xff]
    %v297 = vld [vmem:[#allocation5 + $0x1f0] sm:$0xff]
    %v298 = vld [vmem:[#allocation5 + $0x1f8] sm:$0xff]
    %v299 = vld [vmem:[#allocation5 + $0x200] sm:$0xff]
    %v300 = vld [vmem:[#allocation5 + $0x208] sm:$0xff]
    %v301 = vld [vmem:[#allocation5 + $0x210] sm:$0xff]
    %v302 = vld [vmem:[#allocation5 + $0x218] sm:$0xff]
    %v303 = vld [vmem:[#allocation5 + $0x220] sm:$0xff]
    %v304 = vld [vmem:[#allocation5 + $0x228] sm:$0xff]
    %v305 = vld [vmem:[#allocation5 + $0x230] sm:$0xff]
    %v306 = vld [vmem:[#allocation5 + $0x238] sm:$0xff]
    %v307 = vld [vmem:[#allocation5 + $0x240] sm:$0xff]
    %v308 = vld [vmem:[#allocation5 + $0x248] sm:$0xff]
    %v309 = vld [vmem:[#allocation5 + $0x250] sm:$0xff]
    %v310 = vld [vmem:[#allocation5 + $0x258] sm:$0xff]
    %v311 = vld [vmem:[#allocation5 + $0x260] sm:$0xff]
    %v312 = vld [vmem:[#allocation5 + $0x268] sm:$0xff]
    %v313 = vld [vmem:[#allocation5 + $0x270] sm:$0xff]
    %v314 = vld [vmem:[#allocation5 + $0x278] sm:$0xff]
    %v315 = vld [vmem:[#allocation5 + $0x280] sm:$0xff]
    %v316 = vld [vmem:[#allocation5 + $0x288] sm:$0xff]
    %v317 = vld [vmem:[#allocation5 + $0x290] sm:$0xff]
    %v318 = vld [vmem:[#allocation5 + $0x298] sm:$0xff]
    %v319 = vld [vmem:[#allocation5 + $0x2a0] sm:$0xff]
    %v320 = vld [vmem:[#allocation5 + $0x2a8] sm:$0xff]
    %v321 = vld [vmem:[#allocation5 + $0x2b0] sm:$0xff]
    %v322 = vld [vmem:[#allocation5 + $0x2b8] sm:$0xff]
    %v323 = vld [vmem:[#allocation5 + $0x2c0] sm:$0xff]
    %v324 = vld [vmem:[#allocation5 + $0x2c8] sm:$0xff]
    %v325 = vld [vmem:[#allocation5 + $0x2d0] sm:$0xff]
    %v326 = vld [vmem:[#allocation5 + $0x2d8] sm:$0xff]
    %v327 = vld [vmem:[#allocation5 + $0x2e0] sm:$0xff]
    %v328 = vld [vmem:[#allocation5 + $0x2e8] sm:$0xff]
    %v329 = vld [vmem:[#allocation5 + $0x2f0] sm:$0xff]
    %v330 = vld [vmem:[#allocation5 + $0x2f8] sm:$0xff]
    %v331 = vld [vmem:[#allocation5 + $0x300] sm:$0xff]
    %v332 = vld [vmem:[#allocation5 + $0x308] sm:$0xff]
    %v333 = vld [vmem:[#allocation5 + $0x310] sm:$0xff]
    %v334 = vld [vmem:[#allocation5 + $0x318] sm:$0xff]
    %v335 = vld [vmem:[#allocation5 + $0x320] sm:$0xff]
    %v336 = vld [vmem:[#allocation5 + $0x328] sm:$0xff]
    %v337 = vld [vmem:[#allocation5 + $0x330] sm:$0xff]
    %v338 = vld [vmem:[#allocation5 + $0x338] sm:$0xff]
    %v339 = vld [vmem:[#allocation5 + $0x340] sm:$0xff]
    %v340 = vld [vmem:[#allocation5 + $0x348] sm:$0xff]
    %v341 = vld [vmem:[#allocation5 + $0x350] sm:$0xff]
    %v342 = vld [vmem:[#allocation5 + $0x358] sm:$0xff]
    %v343 = vld [vmem:[#allocation5 + $0x360] sm:$0xff]
    %v344 = vld [vmem:[#allocation5 + $0x368] sm:$0xff]
    %v345 = vld [vmem:[#allocation5 + $0x370] sm:$0xff]
    %v346 = vld [vmem:[#allocation5 + $0x378] sm:$0xff]
    %v347 = vld [vmem:[#allocation5 + $0x380] sm:$0xff]
    %v348 = vld [vmem:[#allocation5 + $0x388] sm:$0xff]
    %v349 = vld [vmem:[#allocation5 + $0x390] sm:$0xff]
    %v350 = vld [vmem:[#allocation5 + $0x398] sm:$0xff]
    %v351 = vld [vmem:[#allocation5 + $0x3a0] sm:$0xff]
    %v352 = vld [vmem:[#allocation5 + $0x3a8] sm:$0xff]
    %v353 = vld [vmem:[#allocation5 + $0x3b0] sm:$0xff]
    %v354 = vld [vmem:[#allocation5 + $0x3b8] sm:$0xff]
    %v355 = vld [vmem:[#allocation5 + $0x3c0] sm:$0xff]
    %v356 = vld [vmem:[#allocation5 + $0x3c8] sm:$0xff]
    %v357 = vld [vmem:[#allocation5 + $0x3d0] sm:$0xff]
    %v358 = vld [vmem:[#allocation5 + $0x3d8] sm:$0xff]
    %v359 = vld [vmem:[#allocation5 + $0x3e0] sm:$0xff]
    %v360 = vld [vmem:[#allocation5 + $0x3e8] sm:$0xff]
    %v361 = vld [vmem:[#allocation5 + $0x3f0] sm:$0xff]
    %v362 = vld [vmem:[#allocation5 + $0x3f8] sm:$0xff]
    %v363 = vld [vmem:[#allocation5 + $0x400] sm:$0xff]
    %v364 = vld [vmem:[#allocation5 + $0x408] sm:$0xff]
    %v365 = vld [vmem:[#allocation5 + $0x410] sm:$0xff]
    %v366 = vld [vmem:[#allocation5 + $0x418] sm:$0xff]
    %v367 = vld [vmem:[#allocation5 + $0x420] sm:$0xff]
    %v368 = vld [vmem:[#allocation5 + $0x428] sm:$0xff]
    %v369 = vld [vmem:[#allocation5 + $0x430] sm:$0xff]
    %v370 = vld [vmem:[#allocation5 + $0x438] sm:$0xff]
    %v371 = vld [vmem:[#allocation5 + $0x440] sm:$0xff]
    %v372 = vld [vmem:[#allocation5 + $0x448] sm:$0xff]
    %v373 = vld [vmem:[#allocation5 + $0x450] sm:$0xff]
    %v374 = vld [vmem:[#allocation5 + $0x458] sm:$0xff]
    %v375 = vld [vmem:[#allocation5 + $0x460] sm:$0xff]
    %v376 = vld [vmem:[#allocation5 + $0x468] sm:$0xff]
    %v377 = vld [vmem:[#allocation5 + $0x470] sm:$0xff]
    %v378 = vld [vmem:[#allocation5 + $0x478] sm:$0xff]
    %v379 = vld [vmem:[#allocation5 + $0x480] sm:$0xff]
    %v380 = vld [vmem:[#allocation5 + $0x488] sm:$0xff]
    %v381 = vld [vmem:[#allocation5 + $0x490] sm:$0xff]
    %v382 = vld [vmem:[#allocation5 + $0x498] sm:$0xff]
    %v383 = vld [vmem:[#allocation5 + $0x4a0] sm:$0xff]
    %v384 = vld [vmem:[#allocation5 + $0x4a8] sm:$0xff]
    %v385 = vld [vmem:[#allocation5 + $0x4b0] sm:$0xff]
    %v386 = vld [vmem:[#allocation5 + $0x4b8] sm:$0xff]
    %v387 = vld [vmem:[#allocation5 + $0x4c0] sm:$0xff]
    %v388 = vld [vmem:[#allocation5 + $0x4c8] sm:$0xff]
    %v389 = vld [vmem:[#allocation5 + $0x4d0] sm:$0xff]
    %v390 = vld [vmem:[#allocation5 + $0x4d8] sm:$0xff]
    %v391 = vld [vmem:[#allocation5 + $0x4e0] sm:$0xff]
    %v392 = vld [vmem:[#allocation5 + $0x4e8] sm:$0xff]
    %v393 = vld [vmem:[#allocation5 + $0x4f0] sm:$0xff]
    %v394 = vld [vmem:[#allocation5 + $0x4f8] sm:$0xff]
    %v395 = vld [vmem:[#allocation5 + $0x500] sm:$0xff]
    %v396 = vld [vmem:[#allocation5 + $0x508] sm:$0xff]
    %v397 = vld [vmem:[#allocation5 + $0x510] sm:$0xff]
    %v398 = vld [vmem:[#allocation5 + $0x518] sm:$0xff]
    %v399 = vld [vmem:[#allocation5 + $0x520] sm:$0xff]
    %v400 = vld [vmem:[#allocation5 + $0x528] sm:$0xff]
    %v401 = vld [vmem:[#allocation5 + $0x530] sm:$0xff]
    %v402 = vld [vmem:[#allocation5 + $0x538] sm:$0xff]
    %v403 = vld [vmem:[#allocation5 + $0x540] sm:$0xff]
    %v404 = vld [vmem:[#allocation5 + $0x548] sm:$0xff]
    %v405 = vld [vmem:[#allocation5 + $0x550] sm:$0xff]
    %v406 = vld [vmem:[#allocation5 + $0x558] sm:$0xff]
    %v407 = vld [vmem:[#allocation5 + $0x560] sm:$0xff]
    %v408 = vld [vmem:[#allocation5 + $0x568] sm:$0xff]
    %v409 = vld [vmem:[#allocation5 + $0x570] sm:$0xff]
    %v410 = vld [vmem:[#allocation5 + $0x578] sm:$0xff]
    %v411 = vld [vmem:[#allocation5 + $0x580] sm:$0xff]
    %v412 = vld [vmem:[#allocation5 + $0x588] sm:$0xff]
    %v413 = vld [vmem:[#allocation5 + $0x590] sm:$0xff]
    %v414 = vld [vmem:[#allocation5 + $0x598] sm:$0xff]
    %v415 = vld [vmem:[#allocation5 + $0x5a0] sm:$0xff]
    %v416 = vld [vmem:[#allocation5 + $0x5a8] sm:$0xff]
    %v417 = vld [vmem:[#allocation5 + $0x5b0] sm:$0xff]
    %v418 = vld [vmem:[#allocation5 + $0x5b8] sm:$0xff]
    %v419 = vld [vmem:[#allocation5 + $0x5c0] sm:$0xff]
    %v420 = vld [vmem:[#allocation5 + $0x5c8] sm:$0xff]
    %v421 = vld [vmem:[#allocation5 + $0x5d0] sm:$0xff]
    %v422 = vld [vmem:[#allocation5 + $0x5d8] sm:$0xff]
    %v423 = vld [vmem:[#allocation5 + $0x5e0] sm:$0xff]
    %v424 = vld [vmem:[#allocation5 + $0x5e8] sm:$0xff]
    %v425 = vld [vmem:[#allocation5 + $0x5f0] sm:$0xff]
    %v426 = vld [vmem:[#allocation5 + $0x5f8] sm:$0xff]
    %v427 = vld [vmem:[#allocation5 + $0x600] sm:$0xff]
    %v428 = vld [vmem:[#allocation5 + $0x608] sm:$0xff]
    %v429 = vld [vmem:[#allocation5 + $0x610] sm:$0xff]
    %v430 = vld [vmem:[#allocation5 + $0x618] sm:$0xff]
    %v431 = vld [vmem:[#allocation5 + $0x620] sm:$0xff]
    %v432 = vld [vmem:[#allocation5 + $0x628] sm:$0xff]
    %v433 = vld [vmem:[#allocation5 + $0x630] sm:$0xff]
    %v434 = vld [vmem:[#allocation5 + $0x638] sm:$0xff]
    %v435 = vld [vmem:[#allocation5 + $0x640] sm:$0xff]
    %v436 = vld [vmem:[#allocation5 + $0x648] sm:$0xff]
    %v437 = vld [vmem:[#allocation5 + $0x650] sm:$0xff]
    %v438 = vld [vmem:[#allocation5 + $0x658] sm:$0xff]
    %v439 = vld [vmem:[#allocation5 + $0x660] sm:$0xff]
    %v440 = vld [vmem:[#allocation5 + $0x668] sm:$0xff]
    %v441 = vld [vmem:[#allocation5 + $0x670] sm:$0xff]
    %v442 = vld [vmem:[#allocation5 + $0x678] sm:$0xff]
    %v443 = vld [vmem:[#allocation5 + $0x680] sm:$0xff]
    %v444 = vld [vmem:[#allocation5 + $0x688] sm:$0xff]
    %v445 = vld [vmem:[#allocation5 + $0x690] sm:$0xff]
    %v446 = vld [vmem:[#allocation5 + $0x698] sm:$0xff]
    %v447 = vld [vmem:[#allocation5 + $0x6a0] sm:$0xff]
    %v448 = vld [vmem:[#allocation5 + $0x6a8] sm:$0xff]
    %v449 = vld [vmem:[#allocation5 + $0x6b0] sm:$0xff]
    %v450 = vld [vmem:[#allocation5 + $0x6b8] sm:$0xff]
    %v451 = vld [vmem:[#allocation5 + $0x6c0] sm:$0xff]
    %v452 = vld [vmem:[#allocation5 + $0x6c8] sm:$0xff]
    %v453 = vld [vmem:[#allocation5 + $0x6d0] sm:$0xff]
    %v454 = vld [vmem:[#allocation5 + $0x6d8] sm:$0xff]
    %v455 = vld [vmem:[#allocation5 + $0x6e0] sm:$0xff]
    %v456 = vld [vmem:[#allocation5 + $0x6e8] sm:$0xff]
    %v457 = vld [vmem:[#allocation5 + $0x6f0] sm:$0xff]
    %v458 = vld [vmem:[#allocation5 + $0x6f8] sm:$0xff]
    %v459 = vld [vmem:[#allocation5 + $0x700] sm:$0xff]
    %v460 = vld [vmem:[#allocation5 + $0x708] sm:$0xff]
    %v461 = vld [vmem:[#allocation5 + $0x710] sm:$0xff]
    %v462 = vld [vmem:[#allocation5 + $0x718] sm:$0xff]
    %v463 = vld [vmem:[#allocation5 + $0x720] sm:$0xff]
    %v464 = vld [vmem:[#allocation5 + $0x728] sm:$0xff]
    %v465 = vld [vmem:[#allocation5 + $0x730] sm:$0xff]
    %v466 = vld [vmem:[#allocation5 + $0x738] sm:$0xff]
    %v467 = vld [vmem:[#allocation5 + $0x740] sm:$0xff]
    %v468 = vld [vmem:[#allocation5 + $0x748] sm:$0xff]
    %v469 = vld [vmem:[#allocation5 + $0x750] sm:$0xff]
    %v470 = vld [vmem:[#allocation5 + $0x758] sm:$0xff]
    %v471 = vld [vmem:[#allocation5 + $0x760] sm:$0xff]
    %v472 = vld [vmem:[#allocation5 + $0x768] sm:$0xff]
    %v473 = vld [vmem:[#allocation5 + $0x770] sm:$0xff]
    %v474 = vld [vmem:[#allocation5 + $0x778] sm:$0xff]
    %v475 = vld [vmem:[#allocation5 + $0x780] sm:$0xff]
    %v476 = vld [vmem:[#allocation5 + $0x788] sm:$0xff]
    %v477 = vld [vmem:[#allocation5 + $0x790] sm:$0xff]
    %v478 = vld [vmem:[#allocation5 + $0x798] sm:$0xff]
    %v479 = vld [vmem:[#allocation5 + $0x7a0] sm:$0xff]
    %v480 = vld [vmem:[#allocation5 + $0x7a8] sm:$0xff]
    %v481 = vld [vmem:[#allocation5 + $0x7b0] sm:$0xff]
    %v482 = vld [vmem:[#allocation5 + $0x7b8] sm:$0xff]
    %v483 = vld [vmem:[#allocation5 + $0x7c0] sm:$0xff]
    %v484 = vld [vmem:[#allocation5 + $0x7c8] sm:$0xff]
    %v485 = vld [vmem:[#allocation5 + $0x7d0] sm:$0xff]
    %v486 = vld [vmem:[#allocation5 + $0x7d8] sm:$0xff]
    %v487 = vld [vmem:[#allocation5 + $0x7e0] sm:$0xff]
    %v488 = vld [vmem:[#allocation5 + $0x7e8] sm:$0xff]
    %v489 = vld [vmem:[#allocation5 + $0x7f0] sm:$0xff]
    %v490 = vld [vmem:[#allocation5 + $0x7f8] sm:$0xff]
    %v491 = vld [vmem:[#allocation5 + $0x800] sm:$0xff]
    %v492 = vld [vmem:[#allocation5 + $0x808] sm:$0xff]
    %v493 = vld [vmem:[#allocation5 + $0x810] sm:$0xff]
    %v494 = vld [vmem:[#allocation5 + $0x818] sm:$0xff]
    %v495 = vld [vmem:[#allocation5 + $0x820] sm:$0xff]
    %v496 = vld [vmem:[#allocation5 + $0x828] sm:$0xff]
    %v497 = vld [vmem:[#allocation5 + $0x830] sm:$0xff]
    %v498 = vld [vmem:[#allocation5 + $0x838] sm:$0xff]
    %v499 = vld [vmem:[#allocation5 + $0x840] sm:$0xff]
    %v500 = vld [vmem:[#allocation5 + $0x848] sm:$0xff]
    %v501 = vld [vmem:[#allocation5 + $0x850] sm:$0xff]
    %v502 = vld [vmem:[#allocation5 + $0x858] sm:$0xff]
    %v503 = vld [vmem:[#allocation5 + $0x860] sm:$0xff]
    %v504 = vld [vmem:[#allocation5 + $0x868] sm:$0xff]
    %v505 = vld [vmem:[#allocation5 + $0x870] sm:$0xff]
    %v506 = vld [vmem:[#allocation5 + $0x878] sm:$0xff]
    %v507 = vld [vmem:[#allocation5 + $0x880] sm:$0xff]
    %v508 = vld [vmem:[#allocation5 + $0x888] sm:$0xff]
    %v509 = vld [vmem:[#allocation5 + $0x890] sm:$0xff]
    %v510 = vld [vmem:[#allocation5 + $0x898] sm:$0xff]
    %v511 = vld [vmem:[#allocation5 + $0x8a0] sm:$0xff]
    %v512 = vld [vmem:[#allocation5 + $0x8a8] sm:$0xff]
    %v513 = vld [vmem:[#allocation5 + $0x8b0] sm:$0xff]
    %v514 = vld [vmem:[#allocation5 + $0x8b8] sm:$0xff]
    %v515 = vld [vmem:[#allocation5 + $0x8c0] sm:$0xff]
    %v516 = vld [vmem:[#allocation5 + $0x8c8] sm:$0xff]
    %v517 = vld [vmem:[#allocation5 + $0x8d0] sm:$0xff]
    %v518 = vld [vmem:[#allocation5 + $0x8d8] sm:$0xff]
    %v519 = vld [vmem:[#allocation5 + $0x8e0] sm:$0xff]
    %v520 = vld [vmem:[#allocation5 + $0x8e8] sm:$0xff]
    %v521 = vld [vmem:[#allocation5 + $0x8f0] sm:$0xff]
    %v522 = vld [vmem:[#allocation5 + $0x8f8] sm:$0xff]
    %v523 = vld [vmem:[#allocation5 + $0x900] sm:$0xff]
    %v524 = vld [vmem:[#allocation5 + $0x908] sm:$0xff]
    %v525 = vld [vmem:[#allocation5 + $0x910] sm:$0xff]
    %v526 = vld [vmem:[#allocation5 + $0x918] sm:$0xff]
    %v527 = vld [vmem:[#allocation5 + $0x920] sm:$0xff]
    %v528 = vld [vmem:[#allocation5 + $0x928] sm:$0xff]
    %v529 = vld [vmem:[#allocation5 + $0x930] sm:$0xff]
    %v530 = vld [vmem:[#allocation5 + $0x938] sm:$0xff]
    %v531 = vld [vmem:[#allocation5 + $0x940] sm:$0xff]
    %v532 = vld [vmem:[#allocation5 + $0x948] sm:$0xff]
    %v533 = vld [vmem:[#allocation5 + $0x950] sm:$0xff]
    %v534 = vld [vmem:[#allocation5 + $0x958] sm:$0xff]
    %v535 = vld [vmem:[#allocation5 + $0x960] sm:$0xff]
    %v536 = vld [vmem:[#allocation5 + $0x968] sm:$0xff]
    %v537 = vld [vmem:[#allocation5 + $0x970] sm:$0xff]
    %v538 = vld [vmem:[#allocation5 + $0x978] sm:$0xff]
    %v539 = vld [vmem:[#allocation5 + $0x980] sm:$0xff]
    %v540 = vld [vmem:[#allocation5 + $0x988] sm:$0xff]
    %v541 = vld [vmem:[#allocation5 + $0x990] sm:$0xff]
    %v542 = vld [vmem:[#allocation5 + $0x998] sm:$0xff]
    %v543 = vld [vmem:[#allocation5 + $0x9a0] sm:$0xff]
    %v544 = vld [vmem:[#allocation5 + $0x9a8] sm:$0xff]
    %v545 = vld [vmem:[#allocation5 + $0x9b0] sm:$0xff]
    %v546 = vld [vmem:[#allocation5 + $0x9b8] sm:$0xff]
    %v547 = vld [vmem:[#allocation5 + $0x9c0] sm:$0xff]
    %v548 = vld [vmem:[#allocation5 + $0x9c8] sm:$0xff]
    %v549 = vld [vmem:[#allocation5 + $0x9d0] sm:$0xff]
    %v550 = vld [vmem:[#allocation5 + $0x9d8] sm:$0xff]
    %v551 = vld [vmem:[#allocation5 + $0x9e0] sm:$0xff]
    %v552 = vld [vmem:[#allocation5 + $0x9e8] sm:$0xff]
    %v553 = vld [vmem:[#allocation5 + $0x9f0] sm:$0xff]
    %v554 = vld [vmem:[#allocation5 + $0x9f8] sm:$0xff]
    %v555 = vld [vmem:[#allocation5 + $0xa00] sm:$0xff]
    %v556 = vld [vmem:[#allocation5 + $0xa08] sm:$0xff]
    %v557 = vld [vmem:[#allocation5 + $0xa10] sm:$0xff]
    %v558 = vld [vmem:[#allocation5 + $0xa18] sm:$0xff]
    %v559 = vld [vmem:[#allocation5 + $0xa20] sm:$0xff]
    %v560 = vld [vmem:[#allocation5 + $0xa28] sm:$0xff]
    %v561 = vld [vmem:[#allocation5 + $0xa30] sm:$0xff]
    %v562 = vld [vmem:[#allocation5 + $0xa38] sm:$0xff]
    %v563 = vld [vmem:[#allocation5 + $0xa40] sm:$0xff]
    %v564 = vld [vmem:[#allocation5 + $0xa48] sm:$0xff]
    %v565 = vld [vmem:[#allocation5 + $0xa50] sm:$0xff]
    %v566 = vld [vmem:[#allocation5 + $0xa58] sm:$0xff]
    %v567 = vld [vmem:[#allocation5 + $0xa60] sm:$0xff]
    %v568 = vld [vmem:[#allocation5 + $0xa68] sm:$0xff]
    %v569 = vld [vmem:[#allocation5 + $0xa70] sm:$0xff]
    %v570 = vld [vmem:[#allocation5 + $0xa78] sm:$0xff]
    %v571 = vld [vmem:[#allocation5 + $0xa80] sm:$0xff]
    %v572 = vld [vmem:[#allocation5 + $0xa88] sm:$0xff]
    %v573 = vld [vmem:[#allocation5 + $0xa90] sm:$0xff]
    %v574 = vld [vmem:[#allocation5 + $0xa98] sm:$0xff]
    %v575 = vld [vmem:[#allocation5 + $0xaa0] sm:$0xff]
    %v576 = vld [vmem:[#allocation5 + $0xaa8] sm:$0xff]
    %v577 = vld [vmem:[#allocation5 + $0xab0] sm:$0xff]
    %v578 = vld [vmem:[#allocation5 + $0xab8] sm:$0xff]
    %v579 = vld [vmem:[#allocation5 + $0xac0] sm:$0xff]
    %v580 = vld [vmem:[#allocation5 + $0xac8] sm:$0xff]
    %v581 = vld [vmem:[#allocation5 + $0xad0] sm:$0xff]
    %v582 = vld [vmem:[#allocation5 + $0xad8] sm:$0xff]
    %v583 = vld [vmem:[#allocation5 + $0xae0] sm:$0xff]
    %v584 = vld [vmem:[#allocation5 + $0xae8] sm:$0xff]
    %v585 = vld [vmem:[#allocation5 + $0xaf0] sm:$0xff]
    %v586 = vld [vmem:[#allocation5 + $0xaf8] sm:$0xff]
    %v587 = vld [vmem:[#allocation5 + $0xb00] sm:$0xff]
    %v588 = vld [vmem:[#allocation5 + $0xb08] sm:$0xff]
    %v589 = vld [vmem:[#allocation5 + $0xb10] sm:$0xff]
    %v590 = vld [vmem:[#allocation5 + $0xb18] sm:$0xff]
    %v591 = vld [vmem:[#allocation5 + $0xb20] sm:$0xff]
    %v592 = vld [vmem:[#allocation5 + $0xb28] sm:$0xff]
    %v593 = vld [vmem:[#allocation5 + $0xb30] sm:$0xff]
    %v594 = vld [vmem:[#allocation5 + $0xb38] sm:$0xff]
    %v595 = vld [vmem:[#allocation5 + $0xb40] sm:$0xff]
    %v596 = vld [vmem:[#allocation5 + $0xb48] sm:$0xff]
    %v597 = vld [vmem:[#allocation5 + $0xb50] sm:$0xff]
    %v598 = vld [vmem:[#allocation5 + $0xb58] sm:$0xff]
    %v599 = vld [vmem:[#allocation5 + $0xb60] sm:$0xff]
    %v600 = vld [vmem:[#allocation5 + $0xb68] sm:$0xff]
    %v601 = vld [vmem:[#allocation5 + $0xb70] sm:$0xff]
    %v602 = vld [vmem:[#allocation5 + $0xb78] sm:$0xff]
    %v603 = vld [vmem:[#allocation5 + $0xb80] sm:$0xff]
    %v604 = vld [vmem:[#allocation5 + $0xb88] sm:$0xff]
    %v605 = vld [vmem:[#allocation5 + $0xb90] sm:$0xff]
    %v606 = vld [vmem:[#allocation5 + $0xb98] sm:$0xff]
    %v607 = vld [vmem:[#allocation5 + $0xba0] sm:$0xff]
    %v608 = vld [vmem:[#allocation5 + $0xba8] sm:$0xff]
    %v609 = vld [vmem:[#allocation5 + $0xbb0] sm:$0xff]
    %v610 = vld [vmem:[#allocation5 + $0xbb8] sm:$0xff]
    %v611 = vld [vmem:[#allocation5 + $0xbc0] sm:$0xff]
    %v612 = vld [vmem:[#allocation5 + $0xbc8] sm:$0xff]
    %v613 = vld [vmem:[#allocation5 + $0xbd0] sm:$0xff]
    %v614 = vld [vmem:[#allocation5 + $0xbd8] sm:$0xff]
    %v615 = vld [vmem:[#allocation5 + $0xbe0] sm:$0xff]
    %v616 = vld [vmem:[#allocation5 + $0xbe8] sm:$0xff]
    %v617 = vld [vmem:[#allocation5 + $0xbf0] sm:$0xff]
    %v618 = vld [vmem:[#allocation5 + $0xbf8] sm:$0xff]
    %v619 = vld [vmem:[#allocation8] sm:$0xff]
    %v620 = vld [vmem:[#allocation8 + $0x8] sm:$0xff]
    %v621 = vld [vmem:[#allocation8 + $0x10] sm:$0xff]
    %v622 = vld [vmem:[#allocation8 + $0x18] sm:$0xff]
    %v623 = vld [vmem:[#allocation7] sm:$0x3]
    %v625 = vperm.slane %v623, 0
    %v626 = vperm.slane %v623, 1
    %v677 = vunpack.c.l.b16 %v187
    %v678 = vunpack.c.h.b16 %v187
    %v679 = vunpack.c.l.b16 %v188
    %v680 = vunpack.c.h.b16 %v188
    %v681 = vunpack.c.l.b16 %v189
    %v682 = vunpack.c.h.b16 %v189
    %v683 = vunpack.c.l.b16 %v190
    %v684 = vunpack.c.h.b16 %v190
    %v685 = vunpack.c.l.b16 %v191
    %v686 = vunpack.c.h.b16 %v191
    %v687 = vunpack.c.l.b16 %v192
    %v688 = vunpack.c.h.b16 %v192
    %v689 = vunpack.c.l.b16 %v193
    %v690 = vunpack.c.h.b16 %v193
    %v691 = vunpack.c.l.b16 %v194
    %v692 = vunpack.c.h.b16 %v194
    %v693 = vunpack.c.l.b16 %v195
    %v694 = vunpack.c.h.b16 %v195
    %v695 = vunpack.c.l.b16 %v196
    %v696 = vunpack.c.h.b16 %v196
    %v697 = vunpack.c.l.b16 %v197
    %v698 = vunpack.c.h.b16 %v197
    %v699 = vunpack.c.l.b16 %v198
    %v700 = vunpack.c.h.b16 %v198
    %v701 = vunpack.c.l.b16 %v199
    %v702 = vunpack.c.h.b16 %v199
    %v703 = vunpack.c.l.b16 %v200
    %v704 = vunpack.c.h.b16 %v200
    %v705 = vunpack.c.l.b16 %v201
    %v706 = vunpack.c.h.b16 %v201
    %v707 = vunpack.c.l.b16 %v202
    %v708 = vunpack.c.h.b16 %v202
    %v709 = vunpack.c.l.b16 %v203
    %v710 = vunpack.c.h.b16 %v203
    %v711 = vunpack.c.l.b16 %v204
    %v712 = vunpack.c.h.b16 %v204
    %v713 = vunpack.c.l.b16 %v205
    %v714 = vunpack.c.h.b16 %v205
    %v715 = vunpack.c.l.b16 %v206
    %v716 = vunpack.c.h.b16 %v206
    %v717 = vunpack.c.l.b16 %v207
    %v718 = vunpack.c.h.b16 %v207
    %v719 = vunpack.c.l.b16 %v208
    %v720 = vunpack.c.h.b16 %v208
    %v721 = vunpack.c.l.b16 %v209
    %v722 = vunpack.c.h.b16 %v209
    %v723 = vunpack.c.l.b16 %v210
    %v724 = vunpack.c.h.b16 %v210
    %v725 = vunpack.c.l.b16 %v211
    %v726 = vunpack.c.h.b16 %v211
    %v727 = vunpack.c.l.b16 %v212
    %v728 = vunpack.c.h.b16 %v212
    %v729 = vunpack.c.l.b16 %v213
    %v730 = vunpack.c.h.b16 %v213
    %v731 = vunpack.c.l.b16 %v214
    %v732 = vunpack.c.h.b16 %v214
    %v733 = vunpack.c.l.b16 %v215
    %v734 = vunpack.c.h.b16 %v215
    %v735 = vunpack.c.l.b16 %v216
    %v736 = vunpack.c.h.b16 %v216
    %v737 = vunpack.c.l.b16 %v217
    %v738 = vunpack.c.h.b16 %v217
    %v739 = vunpack.c.l.b16 %v218
    %v740 = vunpack.c.h.b16 %v218
    %v741 = vunpack.c.l.b16 %v219
    %v742 = vunpack.c.h.b16 %v219
    %v743 = vunpack.c.l.b16 %v220
    %v744 = vunpack.c.h.b16 %v220
    %v745 = vunpack.c.l.b16 %v221
    %v746 = vunpack.c.h.b16 %v221
    %v747 = vunpack.c.l.b16 %v222
    %v748 = vunpack.c.h.b16 %v222
    %v749 = vunpack.c.l.b16 %v223
    %v750 = vunpack.c.h.b16 %v223
    %v751 = vunpack.c.l.b16 %v224
    %v752 = vunpack.c.h.b16 %v224
    %v753 = vunpack.c.l.b16 %v225
    %v754 = vunpack.c.h.b16 %v225
    %v755 = vunpack.c.l.b16 %v226
    %v756 = vunpack.c.h.b16 %v226
    %v757 = vunpack.c.l.b16 %v227
    %v758 = vunpack.c.h.b16 %v227
    %v759 = vunpack.c.l.b16 %v228
    %v760 = vunpack.c.h.b16 %v228
    %v761 = vunpack.c.l.b16 %v229
    %v762 = vunpack.c.h.b16 %v229
    %v763 = vunpack.c.l.b16 %v230
    %v764 = vunpack.c.h.b16 %v230
    %v765 = vunpack.c.l.b16 %v231
    %v766 = vunpack.c.h.b16 %v231
    %v767 = vunpack.c.l.b16 %v232
    %v768 = vunpack.c.h.b16 %v232
    %v769 = vunpack.c.l.b16 %v233
    %v770 = vunpack.c.h.b16 %v233
    %v771 = vunpack.c.l.b16 %v234
    %v772 = vunpack.c.h.b16 %v234
    %v773 = vpack.c.b16 %v701, %v677
    %v774 = vpack.c.b16 %v702, %v678
    %v775 = vpack.c.b16 %v703, %v679
    %v776 = vpack.c.b16 %v704, %v680
    %v777 = vpack.c.b16 %v705, %v681
    %v778 = vpack.c.b16 %v706, %v682
    %v779 = vpack.c.b16 %v707, %v683
    %v780 = vpack.c.b16 %v708, %v684
    %v781 = vpack.c.b16 %v709, %v685
    %v782 = vpack.c.b16 %v710, %v686
    %v783 = vpack.c.b16 %v711, %v687
    %v784 = vpack.c.b16 %v712, %v688
    %v785 = vpack.c.b16 %v713, %v689
    %v786 = vpack.c.b16 %v714, %v690
    %v787 = vpack.c.b16 %v715, %v691
    %v788 = vpack.c.b16 %v716, %v692
    %v789 = vpack.c.b16 %v717, %v693
    %v790 = vpack.c.b16 %v718, %v694
    %v791 = vpack.c.b16 %v719, %v695
    %v792 = vpack.c.b16 %v720, %v696
    %v793 = vpack.c.b16 %v721, %v697
    %v794 = vpack.c.b16 %v722, %v698
    %v795 = vpack.c.b16 %v723, %v699
    %v796 = vpack.c.b16 %v724, %v700
    %v797 = vpack.c.b16 %v749, %v725
    %v798 = vpack.c.b16 %v750, %v726
    %v799 = vpack.c.b16 %v751, %v727
    %v800 = vpack.c.b16 %v752, %v728
    %v801 = vpack.c.b16 %v753, %v729
    %v802 = vpack.c.b16 %v754, %v730
    %v803 = vpack.c.b16 %v755, %v731
    %v804 = vpack.c.b16 %v756, %v732
    %v805 = vpack.c.b16 %v757, %v733
    %v806 = vpack.c.b16 %v758, %v734
    %v807 = vpack.c.b16 %v759, %v735
    %v808 = vpack.c.b16 %v760, %v736
    %v809 = vpack.c.b16 %v761, %v737
    %v810 = vpack.c.b16 %v762, %v738
    %v811 = vpack.c.b16 %v763, %v739
    %v812 = vpack.c.b16 %v764, %v740
    %v813 = vpack.c.b16 %v765, %v741
    %v814 = vpack.c.b16 %v766, %v742
    %v815 = vpack.c.b16 %v767, %v743
    %v816 = vpack.c.b16 %v768, %v744
    %v817 = vpack.c.b16 %v769, %v745
    %v818 = vpack.c.b16 %v770, %v746
    %v819 = vpack.c.b16 %v771, %v747
    %v820 = vpack.c.b16 %v772, %v748
    %v1253 = vunpack.c.l.b16 %v235
    %v1254 = vunpack.c.h.b16 %v235
    %v1255 = vunpack.c.l.b16 %v236
    %v1256 = vunpack.c.h.b16 %v236
    %v1257 = vunpack.c.l.b16 %v237
    %v1258 = vunpack.c.h.b16 %v237
    %v1259 = vunpack.c.l.b16 %v238
    %v1260 = vunpack.c.h.b16 %v238
    %v1261 = vunpack.c.l.b16 %v239
    %v1262 = vunpack.c.h.b16 %v239
    %v1263 = vunpack.c.l.b16 %v240
    %v1264 = vunpack.c.h.b16 %v240
    %v1265 = vunpack.c.l.b16 %v241
    %v1266 = vunpack.c.h.b16 %v241
    %v1267 = vunpack.c.l.b16 %v242
    %v1268 = vunpack.c.h.b16 %v242
    %v1269 = vunpack.c.l.b16 %v243
    %v1270 = vunpack.c.h.b16 %v243
    %v1271 = vunpack.c.l.b16 %v244
    %v1272 = vunpack.c.h.b16 %v244
    %v1273 = vunpack.c.l.b16 %v245
    %v1274 = vunpack.c.h.b16 %v245
    %v1275 = vunpack.c.l.b16 %v246
    %v1276 = vunpack.c.h.b16 %v246
    %v1277 = vunpack.c.l.b16 %v247
    %v1278 = vunpack.c.h.b16 %v247
    %v1279 = vunpack.c.l.b16 %v248
    %v1280 = vunpack.c.h.b16 %v248
    %v1281 = vunpack.c.l.b16 %v249
    %v1282 = vunpack.c.h.b16 %v249
    %v1283 = vunpack.c.l.b16 %v250
    %v1284 = vunpack.c.h.b16 %v250
    %v1285 = vunpack.c.l.b16 %v251
    %v1286 = vunpack.c.h.b16 %v251
    %v1287 = vunpack.c.l.b16 %v252
    %v1288 = vunpack.c.h.b16 %v252
    %v1289 = vunpack.c.l.b16 %v253
    %v1290 = vunpack.c.h.b16 %v253
    %v1291 = vunpack.c.l.b16 %v254
    %v1292 = vunpack.c.h.b16 %v254
    %v1293 = vunpack.c.l.b16 %v255
    %v1294 = vunpack.c.h.b16 %v255
    %v1295 = vunpack.c.l.b16 %v256
    %v1296 = vunpack.c.h.b16 %v256
    %v1297 = vunpack.c.l.b16 %v257
    %v1298 = vunpack.c.h.b16 %v257
    %v1299 = vunpack.c.l.b16 %v258
    %v1300 = vunpack.c.h.b16 %v258
    %v1301 = vunpack.c.l.b16 %v259
    %v1302 = vunpack.c.h.b16 %v259
    %v1303 = vunpack.c.l.b16 %v260
    %v1304 = vunpack.c.h.b16 %v260
    %v1305 = vunpack.c.l.b16 %v261
    %v1306 = vunpack.c.h.b16 %v261
    %v1307 = vunpack.c.l.b16 %v262
    %v1308 = vunpack.c.h.b16 %v262
    %v1309 = vunpack.c.l.b16 %v263
    %v1310 = vunpack.c.h.b16 %v263
    %v1311 = vunpack.c.l.b16 %v264
    %v1312 = vunpack.c.h.b16 %v264
    %v1313 = vunpack.c.l.b16 %v265
    %v1314 = vunpack.c.h.b16 %v265
    %v1315 = vunpack.c.l.b16 %v266
    %v1316 = vunpack.c.h.b16 %v266
    %v1317 = vunpack.c.l.b16 %v267
    %v1318 = vunpack.c.h.b16 %v267
    %v1319 = vunpack.c.l.b16 %v268
    %v1320 = vunpack.c.h.b16 %v268
    %v1321 = vunpack.c.l.b16 %v269
    %v1322 = vunpack.c.h.b16 %v269
    %v1323 = vunpack.c.l.b16 %v270
    %v1324 = vunpack.c.h.b16 %v270
    %v1325 = vunpack.c.l.b16 %v271
    %v1326 = vunpack.c.h.b16 %v271
    %v1327 = vunpack.c.l.b16 %v272
    %v1328 = vunpack.c.h.b16 %v272
    %v1329 = vunpack.c.l.b16 %v273
    %v1330 = vunpack.c.h.b16 %v273
    %v1331 = vunpack.c.l.b16 %v274
    %v1332 = vunpack.c.h.b16 %v274
    %v1333 = vunpack.c.l.b16 %v275
    %v1334 = vunpack.c.h.b16 %v275
    %v1335 = vunpack.c.l.b16 %v276
    %v1336 = vunpack.c.h.b16 %v276
    %v1337 = vunpack.c.l.b16 %v277
    %v1338 = vunpack.c.h.b16 %v277
    %v1339 = vunpack.c.l.b16 %v278
    %v1340 = vunpack.c.h.b16 %v278
    %v1341 = vunpack.c.l.b16 %v279
    %v1342 = vunpack.c.h.b16 %v279
    %v1343 = vunpack.c.l.b16 %v280
    %v1344 = vunpack.c.h.b16 %v280
    %v1345 = vunpack.c.l.b16 %v281
    %v1346 = vunpack.c.h.b16 %v281
    %v1347 = vunpack.c.l.b16 %v282
    %v1348 = vunpack.c.h.b16 %v282
    %v1349 = vunpack.c.l.b16 %v283
    %v1350 = vunpack.c.h.b16 %v283
    %v1351 = vunpack.c.l.b16 %v284
    %v1352 = vunpack.c.h.b16 %v284
    %v1353 = vunpack.c.l.b16 %v285
    %v1354 = vunpack.c.h.b16 %v285
    %v1355 = vunpack.c.l.b16 %v286
    %v1356 = vunpack.c.h.b16 %v286
    %v1357 = vunpack.c.l.b16 %v287
    %v1358 = vunpack.c.h.b16 %v287
    %v1359 = vunpack.c.l.b16 %v288
    %v1360 = vunpack.c.h.b16 %v288
    %v1361 = vunpack.c.l.b16 %v289
    %v1362 = vunpack.c.h.b16 %v289
    %v1363 = vunpack.c.l.b16 %v290
    %v1364 = vunpack.c.h.b16 %v290
    %v1365 = vunpack.c.l.b16 %v291
    %v1366 = vunpack.c.h.b16 %v291
    %v1367 = vunpack.c.l.b16 %v292
    %v1368 = vunpack.c.h.b16 %v292
    %v1369 = vunpack.c.l.b16 %v293
    %v1370 = vunpack.c.h.b16 %v293
    %v1371 = vunpack.c.l.b16 %v294
    %v1372 = vunpack.c.h.b16 %v294
    %v1373 = vunpack.c.l.b16 %v295
    %v1374 = vunpack.c.h.b16 %v295
    %v1375 = vunpack.c.l.b16 %v296
    %v1376 = vunpack.c.h.b16 %v296
    %v1377 = vunpack.c.l.b16 %v297
    %v1378 = vunpack.c.h.b16 %v297
    %v1379 = vunpack.c.l.b16 %v298
    %v1380 = vunpack.c.h.b16 %v298
    %v1381 = vunpack.c.l.b16 %v299
    %v1382 = vunpack.c.h.b16 %v299
    %v1383 = vunpack.c.l.b16 %v300
    %v1384 = vunpack.c.h.b16 %v300
    %v1385 = vunpack.c.l.b16 %v301
    %v1386 = vunpack.c.h.b16 %v301
    %v1387 = vunpack.c.l.b16 %v302
    %v1388 = vunpack.c.h.b16 %v302
    %v1389 = vunpack.c.l.b16 %v303
    %v1390 = vunpack.c.h.b16 %v303
    %v1391 = vunpack.c.l.b16 %v304
    %v1392 = vunpack.c.h.b16 %v304
    %v1393 = vunpack.c.l.b16 %v305
    %v1394 = vunpack.c.h.b16 %v305
    %v1395 = vunpack.c.l.b16 %v306
    %v1396 = vunpack.c.h.b16 %v306
    %v1397 = vunpack.c.l.b16 %v307
    %v1398 = vunpack.c.h.b16 %v307
    %v1399 = vunpack.c.l.b16 %v308
    %v1400 = vunpack.c.h.b16 %v308
    %v1401 = vunpack.c.l.b16 %v309
    %v1402 = vunpack.c.h.b16 %v309
    %v1403 = vunpack.c.l.b16 %v310
    %v1404 = vunpack.c.h.b16 %v310
    %v1405 = vunpack.c.l.b16 %v311
    %v1406 = vunpack.c.h.b16 %v311
    %v1407 = vunpack.c.l.b16 %v312
    %v1408 = vunpack.c.h.b16 %v312
    %v1409 = vunpack.c.l.b16 %v313
    %v1410 = vunpack.c.h.b16 %v313
    %v1411 = vunpack.c.l.b16 %v314
    %v1412 = vunpack.c.h.b16 %v314
    %v1413 = vunpack.c.l.b16 %v315
    %v1414 = vunpack.c.h.b16 %v315
    %v1415 = vunpack.c.l.b16 %v316
    %v1416 = vunpack.c.h.b16 %v316
    %v1417 = vunpack.c.l.b16 %v317
    %v1418 = vunpack.c.h.b16 %v317
    %v1419 = vunpack.c.l.b16 %v318
    %v1420 = vunpack.c.h.b16 %v318
    %v1421 = vunpack.c.l.b16 %v319
    %v1422 = vunpack.c.h.b16 %v319
    %v1423 = vunpack.c.l.b16 %v320
    %v1424 = vunpack.c.h.b16 %v320
    %v1425 = vunpack.c.l.b16 %v321
    %v1426 = vunpack.c.h.b16 %v321
    %v1427 = vunpack.c.l.b16 %v322
    %v1428 = vunpack.c.h.b16 %v322
    %v1429 = vunpack.c.l.b16 %v323
    %v1430 = vunpack.c.h.b16 %v323
    %v1431 = vunpack.c.l.b16 %v324
    %v1432 = vunpack.c.h.b16 %v324
    %v1433 = vunpack.c.l.b16 %v325
    %v1434 = vunpack.c.h.b16 %v325
    %v1435 = vunpack.c.l.b16 %v326
    %v1436 = vunpack.c.h.b16 %v326
    %v1437 = vunpack.c.l.b16 %v327
    %v1438 = vunpack.c.h.b16 %v327
    %v1439 = vunpack.c.l.b16 %v328
    %v1440 = vunpack.c.h.b16 %v328
    %v1441 = vunpack.c.l.b16 %v329
    %v1442 = vunpack.c.h.b16 %v329
    %v1443 = vunpack.c.l.b16 %v330
    %v1444 = vunpack.c.h.b16 %v330
    %v1445 = vunpack.c.l.b16 %v331
    %v1446 = vunpack.c.h.b16 %v331
    %v1447 = vunpack.c.l.b16 %v332
    %v1448 = vunpack.c.h.b16 %v332
    %v1449 = vunpack.c.l.b16 %v333
    %v1450 = vunpack.c.h.b16 %v333
    %v1451 = vunpack.c.l.b16 %v334
    %v1452 = vunpack.c.h.b16 %v334
    %v1453 = vunpack.c.l.b16 %v335
    %v1454 = vunpack.c.h.b16 %v335
    %v1455 = vunpack.c.l.b16 %v336
    %v1456 = vunpack.c.h.b16 %v336
    %v1457 = vunpack.c.l.b16 %v337
    %v1458 = vunpack.c.h.b16 %v337
    %v1459 = vunpack.c.l.b16 %v338
    %v1460 = vunpack.c.h.b16 %v338
    %v1461 = vunpack.c.l.b16 %v339
    %v1462 = vunpack.c.h.b16 %v339
    %v1463 = vunpack.c.l.b16 %v340
    %v1464 = vunpack.c.h.b16 %v340
    %v1465 = vunpack.c.l.b16 %v341
    %v1466 = vunpack.c.h.b16 %v341
    %v1467 = vunpack.c.l.b16 %v342
    %v1468 = vunpack.c.h.b16 %v342
    %v1469 = vunpack.c.l.b16 %v343
    %v1470 = vunpack.c.h.b16 %v343
    %v1471 = vunpack.c.l.b16 %v344
    %v1472 = vunpack.c.h.b16 %v344
    %v1473 = vunpack.c.l.b16 %v345
    %v1474 = vunpack.c.h.b16 %v345
    %v1475 = vunpack.c.l.b16 %v346
    %v1476 = vunpack.c.h.b16 %v346
    %v1477 = vunpack.c.l.b16 %v347
    %v1478 = vunpack.c.h.b16 %v347
    %v1479 = vunpack.c.l.b16 %v348
    %v1480 = vunpack.c.h.b16 %v348
    %v1481 = vunpack.c.l.b16 %v349
    %v1482 = vunpack.c.h.b16 %v349
    %v1483 = vunpack.c.l.b16 %v350
    %v1484 = vunpack.c.h.b16 %v350
    %v1485 = vunpack.c.l.b16 %v351
    %v1486 = vunpack.c.h.b16 %v351
    %v1487 = vunpack.c.l.b16 %v352
    %v1488 = vunpack.c.h.b16 %v352
    %v1489 = vunpack.c.l.b16 %v353
    %v1490 = vunpack.c.h.b16 %v353
    %v1491 = vunpack.c.l.b16 %v354
    %v1492 = vunpack.c.h.b16 %v354
    %v1493 = vunpack.c.l.b16 %v355
    %v1494 = vunpack.c.h.b16 %v355
    %v1495 = vunpack.c.l.b16 %v356
    %v1496 = vunpack.c.h.b16 %v356
    %v1497 = vunpack.c.l.b16 %v357
    %v1498 = vunpack.c.h.b16 %v357
    %v1499 = vunpack.c.l.b16 %v358
    %v1500 = vunpack.c.h.b16 %v358
    %v1501 = vunpack.c.l.b16 %v359
    %v1502 = vunpack.c.h.b16 %v359
    %v1503 = vunpack.c.l.b16 %v360
    %v1504 = vunpack.c.h.b16 %v360
    %v1505 = vunpack.c.l.b16 %v361
    %v1506 = vunpack.c.h.b16 %v361
    %v1507 = vunpack.c.l.b16 %v362
    %v1508 = vunpack.c.h.b16 %v362
    %v1509 = vunpack.c.l.b16 %v363
    %v1510 = vunpack.c.h.b16 %v363
    %v1511 = vunpack.c.l.b16 %v364
    %v1512 = vunpack.c.h.b16 %v364
    %v1513 = vunpack.c.l.b16 %v365
    %v1514 = vunpack.c.h.b16 %v365
    %v1515 = vunpack.c.l.b16 %v366
    %v1516 = vunpack.c.h.b16 %v366
    %v1517 = vunpack.c.l.b16 %v367
    %v1518 = vunpack.c.h.b16 %v367
    %v1519 = vunpack.c.l.b16 %v368
    %v1520 = vunpack.c.h.b16 %v368
    %v1521 = vunpack.c.l.b16 %v369
    %v1522 = vunpack.c.h.b16 %v369
    %v1523 = vunpack.c.l.b16 %v370
    %v1524 = vunpack.c.h.b16 %v370
    %v1525 = vunpack.c.l.b16 %v371
    %v1526 = vunpack.c.h.b16 %v371
    %v1527 = vunpack.c.l.b16 %v372
    %v1528 = vunpack.c.h.b16 %v372
    %v1529 = vunpack.c.l.b16 %v373
    %v1530 = vunpack.c.h.b16 %v373
    %v1531 = vunpack.c.l.b16 %v374
    %v1532 = vunpack.c.h.b16 %v374
    %v1533 = vunpack.c.l.b16 %v375
    %v1534 = vunpack.c.h.b16 %v375
    %v1535 = vunpack.c.l.b16 %v376
    %v1536 = vunpack.c.h.b16 %v376
    %v1537 = vunpack.c.l.b16 %v377
    %v1538 = vunpack.c.h.b16 %v377
    %v1539 = vunpack.c.l.b16 %v378
    %v1540 = vunpack.c.h.b16 %v378
    %v1541 = vunpack.c.l.b16 %v379
    %v1542 = vunpack.c.h.b16 %v379
    %v1543 = vunpack.c.l.b16 %v380
    %v1544 = vunpack.c.h.b16 %v380
    %v1545 = vunpack.c.l.b16 %v381
    %v1546 = vunpack.c.h.b16 %v381
    %v1547 = vunpack.c.l.b16 %v382
    %v1548 = vunpack.c.h.b16 %v382
    %v1549 = vunpack.c.l.b16 %v383
    %v1550 = vunpack.c.h.b16 %v383
    %v1551 = vunpack.c.l.b16 %v384
    %v1552 = vunpack.c.h.b16 %v384
    %v1553 = vunpack.c.l.b16 %v385
    %v1554 = vunpack.c.h.b16 %v385
    %v1555 = vunpack.c.l.b16 %v386
    %v1556 = vunpack.c.h.b16 %v386
    %v1557 = vunpack.c.l.b16 %v387
    %v1558 = vunpack.c.h.b16 %v387
    %v1559 = vunpack.c.l.b16 %v388
    %v1560 = vunpack.c.h.b16 %v388
    %v1561 = vunpack.c.l.b16 %v389
    %v1562 = vunpack.c.h.b16 %v389
    %v1563 = vunpack.c.l.b16 %v390
    %v1564 = vunpack.c.h.b16 %v390
    %v1565 = vunpack.c.l.b16 %v391
    %v1566 = vunpack.c.h.b16 %v391
    %v1567 = vunpack.c.l.b16 %v392
    %v1568 = vunpack.c.h.b16 %v392
    %v1569 = vunpack.c.l.b16 %v393
    %v1570 = vunpack.c.h.b16 %v393
    %v1571 = vunpack.c.l.b16 %v394
    %v1572 = vunpack.c.h.b16 %v394
    %v1573 = vunpack.c.l.b16 %v395
    %v1574 = vunpack.c.h.b16 %v395
    %v1575 = vunpack.c.l.b16 %v396
    %v1576 = vunpack.c.h.b16 %v396
    %v1577 = vunpack.c.l.b16 %v397
    %v1578 = vunpack.c.h.b16 %v397
    %v1579 = vunpack.c.l.b16 %v398
    %v1580 = vunpack.c.h.b16 %v398
    %v1581 = vunpack.c.l.b16 %v399
    %v1582 = vunpack.c.h.b16 %v399
    %v1583 = vunpack.c.l.b16 %v400
    %v1584 = vunpack.c.h.b16 %v400
    %v1585 = vunpack.c.l.b16 %v401
    %v1586 = vunpack.c.h.b16 %v401
    %v1587 = vunpack.c.l.b16 %v402
    %v1588 = vunpack.c.h.b16 %v402
    %v1589 = vunpack.c.l.b16 %v403
    %v1590 = vunpack.c.h.b16 %v403
    %v1591 = vunpack.c.l.b16 %v404
    %v1592 = vunpack.c.h.b16 %v404
    %v1593 = vunpack.c.l.b16 %v405
    %v1594 = vunpack.c.h.b16 %v405
    %v1595 = vunpack.c.l.b16 %v406
    %v1596 = vunpack.c.h.b16 %v406
    %v1597 = vunpack.c.l.b16 %v407
    %v1598 = vunpack.c.h.b16 %v407
    %v1599 = vunpack.c.l.b16 %v408
    %v1600 = vunpack.c.h.b16 %v408
    %v1601 = vunpack.c.l.b16 %v409
    %v1602 = vunpack.c.h.b16 %v409
    %v1603 = vunpack.c.l.b16 %v410
    %v1604 = vunpack.c.h.b16 %v410
    %v1605 = vunpack.c.l.b16 %v411
    %v1606 = vunpack.c.h.b16 %v411
    %v1607 = vunpack.c.l.b16 %v412
    %v1608 = vunpack.c.h.b16 %v412
    %v1609 = vunpack.c.l.b16 %v413
    %v1610 = vunpack.c.h.b16 %v413
    %v1611 = vunpack.c.l.b16 %v414
    %v1612 = vunpack.c.h.b16 %v414
    %v1613 = vunpack.c.l.b16 %v415
    %v1614 = vunpack.c.h.b16 %v415
    %v1615 = vunpack.c.l.b16 %v416
    %v1616 = vunpack.c.h.b16 %v416
    %v1617 = vunpack.c.l.b16 %v417
    %v1618 = vunpack.c.h.b16 %v417
    %v1619 = vunpack.c.l.b16 %v418
    %v1620 = vunpack.c.h.b16 %v418
    %v1621 = vunpack.c.l.b16 %v419
    %v1622 = vunpack.c.h.b16 %v419
    %v1623 = vunpack.c.l.b16 %v420
    %v1624 = vunpack.c.h.b16 %v420
    %v1625 = vunpack.c.l.b16 %v421
    %v1626 = vunpack.c.h.b16 %v421
    %v1627 = vunpack.c.l.b16 %v422
    %v1628 = vunpack.c.h.b16 %v422
    %v1629 = vunpack.c.l.b16 %v423
    %v1630 = vunpack.c.h.b16 %v423
    %v1631 = vunpack.c.l.b16 %v424
    %v1632 = vunpack.c.h.b16 %v424
    %v1633 = vunpack.c.l.b16 %v425
    %v1634 = vunpack.c.h.b16 %v425
    %v1635 = vunpack.c.l.b16 %v426
    %v1636 = vunpack.c.h.b16 %v426
    %v1637 = vunpack.c.l.b16 %v427
    %v1638 = vunpack.c.h.b16 %v427
    %v1639 = vunpack.c.l.b16 %v428
    %v1640 = vunpack.c.h.b16 %v428
    %v1641 = vunpack.c.l.b16 %v429
    %v1642 = vunpack.c.h.b16 %v429
    %v1643 = vunpack.c.l.b16 %v430
    %v1644 = vunpack.c.h.b16 %v430
    %v1645 = vunpack.c.l.b16 %v431
    %v1646 = vunpack.c.h.b16 %v431
    %v1647 = vunpack.c.l.b16 %v432
    %v1648 = vunpack.c.h.b16 %v432
    %v1649 = vunpack.c.l.b16 %v433
    %v1650 = vunpack.c.h.b16 %v433
    %v1651 = vunpack.c.l.b16 %v434
    %v1652 = vunpack.c.h.b16 %v434
    %v1653 = vunpack.c.l.b16 %v435
    %v1654 = vunpack.c.h.b16 %v435
    %v1655 = vunpack.c.l.b16 %v436
    %v1656 = vunpack.c.h.b16 %v436
    %v1657 = vunpack.c.l.b16 %v437
    %v1658 = vunpack.c.h.b16 %v437
    %v1659 = vunpack.c.l.b16 %v438
    %v1660 = vunpack.c.h.b16 %v438
    %v1661 = vunpack.c.l.b16 %v439
    %v1662 = vunpack.c.h.b16 %v439
    %v1663 = vunpack.c.l.b16 %v440
    %v1664 = vunpack.c.h.b16 %v440
    %v1665 = vunpack.c.l.b16 %v441
    %v1666 = vunpack.c.h.b16 %v441
    %v1667 = vunpack.c.l.b16 %v442
    %v1668 = vunpack.c.h.b16 %v442
    %v1669 = vunpack.c.l.b16 %v443
    %v1670 = vunpack.c.h.b16 %v443
    %v1671 = vunpack.c.l.b16 %v444
    %v1672 = vunpack.c.h.b16 %v444
    %v1673 = vunpack.c.l.b16 %v445
    %v1674 = vunpack.c.h.b16 %v445
    %v1675 = vunpack.c.l.b16 %v446
    %v1676 = vunpack.c.h.b16 %v446
    %v1677 = vunpack.c.l.b16 %v447
    %v1678 = vunpack.c.h.b16 %v447
    %v1679 = vunpack.c.l.b16 %v448
    %v1680 = vunpack.c.h.b16 %v448
    %v1681 = vunpack.c.l.b16 %v449
    %v1682 = vunpack.c.h.b16 %v449
    %v1683 = vunpack.c.l.b16 %v450
    %v1684 = vunpack.c.h.b16 %v450
    %v1685 = vunpack.c.l.b16 %v451
    %v1686 = vunpack.c.h.b16 %v451
    %v1687 = vunpack.c.l.b16 %v452
    %v1688 = vunpack.c.h.b16 %v452
    %v1689 = vunpack.c.l.b16 %v453
    %v1690 = vunpack.c.h.b16 %v453
    %v1691 = vunpack.c.l.b16 %v454
    %v1692 = vunpack.c.h.b16 %v454
    %v1693 = vunpack.c.l.b16 %v455
    %v1694 = vunpack.c.h.b16 %v455
    %v1695 = vunpack.c.l.b16 %v456
    %v1696 = vunpack.c.h.b16 %v456
    %v1697 = vunpack.c.l.b16 %v457
    %v1698 = vunpack.c.h.b16 %v457
    %v1699 = vunpack.c.l.b16 %v458
    %v1700 = vunpack.c.h.b16 %v458
    %v1701 = vunpack.c.l.b16 %v459
    %v1702 = vunpack.c.h.b16 %v459
    %v1703 = vunpack.c.l.b16 %v460
    %v1704 = vunpack.c.h.b16 %v460
    %v1705 = vunpack.c.l.b16 %v461
    %v1706 = vunpack.c.h.b16 %v461
    %v1707 = vunpack.c.l.b16 %v462
    %v1708 = vunpack.c.h.b16 %v462
    %v1709 = vunpack.c.l.b16 %v463
    %v1710 = vunpack.c.h.b16 %v463
    %v1711 = vunpack.c.l.b16 %v464
    %v1712 = vunpack.c.h.b16 %v464
    %v1713 = vunpack.c.l.b16 %v465
    %v1714 = vunpack.c.h.b16 %v465
    %v1715 = vunpack.c.l.b16 %v466
    %v1716 = vunpack.c.h.b16 %v466
    %v1717 = vunpack.c.l.b16 %v467
    %v1718 = vunpack.c.h.b16 %v467
    %v1719 = vunpack.c.l.b16 %v468
    %v1720 = vunpack.c.h.b16 %v468
    %v1721 = vunpack.c.l.b16 %v469
    %v1722 = vunpack.c.h.b16 %v469
    %v1723 = vunpack.c.l.b16 %v470
    %v1724 = vunpack.c.h.b16 %v470
    %v1725 = vunpack.c.l.b16 %v471
    %v1726 = vunpack.c.h.b16 %v471
    %v1727 = vunpack.c.l.b16 %v472
    %v1728 = vunpack.c.h.b16 %v472
    %v1729 = vunpack.c.l.b16 %v473
    %v1730 = vunpack.c.h.b16 %v473
    %v1731 = vunpack.c.l.b16 %v474
    %v1732 = vunpack.c.h.b16 %v474
    %v1733 = vunpack.c.l.b16 %v475
    %v1734 = vunpack.c.h.b16 %v475
    %v1735 = vunpack.c.l.b16 %v476
    %v1736 = vunpack.c.h.b16 %v476
    %v1737 = vunpack.c.l.b16 %v477
    %v1738 = vunpack.c.h.b16 %v477
    %v1739 = vunpack.c.l.b16 %v478
    %v1740 = vunpack.c.h.b16 %v478
    %v1741 = vunpack.c.l.b16 %v479
    %v1742 = vunpack.c.h.b16 %v479
    %v1743 = vunpack.c.l.b16 %v480
    %v1744 = vunpack.c.h.b16 %v480
    %v1745 = vunpack.c.l.b16 %v481
    %v1746 = vunpack.c.h.b16 %v481
    %v1747 = vunpack.c.l.b16 %v482
    %v1748 = vunpack.c.h.b16 %v482
    %v1749 = vunpack.c.l.b16 %v483
    %v1750 = vunpack.c.h.b16 %v483
    %v1751 = vunpack.c.l.b16 %v484
    %v1752 = vunpack.c.h.b16 %v484
    %v1753 = vunpack.c.l.b16 %v485
    %v1754 = vunpack.c.h.b16 %v485
    %v1755 = vunpack.c.l.b16 %v486
    %v1756 = vunpack.c.h.b16 %v486
    %v1757 = vunpack.c.l.b16 %v487
    %v1758 = vunpack.c.h.b16 %v487
    %v1759 = vunpack.c.l.b16 %v488
    %v1760 = vunpack.c.h.b16 %v488
    %v1761 = vunpack.c.l.b16 %v489
    %v1762 = vunpack.c.h.b16 %v489
    %v1763 = vunpack.c.l.b16 %v490
    %v1764 = vunpack.c.h.b16 %v490
    %v1765 = vunpack.c.l.b16 %v491
    %v1766 = vunpack.c.h.b16 %v491
    %v1767 = vunpack.c.l.b16 %v492
    %v1768 = vunpack.c.h.b16 %v492
    %v1769 = vunpack.c.l.b16 %v493
    %v1770 = vunpack.c.h.b16 %v493
    %v1771 = vunpack.c.l.b16 %v494
    %v1772 = vunpack.c.h.b16 %v494
    %v1773 = vunpack.c.l.b16 %v495
    %v1774 = vunpack.c.h.b16 %v495
    %v1775 = vunpack.c.l.b16 %v496
    %v1776 = vunpack.c.h.b16 %v496
    %v1777 = vunpack.c.l.b16 %v497
    %v1778 = vunpack.c.h.b16 %v497
    %v1779 = vunpack.c.l.b16 %v498
    %v1780 = vunpack.c.h.b16 %v498
    %v1781 = vunpack.c.l.b16 %v499
    %v1782 = vunpack.c.h.b16 %v499
    %v1783 = vunpack.c.l.b16 %v500
    %v1784 = vunpack.c.h.b16 %v500
    %v1785 = vunpack.c.l.b16 %v501
    %v1786 = vunpack.c.h.b16 %v501
    %v1787 = vunpack.c.l.b16 %v502
    %v1788 = vunpack.c.h.b16 %v502
    %v1789 = vunpack.c.l.b16 %v503
    %v1790 = vunpack.c.h.b16 %v503
    %v1791 = vunpack.c.l.b16 %v504
    %v1792 = vunpack.c.h.b16 %v504
    %v1793 = vunpack.c.l.b16 %v505
    %v1794 = vunpack.c.h.b16 %v505
    %v1795 = vunpack.c.l.b16 %v506
    %v1796 = vunpack.c.h.b16 %v506
    %v1797 = vunpack.c.l.b16 %v507
    %v1798 = vunpack.c.h.b16 %v507
    %v1799 = vunpack.c.l.b16 %v508
    %v1800 = vunpack.c.h.b16 %v508
    %v1801 = vunpack.c.l.b16 %v509
    %v1802 = vunpack.c.h.b16 %v509
    %v1803 = vunpack.c.l.b16 %v510
    %v1804 = vunpack.c.h.b16 %v510
    %v1805 = vunpack.c.l.b16 %v511
    %v1806 = vunpack.c.h.b16 %v511
    %v1807 = vunpack.c.l.b16 %v512
    %v1808 = vunpack.c.h.b16 %v512
    %v1809 = vunpack.c.l.b16 %v513
    %v1810 = vunpack.c.h.b16 %v513
    %v1811 = vunpack.c.l.b16 %v514
    %v1812 = vunpack.c.h.b16 %v514
    %v1813 = vunpack.c.l.b16 %v515
    %v1814 = vunpack.c.h.b16 %v515
    %v1815 = vunpack.c.l.b16 %v516
    %v1816 = vunpack.c.h.b16 %v516
    %v1817 = vunpack.c.l.b16 %v517
    %v1818 = vunpack.c.h.b16 %v517
    %v1819 = vunpack.c.l.b16 %v518
    %v1820 = vunpack.c.h.b16 %v518
    %v1821 = vunpack.c.l.b16 %v519
    %v1822 = vunpack.c.h.b16 %v519
    %v1823 = vunpack.c.l.b16 %v520
    %v1824 = vunpack.c.h.b16 %v520
    %v1825 = vunpack.c.l.b16 %v521
    %v1826 = vunpack.c.h.b16 %v521
    %v1827 = vunpack.c.l.b16 %v522
    %v1828 = vunpack.c.h.b16 %v522
    %v1829 = vunpack.c.l.b16 %v523
    %v1830 = vunpack.c.h.b16 %v523
    %v1831 = vunpack.c.l.b16 %v524
    %v1832 = vunpack.c.h.b16 %v524
    %v1833 = vunpack.c.l.b16 %v525
    %v1834 = vunpack.c.h.b16 %v525
    %v1835 = vunpack.c.l.b16 %v526
    %v1836 = vunpack.c.h.b16 %v526
    %v1837 = vunpack.c.l.b16 %v527
    %v1838 = vunpack.c.h.b16 %v527
    %v1839 = vunpack.c.l.b16 %v528
    %v1840 = vunpack.c.h.b16 %v528
    %v1841 = vunpack.c.l.b16 %v529
    %v1842 = vunpack.c.h.b16 %v529
    %v1843 = vunpack.c.l.b16 %v530
    %v1844 = vunpack.c.h.b16 %v530
    %v1845 = vunpack.c.l.b16 %v531
    %v1846 = vunpack.c.h.b16 %v531
    %v1847 = vunpack.c.l.b16 %v532
    %v1848 = vunpack.c.h.b16 %v532
    %v1849 = vunpack.c.l.b16 %v533
    %v1850 = vunpack.c.h.b16 %v533
    %v1851 = vunpack.c.l.b16 %v534
    %v1852 = vunpack.c.h.b16 %v534
    %v1853 = vunpack.c.l.b16 %v535
    %v1854 = vunpack.c.h.b16 %v535
    %v1855 = vunpack.c.l.b16 %v536
    %v1856 = vunpack.c.h.b16 %v536
    %v1857 = vunpack.c.l.b16 %v537
    %v1858 = vunpack.c.h.b16 %v537
    %v1859 = vunpack.c.l.b16 %v538
    %v1860 = vunpack.c.h.b16 %v538
    %v1861 = vunpack.c.l.b16 %v539
    %v1862 = vunpack.c.h.b16 %v539
    %v1863 = vunpack.c.l.b16 %v540
    %v1864 = vunpack.c.h.b16 %v540
    %v1865 = vunpack.c.l.b16 %v541
    %v1866 = vunpack.c.h.b16 %v541
    %v1867 = vunpack.c.l.b16 %v542
    %v1868 = vunpack.c.h.b16 %v542
    %v1869 = vunpack.c.l.b16 %v543
    %v1870 = vunpack.c.h.b16 %v543
    %v1871 = vunpack.c.l.b16 %v544
    %v1872 = vunpack.c.h.b16 %v544
    %v1873 = vunpack.c.l.b16 %v545
    %v1874 = vunpack.c.h.b16 %v545
    %v1875 = vunpack.c.l.b16 %v546
    %v1876 = vunpack.c.h.b16 %v546
    %v1877 = vunpack.c.l.b16 %v547
    %v1878 = vunpack.c.h.b16 %v547
    %v1879 = vunpack.c.l.b16 %v548
    %v1880 = vunpack.c.h.b16 %v548
    %v1881 = vunpack.c.l.b16 %v549
    %v1882 = vunpack.c.h.b16 %v549
    %v1883 = vunpack.c.l.b16 %v550
    %v1884 = vunpack.c.h.b16 %v550
    %v1885 = vunpack.c.l.b16 %v551
    %v1886 = vunpack.c.h.b16 %v551
    %v1887 = vunpack.c.l.b16 %v552
    %v1888 = vunpack.c.h.b16 %v552
    %v1889 = vunpack.c.l.b16 %v553
    %v1890 = vunpack.c.h.b16 %v553
    %v1891 = vunpack.c.l.b16 %v554
    %v1892 = vunpack.c.h.b16 %v554
    %v1893 = vunpack.c.l.b16 %v555
    %v1894 = vunpack.c.h.b16 %v555
    %v1895 = vunpack.c.l.b16 %v556
    %v1896 = vunpack.c.h.b16 %v556
    %v1897 = vunpack.c.l.b16 %v557
    %v1898 = vunpack.c.h.b16 %v557
    %v1899 = vunpack.c.l.b16 %v558
    %v1900 = vunpack.c.h.b16 %v558
    %v1901 = vunpack.c.l.b16 %v559
    %v1902 = vunpack.c.h.b16 %v559
    %v1903 = vunpack.c.l.b16 %v560
    %v1904 = vunpack.c.h.b16 %v560
    %v1905 = vunpack.c.l.b16 %v561
    %v1906 = vunpack.c.h.b16 %v561
    %v1907 = vunpack.c.l.b16 %v562
    %v1908 = vunpack.c.h.b16 %v562
    %v1909 = vunpack.c.l.b16 %v563
    %v1910 = vunpack.c.h.b16 %v563
    %v1911 = vunpack.c.l.b16 %v564
    %v1912 = vunpack.c.h.b16 %v564
    %v1913 = vunpack.c.l.b16 %v565
    %v1914 = vunpack.c.h.b16 %v565
    %v1915 = vunpack.c.l.b16 %v566
    %v1916 = vunpack.c.h.b16 %v566
    %v1917 = vunpack.c.l.b16 %v567
    %v1918 = vunpack.c.h.b16 %v567
    %v1919 = vunpack.c.l.b16 %v568
    %v1920 = vunpack.c.h.b16 %v568
    %v1921 = vunpack.c.l.b16 %v569
    %v1922 = vunpack.c.h.b16 %v569
    %v1923 = vunpack.c.l.b16 %v570
    %v1924 = vunpack.c.h.b16 %v570
    %v1925 = vunpack.c.l.b16 %v571
    %v1926 = vunpack.c.h.b16 %v571
    %v1927 = vunpack.c.l.b16 %v572
    %v1928 = vunpack.c.h.b16 %v572
    %v1929 = vunpack.c.l.b16 %v573
    %v1930 = vunpack.c.h.b16 %v573
    %v1931 = vunpack.c.l.b16 %v574
    %v1932 = vunpack.c.h.b16 %v574
    %v1933 = vunpack.c.l.b16 %v575
    %v1934 = vunpack.c.h.b16 %v575
    %v1935 = vunpack.c.l.b16 %v576
    %v1936 = vunpack.c.h.b16 %v576
    %v1937 = vunpack.c.l.b16 %v577
    %v1938 = vunpack.c.h.b16 %v577
    %v1939 = vunpack.c.l.b16 %v578
    %v1940 = vunpack.c.h.b16 %v578
    %v1941 = vunpack.c.l.b16 %v579
    %v1942 = vunpack.c.h.b16 %v579
    %v1943 = vunpack.c.l.b16 %v580
    %v1944 = vunpack.c.h.b16 %v580
    %v1945 = vunpack.c.l.b16 %v581
    %v1946 = vunpack.c.h.b16 %v581
    %v1947 = vunpack.c.l.b16 %v582
    %v1948 = vunpack.c.h.b16 %v582
    %v1949 = vunpack.c.l.b16 %v583
    %v1950 = vunpack.c.h.b16 %v583
    %v1951 = vunpack.c.l.b16 %v584
    %v1952 = vunpack.c.h.b16 %v584
    %v1953 = vunpack.c.l.b16 %v585
    %v1954 = vunpack.c.h.b16 %v585
    %v1955 = vunpack.c.l.b16 %v586
    %v1956 = vunpack.c.h.b16 %v586
    %v1957 = vunpack.c.l.b16 %v587
    %v1958 = vunpack.c.h.b16 %v587
    %v1959 = vunpack.c.l.b16 %v588
    %v1960 = vunpack.c.h.b16 %v588
    %v1961 = vunpack.c.l.b16 %v589
    %v1962 = vunpack.c.h.b16 %v589
    %v1963 = vunpack.c.l.b16 %v590
    %v1964 = vunpack.c.h.b16 %v590
    %v1965 = vunpack.c.l.b16 %v591
    %v1966 = vunpack.c.h.b16 %v591
    %v1967 = vunpack.c.l.b16 %v592
    %v1968 = vunpack.c.h.b16 %v592
    %v1969 = vunpack.c.l.b16 %v593
    %v1970 = vunpack.c.h.b16 %v593
    %v1971 = vunpack.c.l.b16 %v594
    %v1972 = vunpack.c.h.b16 %v594
    %v1973 = vunpack.c.l.b16 %v595
    %v1974 = vunpack.c.h.b16 %v595
    %v1975 = vunpack.c.l.b16 %v596
    %v1976 = vunpack.c.h.b16 %v596
    %v1977 = vunpack.c.l.b16 %v597
    %v1978 = vunpack.c.h.b16 %v597
    %v1979 = vunpack.c.l.b16 %v598
    %v1980 = vunpack.c.h.b16 %v598
    %v1981 = vunpack.c.l.b16 %v599
    %v1982 = vunpack.c.h.b16 %v599
    %v1983 = vunpack.c.l.b16 %v600
    %v1984 = vunpack.c.h.b16 %v600
    %v1985 = vunpack.c.l.b16 %v601
    %v1986 = vunpack.c.h.b16 %v601
    %v1987 = vunpack.c.l.b16 %v602
    %v1988 = vunpack.c.h.b16 %v602
    %v1989 = vunpack.c.l.b16 %v603
    %v1990 = vunpack.c.h.b16 %v603
    %v1991 = vunpack.c.l.b16 %v604
    %v1992 = vunpack.c.h.b16 %v604
    %v1993 = vunpack.c.l.b16 %v605
    %v1994 = vunpack.c.h.b16 %v605
    %v1995 = vunpack.c.l.b16 %v606
    %v1996 = vunpack.c.h.b16 %v606
    %v1997 = vunpack.c.l.b16 %v607
    %v1998 = vunpack.c.h.b16 %v607
    %v1999 = vunpack.c.l.b16 %v608
    %v2000 = vunpack.c.h.b16 %v608
    %v2001 = vunpack.c.l.b16 %v609
    %v2002 = vunpack.c.h.b16 %v609
    %v2003 = vunpack.c.l.b16 %v610
    %v2004 = vunpack.c.h.b16 %v610
    %v2005 = vunpack.c.l.b16 %v611
    %v2006 = vunpack.c.h.b16 %v611
    %v2007 = vunpack.c.l.b16 %v612
    %v2008 = vunpack.c.h.b16 %v612
    %v2009 = vunpack.c.l.b16 %v613
    %v2010 = vunpack.c.h.b16 %v613
    %v2011 = vunpack.c.l.b16 %v614
    %v2012 = vunpack.c.h.b16 %v614
    %v2013 = vunpack.c.l.b16 %v615
    %v2014 = vunpack.c.h.b16 %v615
    %v2015 = vunpack.c.l.b16 %v616
    %v2016 = vunpack.c.h.b16 %v616
    %v2017 = vunpack.c.l.b16 %v617
    %v2018 = vunpack.c.h.b16 %v617
    %v2019 = vunpack.c.l.b16 %v618
    %v2020 = vunpack.c.h.b16 %v618
    %v2021 = vpack.c.b16 %v1255, %v1253
    %v2022 = vpack.c.b16 %v1256, %v1254
    %v2023 = vpack.c.b16 %v1259, %v1257
    %v2024 = vpack.c.b16 %v1260, %v1258
    %v2025 = vpack.c.b16 %v1263, %v1261
    %v2026 = vpack.c.b16 %v1264, %v1262
    %v2027 = vpack.c.b16 %v1267, %v1265
    %v2028 = vpack.c.b16 %v1268, %v1266
    %v2029 = vpack.c.b16 %v1271, %v1269
    %v2030 = vpack.c.b16 %v1272, %v1270
    %v2031 = vpack.c.b16 %v1275, %v1273
    %v2032 = vpack.c.b16 %v1276, %v1274
    %v2033 = vpack.c.b16 %v1279, %v1277
    %v2034 = vpack.c.b16 %v1280, %v1278
    %v2035 = vpack.c.b16 %v1283, %v1281
    %v2036 = vpack.c.b16 %v1284, %v1282
    %v2037 = vpack.c.b16 %v1287, %v1285
    %v2038 = vpack.c.b16 %v1288, %v1286
    %v2039 = vpack.c.b16 %v1291, %v1289
    %v2040 = vpack.c.b16 %v1292, %v1290
    %v2041 = vpack.c.b16 %v1295, %v1293
    %v2042 = vpack.c.b16 %v1296, %v1294
    %v2043 = vpack.c.b16 %v1299, %v1297
    %v2044 = vpack.c.b16 %v1300, %v1298
    %v2045 = vpack.c.b16 %v1303, %v1301
    %v2046 = vpack.c.b16 %v1304, %v1302
    %v2047 = vpack.c.b16 %v1307, %v1305
    %v2048 = vpack.c.b16 %v1308, %v1306
    %v2049 = vpack.c.b16 %v1311, %v1309
    %v2050 = vpack.c.b16 %v1312, %v1310
    %v2051 = vpack.c.b16 %v1315, %v1313
    %v2052 = vpack.c.b16 %v1316, %v1314
    %v2053 = vpack.c.b16 %v1319, %v1317
    %v2054 = vpack.c.b16 %v1320, %v1318
    %v2055 = vpack.c.b16 %v1323, %v1321
    %v2056 = vpack.c.b16 %v1324, %v1322
    %v2057 = vpack.c.b16 %v1327, %v1325
    %v2058 = vpack.c.b16 %v1328, %v1326
    %v2059 = vpack.c.b16 %v1331, %v1329
    %v2060 = vpack.c.b16 %v1332, %v1330
    %v2061 = vpack.c.b16 %v1335, %v1333
    %v2062 = vpack.c.b16 %v1336, %v1334
    %v2063 = vpack.c.b16 %v1339, %v1337
    %v2064 = vpack.c.b16 %v1340, %v1338
    %v2065 = vpack.c.b16 %v1343, %v1341
    %v2066 = vpack.c.b16 %v1344, %v1342
    %v2067 = vpack.c.b16 %v1347, %v1345
    %v2068 = vpack.c.b16 %v1348, %v1346
    %v2069 = vpack.c.b16 %v1351, %v1349
    %v2070 = vpack.c.b16 %v1352, %v1350
    %v2071 = vpack.c.b16 %v1355, %v1353
    %v2072 = vpack.c.b16 %v1356, %v1354
    %v2073 = vpack.c.b16 %v1359, %v1357
    %v2074 = vpack.c.b16 %v1360, %v1358
    %v2075 = vpack.c.b16 %v1363, %v1361
    %v2076 = vpack.c.b16 %v1364, %v1362
    %v2077 = vpack.c.b16 %v1367, %v1365
    %v2078 = vpack.c.b16 %v1368, %v1366
    %v2079 = vpack.c.b16 %v1371, %v1369
    %v2080 = vpack.c.b16 %v1372, %v1370
    %v2081 = vpack.c.b16 %v1375, %v1373
    %v2082 = vpack.c.b16 %v1376, %v1374
    %v2083 = vpack.c.b16 %v1379, %v1377
    %v2084 = vpack.c.b16 %v1380, %v1378
    %v2085 = vpack.c.b16 %v1383, %v1381
    %v2086 = vpack.c.b16 %v1384, %v1382
    %v2087 = vpack.c.b16 %v1387, %v1385
    %v2088 = vpack.c.b16 %v1388, %v1386
    %v2089 = vpack.c.b16 %v1391, %v1389
    %v2090 = vpack.c.b16 %v1392, %v1390
    %v2091 = vpack.c.b16 %v1395, %v1393
    %v2092 = vpack.c.b16 %v1396, %v1394
    %v2093 = vpack.c.b16 %v1399, %v1397
    %v2094 = vpack.c.b16 %v1400, %v1398
    %v2095 = vpack.c.b16 %v1403, %v1401
    %v2096 = vpack.c.b16 %v1404, %v1402
    %v2097 = vpack.c.b16 %v1407, %v1405
    %v2098 = vpack.c.b16 %v1408, %v1406
    %v2099 = vpack.c.b16 %v1411, %v1409
    %v2100 = vpack.c.b16 %v1412, %v1410
    %v2101 = vpack.c.b16 %v1415, %v1413
    %v2102 = vpack.c.b16 %v1416, %v1414
    %v2103 = vpack.c.b16 %v1419, %v1417
    %v2104 = vpack.c.b16 %v1420, %v1418
    %v2105 = vpack.c.b16 %v1423, %v1421
    %v2106 = vpack.c.b16 %v1424, %v1422
    %v2107 = vpack.c.b16 %v1427, %v1425
    %v2108 = vpack.c.b16 %v1428, %v1426
    %v2109 = vpack.c.b16 %v1431, %v1429
    %v2110 = vpack.c.b16 %v1432, %v1430
    %v2111 = vpack.c.b16 %v1435, %v1433
    %v2112 = vpack.c.b16 %v1436, %v1434
    %v2113 = vpack.c.b16 %v1439, %v1437
    %v2114 = vpack.c.b16 %v1440, %v1438
    %v2115 = vpack.c.b16 %v1443, %v1441
    %v2116 = vpack.c.b16 %v1444, %v1442
    %v2117 = vpack.c.b16 %v1447, %v1445
    %v2118 = vpack.c.b16 %v1448, %v1446
    %v2119 = vpack.c.b16 %v1451, %v1449
    %v2120 = vpack.c.b16 %v1452, %v1450
    %v2121 = vpack.c.b16 %v1455, %v1453
    %v2122 = vpack.c.b16 %v1456, %v1454
    %v2123 = vpack.c.b16 %v1459, %v1457
    %v2124 = vpack.c.b16 %v1460, %v1458
    %v2125 = vpack.c.b16 %v1463, %v1461
    %v2126 = vpack.c.b16 %v1464, %v1462
    %v2127 = vpack.c.b16 %v1467, %v1465
    %v2128 = vpack.c.b16 %v1468, %v1466
    %v2129 = vpack.c.b16 %v1471, %v1469
    %v2130 = vpack.c.b16 %v1472, %v1470
    %v2131 = vpack.c.b16 %v1475, %v1473
    %v2132 = vpack.c.b16 %v1476, %v1474
    %v2133 = vpack.c.b16 %v1479, %v1477
    %v2134 = vpack.c.b16 %v1480, %v1478
    %v2135 = vpack.c.b16 %v1483, %v1481
    %v2136 = vpack.c.b16 %v1484, %v1482
    %v2137 = vpack.c.b16 %v1487, %v1485
    %v2138 = vpack.c.b16 %v1488, %v1486
    %v2139 = vpack.c.b16 %v1491, %v1489
    %v2140 = vpack.c.b16 %v1492, %v1490
    %v2141 = vpack.c.b16 %v1495, %v1493
    %v2142 = vpack.c.b16 %v1496, %v1494
    %v2143 = vpack.c.b16 %v1499, %v1497
    %v2144 = vpack.c.b16 %v1500, %v1498
    %v2145 = vpack.c.b16 %v1503, %v1501
    %v2146 = vpack.c.b16 %v1504, %v1502
    %v2147 = vpack.c.b16 %v1507, %v1505
    %v2148 = vpack.c.b16 %v1508, %v1506
    %v2149 = vpack.c.b16 %v1511, %v1509
    %v2150 = vpack.c.b16 %v1512, %v1510
    %v2151 = vpack.c.b16 %v1515, %v1513
    %v2152 = vpack.c.b16 %v1516, %v1514
    %v2153 = vpack.c.b16 %v1519, %v1517
    %v2154 = vpack.c.b16 %v1520, %v1518
    %v2155 = vpack.c.b16 %v1523, %v1521
    %v2156 = vpack.c.b16 %v1524, %v1522
    %v2157 = vpack.c.b16 %v1527, %v1525
    %v2158 = vpack.c.b16 %v1528, %v1526
    %v2159 = vpack.c.b16 %v1531, %v1529
    %v2160 = vpack.c.b16 %v1532, %v1530
    %v2161 = vpack.c.b16 %v1535, %v1533
    %v2162 = vpack.c.b16 %v1536, %v1534
    %v2163 = vpack.c.b16 %v1539, %v1537
    %v2164 = vpack.c.b16 %v1540, %v1538
    %v2165 = vpack.c.b16 %v1543, %v1541
    %v2166 = vpack.c.b16 %v1544, %v1542
    %v2167 = vpack.c.b16 %v1547, %v1545
    %v2168 = vpack.c.b16 %v1548, %v1546
    %v2169 = vpack.c.b16 %v1551, %v1549
    %v2170 = vpack.c.b16 %v1552, %v1550
    %v2171 = vpack.c.b16 %v1555, %v1553
    %v2172 = vpack.c.b16 %v1556, %v1554
    %v2173 = vpack.c.b16 %v1559, %v1557
    %v2174 = vpack.c.b16 %v1560, %v1558
    %v2175 = vpack.c.b16 %v1563, %v1561
    %v2176 = vpack.c.b16 %v1564, %v1562
    %v2177 = vpack.c.b16 %v1567, %v1565
    %v2178 = vpack.c.b16 %v1568, %v1566
    %v2179 = vpack.c.b16 %v1571, %v1569
    %v2180 = vpack.c.b16 %v1572, %v1570
    %v2181 = vpack.c.b16 %v1575, %v1573
    %v2182 = vpack.c.b16 %v1576, %v1574
    %v2183 = vpack.c.b16 %v1579, %v1577
    %v2184 = vpack.c.b16 %v1580, %v1578
    %v2185 = vpack.c.b16 %v1583, %v1581
    %v2186 = vpack.c.b16 %v1584, %v1582
    %v2187 = vpack.c.b16 %v1587, %v1585
    %v2188 = vpack.c.b16 %v1588, %v1586
    %v2189 = vpack.c.b16 %v1591, %v1589
    %v2190 = vpack.c.b16 %v1592, %v1590
    %v2191 = vpack.c.b16 %v1595, %v1593
    %v2192 = vpack.c.b16 %v1596, %v1594
    %v2193 = vpack.c.b16 %v1599, %v1597
    %v2194 = vpack.c.b16 %v1600, %v1598
    %v2195 = vpack.c.b16 %v1603, %v1601
    %v2196 = vpack.c.b16 %v1604, %v1602
    %v2197 = vpack.c.b16 %v1607, %v1605
    %v2198 = vpack.c.b16 %v1608, %v1606
    %v2199 = vpack.c.b16 %v1611, %v1609
    %v2200 = vpack.c.b16 %v1612, %v1610
    %v2201 = vpack.c.b16 %v1615, %v1613
    %v2202 = vpack.c.b16 %v1616, %v1614
    %v2203 = vpack.c.b16 %v1619, %v1617
    %v2204 = vpack.c.b16 %v1620, %v1618
    %v2205 = vpack.c.b16 %v1623, %v1621
    %v2206 = vpack.c.b16 %v1624, %v1622
    %v2207 = vpack.c.b16 %v1627, %v1625
    %v2208 = vpack.c.b16 %v1628, %v1626
    %v2209 = vpack.c.b16 %v1631, %v1629
    %v2210 = vpack.c.b16 %v1632, %v1630
    %v2211 = vpack.c.b16 %v1635, %v1633
    %v2212 = vpack.c.b16 %v1636, %v1634
    %v2213 = vpack.c.b16 %v1639, %v1637
    %v2214 = vpack.c.b16 %v1640, %v1638
    %v2215 = vpack.c.b16 %v1643, %v1641
    %v2216 = vpack.c.b16 %v1644, %v1642
    %v2217 = vpack.c.b16 %v1647, %v1645
    %v2218 = vpack.c.b16 %v1648, %v1646
    %v2219 = vpack.c.b16 %v1651, %v1649
    %v2220 = vpack.c.b16 %v1652, %v1650
    %v2221 = vpack.c.b16 %v1655, %v1653
    %v2222 = vpack.c.b16 %v1656, %v1654
    %v2223 = vpack.c.b16 %v1659, %v1657
    %v2224 = vpack.c.b16 %v1660, %v1658
    %v2225 = vpack.c.b16 %v1663, %v1661
    %v2226 = vpack.c.b16 %v1664, %v1662
    %v2227 = vpack.c.b16 %v1667, %v1665
    %v2228 = vpack.c.b16 %v1668, %v1666
    %v2229 = vpack.c.b16 %v1671, %v1669
    %v2230 = vpack.c.b16 %v1672, %v1670
    %v2231 = vpack.c.b16 %v1675, %v1673
    %v2232 = vpack.c.b16 %v1676, %v1674
    %v2233 = vpack.c.b16 %v1679, %v1677
    %v2234 = vpack.c.b16 %v1680, %v1678
    %v2235 = vpack.c.b16 %v1683, %v1681
    %v2236 = vpack.c.b16 %v1684, %v1682
    %v2237 = vpack.c.b16 %v1687, %v1685
    %v2238 = vpack.c.b16 %v1688, %v1686
    %v2239 = vpack.c.b16 %v1691, %v1689
    %v2240 = vpack.c.b16 %v1692, %v1690
    %v2241 = vpack.c.b16 %v1695, %v1693
    %v2242 = vpack.c.b16 %v1696, %v1694
    %v2243 = vpack.c.b16 %v1699, %v1697
    %v2244 = vpack.c.b16 %v1700, %v1698
    %v2245 = vpack.c.b16 %v1703, %v1701
    %v2246 = vpack.c.b16 %v1704, %v1702
    %v2247 = vpack.c.b16 %v1707, %v1705
    %v2248 = vpack.c.b16 %v1708, %v1706
    %v2249 = vpack.c.b16 %v1711, %v1709
    %v2250 = vpack.c.b16 %v1712, %v1710
    %v2251 = vpack.c.b16 %v1715, %v1713
    %v2252 = vpack.c.b16 %v1716, %v1714
    %v2253 = vpack.c.b16 %v1719, %v1717
    %v2254 = vpack.c.b16 %v1720, %v1718
    %v2255 = vpack.c.b16 %v1723, %v1721
    %v2256 = vpack.c.b16 %v1724, %v1722
    %v2257 = vpack.c.b16 %v1727, %v1725
    %v2258 = vpack.c.b16 %v1728, %v1726
    %v2259 = vpack.c.b16 %v1731, %v1729
    %v2260 = vpack.c.b16 %v1732, %v1730
    %v2261 = vpack.c.b16 %v1735, %v1733
    %v2262 = vpack.c.b16 %v1736, %v1734
    %v2263 = vpack.c.b16 %v1739, %v1737
    %v2264 = vpack.c.b16 %v1740, %v1738
    %v2265 = vpack.c.b16 %v1743, %v1741
    %v2266 = vpack.c.b16 %v1744, %v1742
    %v2267 = vpack.c.b16 %v1747, %v1745
    %v2268 = vpack.c.b16 %v1748, %v1746
    %v2269 = vpack.c.b16 %v1751, %v1749
    %v2270 = vpack.c.b16 %v1752, %v1750
    %v2271 = vpack.c.b16 %v1755, %v1753
    %v2272 = vpack.c.b16 %v1756, %v1754
    %v2273 = vpack.c.b16 %v1759, %v1757
    %v2274 = vpack.c.b16 %v1760, %v1758
    %v2275 = vpack.c.b16 %v1763, %v1761
    %v2276 = vpack.c.b16 %v1764, %v1762
    %v2277 = vpack.c.b16 %v1767, %v1765
    %v2278 = vpack.c.b16 %v1768, %v1766
    %v2279 = vpack.c.b16 %v1771, %v1769
    %v2280 = vpack.c.b16 %v1772, %v1770
    %v2281 = vpack.c.b16 %v1775, %v1773
    %v2282 = vpack.c.b16 %v1776, %v1774
    %v2283 = vpack.c.b16 %v1779, %v1777
    %v2284 = vpack.c.b16 %v1780, %v1778
    %v2285 = vpack.c.b16 %v1783, %v1781
    %v2286 = vpack.c.b16 %v1784, %v1782
    %v2287 = vpack.c.b16 %v1787, %v1785
    %v2288 = vpack.c.b16 %v1788, %v1786
    %v2289 = vpack.c.b16 %v1791, %v1789
    %v2290 = vpack.c.b16 %v1792, %v1790
    %v2291 = vpack.c.b16 %v1795, %v1793
    %v2292 = vpack.c.b16 %v1796, %v1794
    %v2293 = vpack.c.b16 %v1799, %v1797
    %v2294 = vpack.c.b16 %v1800, %v1798
    %v2295 = vpack.c.b16 %v1803, %v1801
    %v2296 = vpack.c.b16 %v1804, %v1802
    %v2297 = vpack.c.b16 %v1807, %v1805
    %v2298 = vpack.c.b16 %v1808, %v1806
    %v2299 = vpack.c.b16 %v1811, %v1809
    %v2300 = vpack.c.b16 %v1812, %v1810
    %v2301 = vpack.c.b16 %v1815, %v1813
    %v2302 = vpack.c.b16 %v1816, %v1814
    %v2303 = vpack.c.b16 %v1819, %v1817
    %v2304 = vpack.c.b16 %v1820, %v1818
    %v2305 = vpack.c.b16 %v1823, %v1821
    %v2306 = vpack.c.b16 %v1824, %v1822
    %v2307 = vpack.c.b16 %v1827, %v1825
    %v2308 = vpack.c.b16 %v1828, %v1826
    %v2309 = vpack.c.b16 %v1831, %v1829
    %v2310 = vpack.c.b16 %v1832, %v1830
    %v2311 = vpack.c.b16 %v1835, %v1833
    %v2312 = vpack.c.b16 %v1836, %v1834
    %v2313 = vpack.c.b16 %v1839, %v1837
    %v2314 = vpack.c.b16 %v1840, %v1838
    %v2315 = vpack.c.b16 %v1843, %v1841
    %v2316 = vpack.c.b16 %v1844, %v1842
    %v2317 = vpack.c.b16 %v1847, %v1845
    %v2318 = vpack.c.b16 %v1848, %v1846
    %v2319 = vpack.c.b16 %v1851, %v1849
    %v2320 = vpack.c.b16 %v1852, %v1850
    %v2321 = vpack.c.b16 %v1855, %v1853
    %v2322 = vpack.c.b16 %v1856, %v1854
    %v2323 = vpack.c.b16 %v1859, %v1857
    %v2324 = vpack.c.b16 %v1860, %v1858
    %v2325 = vpack.c.b16 %v1863, %v1861
    %v2326 = vpack.c.b16 %v1864, %v1862
    %v2327 = vpack.c.b16 %v1867, %v1865
    %v2328 = vpack.c.b16 %v1868, %v1866
    %v2329 = vpack.c.b16 %v1871, %v1869
    %v2330 = vpack.c.b16 %v1872, %v1870
    %v2331 = vpack.c.b16 %v1875, %v1873
    %v2332 = vpack.c.b16 %v1876, %v1874
    %v2333 = vpack.c.b16 %v1879, %v1877
    %v2334 = vpack.c.b16 %v1880, %v1878
    %v2335 = vpack.c.b16 %v1883, %v1881
    %v2336 = vpack.c.b16 %v1884, %v1882
    %v2337 = vpack.c.b16 %v1887, %v1885
    %v2338 = vpack.c.b16 %v1888, %v1886
    %v2339 = vpack.c.b16 %v1891, %v1889
    %v2340 = vpack.c.b16 %v1892, %v1890
    %v2341 = vpack.c.b16 %v1895, %v1893
    %v2342 = vpack.c.b16 %v1896, %v1894
    %v2343 = vpack.c.b16 %v1899, %v1897
    %v2344 = vpack.c.b16 %v1900, %v1898
    %v2345 = vpack.c.b16 %v1903, %v1901
    %v2346 = vpack.c.b16 %v1904, %v1902
    %v2347 = vpack.c.b16 %v1907, %v1905
    %v2348 = vpack.c.b16 %v1908, %v1906
    %v2349 = vpack.c.b16 %v1911, %v1909
    %v2350 = vpack.c.b16 %v1912, %v1910
    %v2351 = vpack.c.b16 %v1915, %v1913
    %v2352 = vpack.c.b16 %v1916, %v1914
    %v2353 = vpack.c.b16 %v1919, %v1917
    %v2354 = vpack.c.b16 %v1920, %v1918
    %v2355 = vpack.c.b16 %v1923, %v1921
    %v2356 = vpack.c.b16 %v1924, %v1922
    %v2357 = vpack.c.b16 %v1927, %v1925
    %v2358 = vpack.c.b16 %v1928, %v1926
    %v2359 = vpack.c.b16 %v1931, %v1929
    %v2360 = vpack.c.b16 %v1932, %v1930
    %v2361 = vpack.c.b16 %v1935, %v1933
    %v2362 = vpack.c.b16 %v1936, %v1934
    %v2363 = vpack.c.b16 %v1939, %v1937
    %v2364 = vpack.c.b16 %v1940, %v1938
    %v2365 = vpack.c.b16 %v1943, %v1941
    %v2366 = vpack.c.b16 %v1944, %v1942
    %v2367 = vpack.c.b16 %v1947, %v1945
    %v2368 = vpack.c.b16 %v1948, %v1946
    %v2369 = vpack.c.b16 %v1951, %v1949
    %v2370 = vpack.c.b16 %v1952, %v1950
    %v2371 = vpack.c.b16 %v1955, %v1953
    %v2372 = vpack.c.b16 %v1956, %v1954
    %v2373 = vpack.c.b16 %v1959, %v1957
    %v2374 = vpack.c.b16 %v1960, %v1958
    %v2375 = vpack.c.b16 %v1963, %v1961
    %v2376 = vpack.c.b16 %v1964, %v1962
    %v2377 = vpack.c.b16 %v1967, %v1965
    %v2378 = vpack.c.b16 %v1968, %v1966
    %v2379 = vpack.c.b16 %v1971, %v1969
    %v2380 = vpack.c.b16 %v1972, %v1970
    %v2381 = vpack.c.b16 %v1975, %v1973
    %v2382 = vpack.c.b16 %v1976, %v1974
    %v2383 = vpack.c.b16 %v1979, %v1977
    %v2384 = vpack.c.b16 %v1980, %v1978
    %v2385 = vpack.c.b16 %v1983, %v1981
    %v2386 = vpack.c.b16 %v1984, %v1982
    %v2387 = vpack.c.b16 %v1987, %v1985
    %v2388 = vpack.c.b16 %v1988, %v1986
    %v2389 = vpack.c.b16 %v1991, %v1989
    %v2390 = vpack.c.b16 %v1992, %v1990
    %v2391 = vpack.c.b16 %v1995, %v1993
    %v2392 = vpack.c.b16 %v1996, %v1994
    %v2393 = vpack.c.b16 %v1999, %v1997
    %v2394 = vpack.c.b16 %v2000, %v1998
    %v2395 = vpack.c.b16 %v2003, %v2001
    %v2396 = vpack.c.b16 %v2004, %v2002
    %v2397 = vpack.c.b16 %v2007, %v2005
    %v2398 = vpack.c.b16 %v2008, %v2006
    %v2399 = vpack.c.b16 %v2011, %v2009
    %v2400 = vpack.c.b16 %v2012, %v2010
    %v2401 = vpack.c.b16 %v2015, %v2013
    %v2402 = vpack.c.b16 %v2016, %v2014
    %v2403 = vpack.c.b16 %v2019, %v2017
    %v2404 = vpack.c.b16 %v2020, %v2018
    %2789 = vmatpush.bf16.msra.mxu0 %v2035
    %2790 = vmatpush.bf16.msra.mxu0 %v2033
    %2791 = vmatpush.bf16.msra.mxu0 %v2031
    %2792 = vmatpush.bf16.msra.mxu0 %v2029
    %2793 = vmatpush.bf16.msra.mxu0 %v2027
    %2794 = vmatpush.bf16.msra.mxu0 %v2025
    %2795 = vmatpush.bf16.msra.mxu0 %v2023
    %2796 = vmatpush.bf16.msra.mxu0 %v2021
    %2797 = vmatmul.bf16.gmra.mxu0 %v773
    %v2798 = vpop.f32.mrf.mxu0
    %v2799 = vadd.f32 %v625, %v2798
    %v2800 = vpop.f32.mrf.mxu0
    %v2801 = vadd.f32 %v625, %v2800
    %2802 = vmatmul.bf16.gmra.mxu0 %v797
    %v2803 = vpop.f32.mrf.mxu0
    %v2804 = vadd.f32 %v625, %v2803
    %v2805 = vpop.f32.mrf.mxu0
    %v2806 = vadd.f32 %v625, %v2805
    %2807 = vdwg.mxu0
    %2808 = vmatpush.bf16.msra.mxu0 %v2051
    %2809 = vmatpush.bf16.msra.mxu0 %v2049
    %2810 = vmatpush.bf16.msra.mxu0 %v2047
    %2811 = vmatpush.bf16.msra.mxu0 %v2045
    %2812 = vmatpush.bf16.msra.mxu0 %v2043
    %2813 = vmatpush.bf16.msra.mxu0 %v2041
    %2814 = vmatpush.bf16.msra.mxu0 %v2039
    %2815 = vmatpush.bf16.msra.mxu0 %v2037
    %2816 = vmatmul.bf16.gmra.mxu0 %v774
    %v2817 = vpop.f32.mrf.mxu0
    %v2818 = vadd.f32 %v2799, %v2817
    %v2819 = vpop.f32.mrf.mxu0
    %v2820 = vadd.f32 %v2801, %v2819
    %2821 = vmatmul.bf16.gmra.mxu0 %v798
    %v2822 = vpop.f32.mrf.mxu0
    %v2823 = vadd.f32 %v2804, %v2822
    %v2824 = vpop.f32.mrf.mxu0
    %v2825 = vadd.f32 %v2806, %v2824
    %2826 = vdwg.mxu0
    %2827 = vmatpush.bf16.msra.mxu0 %v2067
    %2828 = vmatpush.bf16.msra.mxu0 %v2065
    %2829 = vmatpush.bf16.msra.mxu0 %v2063
    %2830 = vmatpush.bf16.msra.mxu0 %v2061
    %2831 = vmatpush.bf16.msra.mxu0 %v2059
    %2832 = vmatpush.bf16.msra.mxu0 %v2057
    %2833 = vmatpush.bf16.msra.mxu0 %v2055
    %2834 = vmatpush.bf16.msra.mxu0 %v2053
    %2835 = vmatmul.bf16.gmra.mxu0 %v775
    %v2836 = vpop.f32.mrf.mxu0
    %v2837 = vadd.f32 %v2818, %v2836
    %v2838 = vpop.f32.mrf.mxu0
    %v2839 = vadd.f32 %v2820, %v2838
    %2840 = vmatmul.bf16.gmra.mxu0 %v799
    %v2841 = vpop.f32.mrf.mxu0
    %v2842 = vadd.f32 %v2823, %v2841
    %v2843 = vpop.f32.mrf.mxu0
    %v2844 = vadd.f32 %v2825, %v2843
    %2845 = vdwg.mxu0
    %2846 = vmatpush.bf16.msra.mxu0 %v2083
    %2847 = vmatpush.bf16.msra.mxu0 %v2081
    %2848 = vmatpush.bf16.msra.mxu0 %v2079
    %2849 = vmatpush.bf16.msra.mxu0 %v2077
    %2850 = vmatpush.bf16.msra.mxu0 %v2075
    %2851 = vmatpush.bf16.msra.mxu0 %v2073
    %2852 = vmatpush.bf16.msra.mxu0 %v2071
    %2853 = vmatpush.bf16.msra.mxu0 %v2069
    %2854 = vmatmul.bf16.gmra.mxu0 %v776
    %v2855 = vpop.f32.mrf.mxu0
    %v2856 = vadd.f32 %v2837, %v2855
    %v2857 = vpop.f32.mrf.mxu0
    %v2858 = vadd.f32 %v2839, %v2857
    %2859 = vmatmul.bf16.gmra.mxu0 %v800
    %v2860 = vpop.f32.mrf.mxu0
    %v2861 = vadd.f32 %v2842, %v2860
    %v2862 = vpop.f32.mrf.mxu0
    %v2863 = vadd.f32 %v2844, %v2862
    %2864 = vdwg.mxu0
    %2865 = vmatpush.bf16.msra.mxu0 %v2099
    %2866 = vmatpush.bf16.msra.mxu0 %v2097
    %2867 = vmatpush.bf16.msra.mxu0 %v2095
    %2868 = vmatpush.bf16.msra.mxu0 %v2093
    %2869 = vmatpush.bf16.msra.mxu0 %v2091
    %2870 = vmatpush.bf16.msra.mxu0 %v2089
    %2871 = vmatpush.bf16.msra.mxu0 %v2087
    %2872 = vmatpush.bf16.msra.mxu0 %v2085
    %2873 = vmatmul.bf16.gmra.mxu0 %v777
    %v2874 = vpop.f32.mrf.mxu0
    %v2875 = vadd.f32 %v2856, %v2874
    %v2876 = vpop.f32.mrf.mxu0
    %v2877 = vadd.f32 %v2858, %v2876
    %2878 = vmatmul.bf16.gmra.mxu0 %v801
    %v2879 = vpop.f32.mrf.mxu0
    %v2880 = vadd.f32 %v2861, %v2879
    %v2881 = vpop.f32.mrf.mxu0
    %v2882 = vadd.f32 %v2863, %v2881
    %2883 = vdwg.mxu0
    %2884 = vmatpush.bf16.msra.mxu0 %v2115
    %2885 = vmatpush.bf16.msra.mxu0 %v2113
    %2886 = vmatpush.bf16.msra.mxu0 %v2111
    %2887 = vmatpush.bf16.msra.mxu0 %v2109
    %2888 = vmatpush.bf16.msra.mxu0 %v2107
    %2889 = vmatpush.bf16.msra.mxu0 %v2105
    %2890 = vmatpush.bf16.msra.mxu0 %v2103
    %2891 = vmatpush.bf16.msra.mxu0 %v2101
    %2892 = vmatmul.bf16.gmra.mxu0 %v778
    %v2893 = vpop.f32.mrf.mxu0
    %v2894 = vadd.f32 %v2875, %v2893
    %v2895 = vpop.f32.mrf.mxu0
    %v2896 = vadd.f32 %v2877, %v2895
    %2897 = vmatmul.bf16.gmra.mxu0 %v802
    %v2898 = vpop.f32.mrf.mxu0
    %v2899 = vadd.f32 %v2880, %v2898
    %v2900 = vpop.f32.mrf.mxu0
    %v2901 = vadd.f32 %v2882, %v2900
    %2902 = vdwg.mxu0
    %2903 = vmatpush.bf16.msra.mxu0 %v2131
    %2904 = vmatpush.bf16.msra.mxu0 %v2129
    %2905 = vmatpush.bf16.msra.mxu0 %v2127
    %2906 = vmatpush.bf16.msra.mxu0 %v2125
    %2907 = vmatpush.bf16.msra.mxu0 %v2123
    %2908 = vmatpush.bf16.msra.mxu0 %v2121
    %2909 = vmatpush.bf16.msra.mxu0 %v2119
    %2910 = vmatpush.bf16.msra.mxu0 %v2117
    %2911 = vmatmul.bf16.gmra.mxu0 %v779
    %v2912 = vpop.f32.mrf.mxu0
    %v2913 = vadd.f32 %v2894, %v2912
    %v2914 = vpop.f32.mrf.mxu0
    %v2915 = vadd.f32 %v2896, %v2914
    %2916 = vmatmul.bf16.gmra.mxu0 %v803
    %v2917 = vpop.f32.mrf.mxu0
    %v2918 = vadd.f32 %v2899, %v2917
    %v2919 = vpop.f32.mrf.mxu0
    %v2920 = vadd.f32 %v2901, %v2919
    %2921 = vdwg.mxu0
    %2922 = vmatpush.bf16.msra.mxu0 %v2147
    %2923 = vmatpush.bf16.msra.mxu0 %v2145
    %2924 = vmatpush.bf16.msra.mxu0 %v2143
    %2925 = vmatpush.bf16.msra.mxu0 %v2141
    %2926 = vmatpush.bf16.msra.mxu0 %v2139
    %2927 = vmatpush.bf16.msra.mxu0 %v2137
    %2928 = vmatpush.bf16.msra.mxu0 %v2135
    %2929 = vmatpush.bf16.msra.mxu0 %v2133
    %2930 = vmatmul.bf16.gmra.mxu0 %v780
    %v2931 = vpop.f32.mrf.mxu0
    %v2932 = vadd.f32 %v2913, %v2931
    %v2933 = vpop.f32.mrf.mxu0
    %v2934 = vadd.f32 %v2915, %v2933
    %2935 = vmatmul.bf16.gmra.mxu0 %v804
    %v2936 = vpop.f32.mrf.mxu0
    %v2937 = vadd.f32 %v2918, %v2936
    %v2938 = vpop.f32.mrf.mxu0
    %v2939 = vadd.f32 %v2920, %v2938
    %2940 = vdwg.mxu0
    %2941 = vmatpush.bf16.msra.mxu0 %v2163
    %2942 = vmatpush.bf16.msra.mxu0 %v2161
    %2943 = vmatpush.bf16.msra.mxu0 %v2159
    %2944 = vmatpush.bf16.msra.mxu0 %v2157
    %2945 = vmatpush.bf16.msra.mxu0 %v2155
    %2946 = vmatpush.bf16.msra.mxu0 %v2153
    %2947 = vmatpush.bf16.msra.mxu0 %v2151
    %2948 = vmatpush.bf16.msra.mxu0 %v2149
    %2949 = vmatmul.bf16.gmra.mxu0 %v781
    %v2950 = vpop.f32.mrf.mxu0
    %v2951 = vadd.f32 %v2932, %v2950
    %v2952 = vpop.f32.mrf.mxu0
    %v2953 = vadd.f32 %v2934, %v2952
    %2954 = vmatmul.bf16.gmra.mxu0 %v805
    %v2955 = vpop.f32.mrf.mxu0
    %v2956 = vadd.f32 %v2937, %v2955
    %v2957 = vpop.f32.mrf.mxu0
    %v2958 = vadd.f32 %v2939, %v2957
    %2959 = vdwg.mxu0
    %2960 = vmatpush.bf16.msra.mxu0 %v2179
    %2961 = vmatpush.bf16.msra.mxu0 %v2177
    %2962 = vmatpush.bf16.msra.mxu0 %v2175
    %2963 = vmatpush.bf16.msra.mxu0 %v2173
    %2964 = vmatpush.bf16.msra.mxu0 %v2171
    %2965 = vmatpush.bf16.msra.mxu0 %v2169
    %2966 = vmatpush.bf16.msra.mxu0 %v2167
    %2967 = vmatpush.bf16.msra.mxu0 %v2165
    %2968 = vmatmul.bf16.gmra.mxu0 %v782
    %v2969 = vpop.f32.mrf.mxu0
    %v2970 = vadd.f32 %v2951, %v2969
    %v2971 = vpop.f32.mrf.mxu0
    %v2972 = vadd.f32 %v2953, %v2971
    %2973 = vmatmul.bf16.gmra.mxu0 %v806
    %v2974 = vpop.f32.mrf.mxu0
    %v2975 = vadd.f32 %v2956, %v2974
    %v2976 = vpop.f32.mrf.mxu0
    %v2977 = vadd.f32 %v2958, %v2976
    %2978 = vdwg.mxu0
    %2979 = vmatpush.bf16.msra.mxu0 %v2195
    %2980 = vmatpush.bf16.msra.mxu0 %v2193
    %2981 = vmatpush.bf16.msra.mxu0 %v2191
    %2982 = vmatpush.bf16.msra.mxu0 %v2189
    %2983 = vmatpush.bf16.msra.mxu0 %v2187
    %2984 = vmatpush.bf16.msra.mxu0 %v2185
    %2985 = vmatpush.bf16.msra.mxu0 %v2183
    %2986 = vmatpush.bf16.msra.mxu0 %v2181
    %2987 = vmatmul.bf16.gmra.mxu0 %v783
    %v2988 = vpop.f32.mrf.mxu0
    %v2989 = vadd.f32 %v2970, %v2988
    %v2990 = vpop.f32.mrf.mxu0
    %v2991 = vadd.f32 %v2972, %v2990
    %2992 = vmatmul.bf16.gmra.mxu0 %v807
    %v2993 = vpop.f32.mrf.mxu0
    %v2994 = vadd.f32 %v2975, %v2993
    %v2995 = vpop.f32.mrf.mxu0
    %v2996 = vadd.f32 %v2977, %v2995
    %2997 = vdwg.mxu0
    %2998 = vmatpush.bf16.msra.mxu0 %v2211
    %2999 = vmatpush.bf16.msra.mxu0 %v2209
    %3000 = vmatpush.bf16.msra.mxu0 %v2207
    %3001 = vmatpush.bf16.msra.mxu0 %v2205
    %3002 = vmatpush.bf16.msra.mxu0 %v2203
    %3003 = vmatpush.bf16.msra.mxu0 %v2201
    %3004 = vmatpush.bf16.msra.mxu0 %v2199
    %3005 = vmatpush.bf16.msra.mxu0 %v2197
    %3006 = vmatmul.bf16.gmra.mxu0 %v784
    %v3007 = vpop.f32.mrf.mxu0
    %v3008 = vadd.f32 %v2989, %v3007
    %v3009 = vpop.f32.mrf.mxu0
    %v3010 = vadd.f32 %v2991, %v3009
    %3011 = vmatmul.bf16.gmra.mxu0 %v808
    %v3012 = vpop.f32.mrf.mxu0
    %v3013 = vadd.f32 %v2994, %v3012
    %v3014 = vpop.f32.mrf.mxu0
    %v3015 = vadd.f32 %v2996, %v3014
    %3016 = vdwg.mxu0
    %3017 = vmatpush.bf16.msra.mxu0 %v2227
    %3018 = vmatpush.bf16.msra.mxu0 %v2225
    %3019 = vmatpush.bf16.msra.mxu0 %v2223
    %3020 = vmatpush.bf16.msra.mxu0 %v2221
    %3021 = vmatpush.bf16.msra.mxu0 %v2219
    %3022 = vmatpush.bf16.msra.mxu0 %v2217
    %3023 = vmatpush.bf16.msra.mxu0 %v2215
    %3024 = vmatpush.bf16.msra.mxu0 %v2213
    %3025 = vmatmul.bf16.gmra.mxu0 %v785
    %v3026 = vpop.f32.mrf.mxu0
    %v3027 = vadd.f32 %v3008, %v3026
    %v3028 = vpop.f32.mrf.mxu0
    %v3029 = vadd.f32 %v3010, %v3028
    %3030 = vmatmul.bf16.gmra.mxu0 %v809
    %v3031 = vpop.f32.mrf.mxu0
    %v3032 = vadd.f32 %v3013, %v3031
    %v3033 = vpop.f32.mrf.mxu0
    %v3034 = vadd.f32 %v3015, %v3033
    %3035 = vdwg.mxu0
    %3036 = vmatpush.bf16.msra.mxu0 %v2243
    %3037 = vmatpush.bf16.msra.mxu0 %v2241
    %3038 = vmatpush.bf16.msra.mxu0 %v2239
    %3039 = vmatpush.bf16.msra.mxu0 %v2237
    %3040 = vmatpush.bf16.msra.mxu0 %v2235
    %3041 = vmatpush.bf16.msra.mxu0 %v2233
    %3042 = vmatpush.bf16.msra.mxu0 %v2231
    %3043 = vmatpush.bf16.msra.mxu0 %v2229
    %3044 = vmatmul.bf16.gmra.mxu0 %v786
    %v3045 = vpop.f32.mrf.mxu0
    %v3046 = vadd.f32 %v3027, %v3045
    %v3047 = vpop.f32.mrf.mxu0
    %v3048 = vadd.f32 %v3029, %v3047
    %3049 = vmatmul.bf16.gmra.mxu0 %v810
    %v3050 = vpop.f32.mrf.mxu0
    %v3051 = vadd.f32 %v3032, %v3050
    %v3052 = vpop.f32.mrf.mxu0
    %v3053 = vadd.f32 %v3034, %v3052
    %3054 = vdwg.mxu0
    %3055 = vmatpush.bf16.msra.mxu0 %v2259
    %3056 = vmatpush.bf16.msra.mxu0 %v2257
    %3057 = vmatpush.bf16.msra.mxu0 %v2255
    %3058 = vmatpush.bf16.msra.mxu0 %v2253
    %3059 = vmatpush.bf16.msra.mxu0 %v2251
    %3060 = vmatpush.bf16.msra.mxu0 %v2249
    %3061 = vmatpush.bf16.msra.mxu0 %v2247
    %3062 = vmatpush.bf16.msra.mxu0 %v2245
    %3063 = vmatmul.bf16.gmra.mxu0 %v787
    %v3064 = vpop.f32.mrf.mxu0
    %v3065 = vadd.f32 %v3046, %v3064
    %v3066 = vpop.f32.mrf.mxu0
    %v3067 = vadd.f32 %v3048, %v3066
    %3068 = vmatmul.bf16.gmra.mxu0 %v811
    %v3069 = vpop.f32.mrf.mxu0
    %v3070 = vadd.f32 %v3051, %v3069
    %v3071 = vpop.f32.mrf.mxu0
    %v3072 = vadd.f32 %v3053, %v3071
    %3073 = vdwg.mxu0
    %3074 = vmatpush.bf16.msra.mxu0 %v2275
    %3075 = vmatpush.bf16.msra.mxu0 %v2273
    %3076 = vmatpush.bf16.msra.mxu0 %v2271
    %3077 = vmatpush.bf16.msra.mxu0 %v2269
    %3078 = vmatpush.bf16.msra.mxu0 %v2267
    %3079 = vmatpush.bf16.msra.mxu0 %v2265
    %3080 = vmatpush.bf16.msra.mxu0 %v2263
    %3081 = vmatpush.bf16.msra.mxu0 %v2261
    %3082 = vmatmul.bf16.gmra.mxu0 %v788
    %v3083 = vpop.f32.mrf.mxu0
    %v3084 = vadd.f32 %v3065, %v3083
    %v3085 = vpop.f32.mrf.mxu0
    %v3086 = vadd.f32 %v3067, %v3085
    %3087 = vmatmul.bf16.gmra.mxu0 %v812
    %v3088 = vpop.f32.mrf.mxu0
    %v3089 = vadd.f32 %v3070, %v3088
    %v3090 = vpop.f32.mrf.mxu0
    %v3091 = vadd.f32 %v3072, %v3090
    %3092 = vdwg.mxu0
    %3093 = vmatpush.bf16.msra.mxu0 %v2291
    %3094 = vmatpush.bf16.msra.mxu0 %v2289
    %3095 = vmatpush.bf16.msra.mxu0 %v2287
    %3096 = vmatpush.bf16.msra.mxu0 %v2285
    %3097 = vmatpush.bf16.msra.mxu0 %v2283
    %3098 = vmatpush.bf16.msra.mxu0 %v2281
    %3099 = vmatpush.bf16.msra.mxu0 %v2279
    %3100 = vmatpush.bf16.msra.mxu0 %v2277
    %3101 = vmatmul.bf16.gmra.mxu0 %v789
    %v3102 = vpop.f32.mrf.mxu0
    %v3103 = vadd.f32 %v3084, %v3102
    %v3104 = vpop.f32.mrf.mxu0
    %v3105 = vadd.f32 %v3086, %v3104
    %3106 = vmatmul.bf16.gmra.mxu0 %v813
    %v3107 = vpop.f32.mrf.mxu0
    %v3108 = vadd.f32 %v3089, %v3107
    %v3109 = vpop.f32.mrf.mxu0
    %v3110 = vadd.f32 %v3091, %v3109
    %3111 = vdwg.mxu0
    %3112 = vmatpush.bf16.msra.mxu0 %v2307
    %3113 = vmatpush.bf16.msra.mxu0 %v2305
    %3114 = vmatpush.bf16.msra.mxu0 %v2303
    %3115 = vmatpush.bf16.msra.mxu0 %v2301
    %3116 = vmatpush.bf16.msra.mxu0 %v2299
    %3117 = vmatpush.bf16.msra.mxu0 %v2297
    %3118 = vmatpush.bf16.msra.mxu0 %v2295
    %3119 = vmatpush.bf16.msra.mxu0 %v2293
    %3120 = vmatmul.bf16.gmra.mxu0 %v790
    %v3121 = vpop.f32.mrf.mxu0
    %v3122 = vadd.f32 %v3103, %v3121
    %v3123 = vpop.f32.mrf.mxu0
    %v3124 = vadd.f32 %v3105, %v3123
    %3125 = vmatmul.bf16.gmra.mxu0 %v814
    %v3126 = vpop.f32.mrf.mxu0
    %v3127 = vadd.f32 %v3108, %v3126
    %v3128 = vpop.f32.mrf.mxu0
    %v3129 = vadd.f32 %v3110, %v3128
    %3130 = vdwg.mxu0
    %3131 = vmatpush.bf16.msra.mxu0 %v2323
    %3132 = vmatpush.bf16.msra.mxu0 %v2321
    %3133 = vmatpush.bf16.msra.mxu0 %v2319
    %3134 = vmatpush.bf16.msra.mxu0 %v2317
    %3135 = vmatpush.bf16.msra.mxu0 %v2315
    %3136 = vmatpush.bf16.msra.mxu0 %v2313
    %3137 = vmatpush.bf16.msra.mxu0 %v2311
    %3138 = vmatpush.bf16.msra.mxu0 %v2309
    %3139 = vmatmul.bf16.gmra.mxu0 %v791
    %v3140 = vpop.f32.mrf.mxu0
    %v3141 = vadd.f32 %v3122, %v3140
    %v3142 = vpop.f32.mrf.mxu0
    %v3143 = vadd.f32 %v3124, %v3142
    %3144 = vmatmul.bf16.gmra.mxu0 %v815
    %v3145 = vpop.f32.mrf.mxu0
    %v3146 = vadd.f32 %v3127, %v3145
    %v3147 = vpop.f32.mrf.mxu0
    %v3148 = vadd.f32 %v3129, %v3147
    %3149 = vdwg.mxu0
    %3150 = vmatpush.bf16.msra.mxu0 %v2339
    %3151 = vmatpush.bf16.msra.mxu0 %v2337
    %3152 = vmatpush.bf16.msra.mxu0 %v2335
    %3153 = vmatpush.bf16.msra.mxu0 %v2333
    %3154 = vmatpush.bf16.msra.mxu0 %v2331
    %3155 = vmatpush.bf16.msra.mxu0 %v2329
    %3156 = vmatpush.bf16.msra.mxu0 %v2327
    %3157 = vmatpush.bf16.msra.mxu0 %v2325
    %3158 = vmatmul.bf16.gmra.mxu0 %v792
    %v3159 = vpop.f32.mrf.mxu0
    %v3160 = vadd.f32 %v3141, %v3159
    %v3161 = vpop.f32.mrf.mxu0
    %v3162 = vadd.f32 %v3143, %v3161
    %3163 = vmatmul.bf16.gmra.mxu0 %v816
    %v3164 = vpop.f32.mrf.mxu0
    %v3165 = vadd.f32 %v3146, %v3164
    %v3166 = vpop.f32.mrf.mxu0
    %v3167 = vadd.f32 %v3148, %v3166
    %3168 = vdwg.mxu0
    %3169 = vmatpush.bf16.msra.mxu0 %v2355
    %3170 = vmatpush.bf16.msra.mxu0 %v2353
    %3171 = vmatpush.bf16.msra.mxu0 %v2351
    %3172 = vmatpush.bf16.msra.mxu0 %v2349
    %3173 = vmatpush.bf16.msra.mxu0 %v2347
    %3174 = vmatpush.bf16.msra.mxu0 %v2345
    %3175 = vmatpush.bf16.msra.mxu0 %v2343
    %3176 = vmatpush.bf16.msra.mxu0 %v2341
    %3177 = vmatmul.bf16.gmra.mxu0 %v793
    %v3178 = vpop.f32.mrf.mxu0
    %v3179 = vadd.f32 %v3160, %v3178
    %v3180 = vpop.f32.mrf.mxu0
    %v3181 = vadd.f32 %v3162, %v3180
    %3182 = vmatmul.bf16.gmra.mxu0 %v817
    %v3183 = vpop.f32.mrf.mxu0
    %v3184 = vadd.f32 %v3165, %v3183
    %v3185 = vpop.f32.mrf.mxu0
    %v3186 = vadd.f32 %v3167, %v3185
    %3187 = vdwg.mxu0
    %3188 = vmatpush.bf16.msra.mxu0 %v2371
    %3189 = vmatpush.bf16.msra.mxu0 %v2369
    %3190 = vmatpush.bf16.msra.mxu0 %v2367
    %3191 = vmatpush.bf16.msra.mxu0 %v2365
    %3192 = vmatpush.bf16.msra.mxu0 %v2363
    %3193 = vmatpush.bf16.msra.mxu0 %v2361
    %3194 = vmatpush.bf16.msra.mxu0 %v2359
    %3195 = vmatpush.bf16.msra.mxu0 %v2357
    %3196 = vmatmul.bf16.gmra.mxu0 %v794
    %v3197 = vpop.f32.mrf.mxu0
    %v3198 = vadd.f32 %v3179, %v3197
    %v3199 = vpop.f32.mrf.mxu0
    %v3200 = vadd.f32 %v3181, %v3199
    %3201 = vmatmul.bf16.gmra.mxu0 %v818
    %v3202 = vpop.f32.mrf.mxu0
    %v3203 = vadd.f32 %v3184, %v3202
    %v3204 = vpop.f32.mrf.mxu0
    %v3205 = vadd.f32 %v3186, %v3204
    %3206 = vdwg.mxu0
    %3207 = vmatpush.bf16.msra.mxu0 %v2387
    %3208 = vmatpush.bf16.msra.mxu0 %v2385
    %3209 = vmatpush.bf16.msra.mxu0 %v2383
    %3210 = vmatpush.bf16.msra.mxu0 %v2381
    %3211 = vmatpush.bf16.msra.mxu0 %v2379
    %3212 = vmatpush.bf16.msra.mxu0 %v2377
    %3213 = vmatpush.bf16.msra.mxu0 %v2375
    %3214 = vmatpush.bf16.msra.mxu0 %v2373
    %3215 = vmatmul.bf16.gmra.mxu0 %v795
    %v3216 = vpop.f32.mrf.mxu0
    %v3217 = vadd.f32 %v3198, %v3216
    %v3218 = vpop.f32.mrf.mxu0
    %v3219 = vadd.f32 %v3200, %v3218
    %3220 = vmatmul.bf16.gmra.mxu0 %v819
    %v3221 = vpop.f32.mrf.mxu0
    %v3222 = vadd.f32 %v3203, %v3221
    %v3223 = vpop.f32.mrf.mxu0
    %v3224 = vadd.f32 %v3205, %v3223
    %3225 = vdwg.mxu0
    %3226 = vmatpush.bf16.msra.mxu0 %v2403
    %3227 = vmatpush.bf16.msra.mxu0 %v2401
    %3228 = vmatpush.bf16.msra.mxu0 %v2399
    %3229 = vmatpush.bf16.msra.mxu0 %v2397
    %3230 = vmatpush.bf16.msra.mxu0 %v2395
    %3231 = vmatpush.bf16.msra.mxu0 %v2393
    %3232 = vmatpush.bf16.msra.mxu0 %v2391
    %3233 = vmatpush.bf16.msra.mxu0 %v2389
    %3234 = vmatmul.bf16.gmra.mxu0 %v796
    %v3235 = vpop.f32.mrf.mxu0
    %v3236 = vadd.f32 %v3217, %v3235
    %v3237 = vpop.f32.mrf.mxu0
    %v3238 = vadd.f32 %v3219, %v3237
    %3239 = vmatmul.bf16.gmra.mxu0 %v820
    %v3240 = vpop.f32.mrf.mxu0
    %v3241 = vadd.f32 %v3222, %v3240
    %v3242 = vpop.f32.mrf.mxu0
    %v3243 = vadd.f32 %v3224, %v3242
    %3244 = vdwg.mxu0
    %3245 = vmatpush.bf16.msra.mxu0 %v2036
    %3246 = vmatpush.bf16.msra.mxu0 %v2034
    %3247 = vmatpush.bf16.msra.mxu0 %v2032
    %3248 = vmatpush.bf16.msra.mxu0 %v2030
    %3249 = vmatpush.bf16.msra.mxu0 %v2028
    %3250 = vmatpush.bf16.msra.mxu0 %v2026
    %3251 = vmatpush.bf16.msra.mxu0 %v2024
    %3252 = vmatpush.bf16.msra.mxu0 %v2022
    %3253 = vmatmul.bf16.gmra.mxu0 %v773
    %v3254 = vpop.f32.mrf.mxu0
    %v3255 = vadd.f32 %v626, %v3254
    %v3256 = vpop.f32.mrf.mxu0
    %v3257 = vadd.f32 %v626, %v3256
    %3258 = vmatmul.bf16.gmra.mxu0 %v797
    %v3259 = vpop.f32.mrf.mxu0
    %v3260 = vadd.f32 %v626, %v3259
    %v3261 = vpop.f32.mrf.mxu0
    %v3262 = vadd.f32 %v626, %v3261
    %3263 = vdwg.mxu0
    %3264 = vmatpush.bf16.msra.mxu0 %v2052
    %3265 = vmatpush.bf16.msra.mxu0 %v2050
    %3266 = vmatpush.bf16.msra.mxu0 %v2048
    %3267 = vmatpush.bf16.msra.mxu0 %v2046
    %3268 = vmatpush.bf16.msra.mxu0 %v2044
    %3269 = vmatpush.bf16.msra.mxu0 %v2042
    %3270 = vmatpush.bf16.msra.mxu0 %v2040
    %3271 = vmatpush.bf16.msra.mxu0 %v2038
    %3272 = vmatmul.bf16.gmra.mxu0 %v774
    %v3273 = vpop.f32.mrf.mxu0
    %v3274 = vadd.f32 %v3255, %v3273
    %v3275 = vpop.f32.mrf.mxu0
    %v3276 = vadd.f32 %v3257, %v3275
    %3277 = vmatmul.bf16.gmra.mxu0 %v798
    %v3278 = vpop.f32.mrf.mxu0
    %v3279 = vadd.f32 %v3260, %v3278
    %v3280 = vpop.f32.mrf.mxu0
    %v3281 = vadd.f32 %v3262, %v3280
    %3282 = vdwg.mxu0
    %3283 = vmatpush.bf16.msra.mxu0 %v2068
    %3284 = vmatpush.bf16.msra.mxu0 %v2066
    %3285 = vmatpush.bf16.msra.mxu0 %v2064
    %3286 = vmatpush.bf16.msra.mxu0 %v2062
    %3287 = vmatpush.bf16.msra.mxu0 %v2060
    %3288 = vmatpush.bf16.msra.mxu0 %v2058
    %3289 = vmatpush.bf16.msra.mxu0 %v2056
    %3290 = vmatpush.bf16.msra.mxu0 %v2054
    %3291 = vmatmul.bf16.gmra.mxu0 %v775
    %v3292 = vpop.f32.mrf.mxu0
    %v3293 = vadd.f32 %v3274, %v3292
    %v3294 = vpop.f32.mrf.mxu0
    %v3295 = vadd.f32 %v3276, %v3294
    %3296 = vmatmul.bf16.gmra.mxu0 %v799
    %v3297 = vpop.f32.mrf.mxu0
    %v3298 = vadd.f32 %v3279, %v3297
    %v3299 = vpop.f32.mrf.mxu0
    %v3300 = vadd.f32 %v3281, %v3299
    %3301 = vdwg.mxu0
    %3302 = vmatpush.bf16.msra.mxu0 %v2084
    %3303 = vmatpush.bf16.msra.mxu0 %v2082
    %3304 = vmatpush.bf16.msra.mxu0 %v2080
    %3305 = vmatpush.bf16.msra.mxu0 %v2078
    %3306 = vmatpush.bf16.msra.mxu0 %v2076
    %3307 = vmatpush.bf16.msra.mxu0 %v2074
    %3308 = vmatpush.bf16.msra.mxu0 %v2072
    %3309 = vmatpush.bf16.msra.mxu0 %v2070
    %3310 = vmatmul.bf16.gmra.mxu0 %v776
    %v3311 = vpop.f32.mrf.mxu0
    %v3312 = vadd.f32 %v3293, %v3311
    %v3313 = vpop.f32.mrf.mxu0
    %v3314 = vadd.f32 %v3295, %v3313
    %3315 = vmatmul.bf16.gmra.mxu0 %v800
    %v3316 = vpop.f32.mrf.mxu0
    %v3317 = vadd.f32 %v3298, %v3316
    %v3318 = vpop.f32.mrf.mxu0
    %v3319 = vadd.f32 %v3300, %v3318
    %3320 = vdwg.mxu0
    %3321 = vmatpush.bf16.msra.mxu0 %v2100
    %3322 = vmatpush.bf16.msra.mxu0 %v2098
    %3323 = vmatpush.bf16.msra.mxu0 %v2096
    %3324 = vmatpush.bf16.msra.mxu0 %v2094
    %3325 = vmatpush.bf16.msra.mxu0 %v2092
    %3326 = vmatpush.bf16.msra.mxu0 %v2090
    %3327 = vmatpush.bf16.msra.mxu0 %v2088
    %3328 = vmatpush.bf16.msra.mxu0 %v2086
    %3329 = vmatmul.bf16.gmra.mxu0 %v777
    %v3330 = vpop.f32.mrf.mxu0
    %v3331 = vadd.f32 %v3312, %v3330
    %v3332 = vpop.f32.mrf.mxu0
    %v3333 = vadd.f32 %v3314, %v3332
    %3334 = vmatmul.bf16.gmra.mxu0 %v801
    %v3335 = vpop.f32.mrf.mxu0
    %v3336 = vadd.f32 %v3317, %v3335
    %v3337 = vpop.f32.mrf.mxu0
    %v3338 = vadd.f32 %v3319, %v3337
    %3339 = vdwg.mxu0
    %3340 = vmatpush.bf16.msra.mxu0 %v2116
    %3341 = vmatpush.bf16.msra.mxu0 %v2114
    %3342 = vmatpush.bf16.msra.mxu0 %v2112
    %3343 = vmatpush.bf16.msra.mxu0 %v2110
    %3344 = vmatpush.bf16.msra.mxu0 %v2108
    %3345 = vmatpush.bf16.msra.mxu0 %v2106
    %3346 = vmatpush.bf16.msra.mxu0 %v2104
    %3347 = vmatpush.bf16.msra.mxu0 %v2102
    %3348 = vmatmul.bf16.gmra.mxu0 %v778
    %v3349 = vpop.f32.mrf.mxu0
    %v3350 = vadd.f32 %v3331, %v3349
    %v3351 = vpop.f32.mrf.mxu0
    %v3352 = vadd.f32 %v3333, %v3351
    %3353 = vmatmul.bf16.gmra.mxu0 %v802
    %v3354 = vpop.f32.mrf.mxu0
    %v3355 = vadd.f32 %v3336, %v3354
    %v3356 = vpop.f32.mrf.mxu0
    %v3357 = vadd.f32 %v3338, %v3356
    %3358 = vdwg.mxu0
    %3359 = vmatpush.bf16.msra.mxu0 %v2132
    %3360 = vmatpush.bf16.msra.mxu0 %v2130
    %3361 = vmatpush.bf16.msra.mxu0 %v2128
    %3362 = vmatpush.bf16.msra.mxu0 %v2126
    %3363 = vmatpush.bf16.msra.mxu0 %v2124
    %3364 = vmatpush.bf16.msra.mxu0 %v2122
    %3365 = vmatpush.bf16.msra.mxu0 %v2120
    %3366 = vmatpush.bf16.msra.mxu0 %v2118
    %3367 = vmatmul.bf16.gmra.mxu0 %v779
    %v3368 = vpop.f32.mrf.mxu0
    %v3369 = vadd.f32 %v3350, %v3368
    %v3370 = vpop.f32.mrf.mxu0
    %v3371 = vadd.f32 %v3352, %v3370
    %3372 = vmatmul.bf16.gmra.mxu0 %v803
    %v3373 = vpop.f32.mrf.mxu0
    %v3374 = vadd.f32 %v3355, %v3373
    %v3375 = vpop.f32.mrf.mxu0
    %v3376 = vadd.f32 %v3357, %v3375
    %3377 = vdwg.mxu0
    %3378 = vmatpush.bf16.msra.mxu0 %v2148
    %3379 = vmatpush.bf16.msra.mxu0 %v2146
    %3380 = vmatpush.bf16.msra.mxu0 %v2144
    %3381 = vmatpush.bf16.msra.mxu0 %v2142
    %3382 = vmatpush.bf16.msra.mxu0 %v2140
    %3383 = vmatpush.bf16.msra.mxu0 %v2138
    %3384 = vmatpush.bf16.msra.mxu0 %v2136
    %3385 = vmatpush.bf16.msra.mxu0 %v2134
    %3386 = vmatmul.bf16.gmra.mxu0 %v780
    %v3387 = vpop.f32.mrf.mxu0
    %v3388 = vadd.f32 %v3369, %v3387
    %v3389 = vpop.f32.mrf.mxu0
    %v3390 = vadd.f32 %v3371, %v3389
    %3391 = vmatmul.bf16.gmra.mxu0 %v804
    %v3392 = vpop.f32.mrf.mxu0
    %v3393 = vadd.f32 %v3374, %v3392
    %v3394 = vpop.f32.mrf.mxu0
    %v3395 = vadd.f32 %v3376, %v3394
    %3396 = vdwg.mxu0
    %3397 = vmatpush.bf16.msra.mxu0 %v2164
    %3398 = vmatpush.bf16.msra.mxu0 %v2162
    %3399 = vmatpush.bf16.msra.mxu0 %v2160
    %3400 = vmatpush.bf16.msra.mxu0 %v2158
    %3401 = vmatpush.bf16.msra.mxu0 %v2156
    %3402 = vmatpush.bf16.msra.mxu0 %v2154
    %3403 = vmatpush.bf16.msra.mxu0 %v2152
    %3404 = vmatpush.bf16.msra.mxu0 %v2150
    %3405 = vmatmul.bf16.gmra.mxu0 %v781
    %v3406 = vpop.f32.mrf.mxu0
    %v3407 = vadd.f32 %v3388, %v3406
    %v3408 = vpop.f32.mrf.mxu0
    %v3409 = vadd.f32 %v3390, %v3408
    %3410 = vmatmul.bf16.gmra.mxu0 %v805
    %v3411 = vpop.f32.mrf.mxu0
    %v3412 = vadd.f32 %v3393, %v3411
    %v3413 = vpop.f32.mrf.mxu0
    %v3414 = vadd.f32 %v3395, %v3413
    %3415 = vdwg.mxu0
    %3416 = vmatpush.bf16.msra.mxu0 %v2180
    %3417 = vmatpush.bf16.msra.mxu0 %v2178
    %3418 = vmatpush.bf16.msra.mxu0 %v2176
    %3419 = vmatpush.bf16.msra.mxu0 %v2174
    %3420 = vmatpush.bf16.msra.mxu0 %v2172
    %3421 = vmatpush.bf16.msra.mxu0 %v2170
    %3422 = vmatpush.bf16.msra.mxu0 %v2168
    %3423 = vmatpush.bf16.msra.mxu0 %v2166
    %3424 = vmatmul.bf16.gmra.mxu0 %v782
    %v3425 = vpop.f32.mrf.mxu0
    %v3426 = vadd.f32 %v3407, %v3425
    %v3427 = vpop.f32.mrf.mxu0
    %v3428 = vadd.f32 %v3409, %v3427
    %3429 = vmatmul.bf16.gmra.mxu0 %v806
    %v3430 = vpop.f32.mrf.mxu0
    %v3431 = vadd.f32 %v3412, %v3430
    %v3432 = vpop.f32.mrf.mxu0
    %v3433 = vadd.f32 %v3414, %v3432
    %3434 = vdwg.mxu0
    %3435 = vmatpush.bf16.msra.mxu0 %v2196
    %3436 = vmatpush.bf16.msra.mxu0 %v2194
    %3437 = vmatpush.bf16.msra.mxu0 %v2192
    %3438 = vmatpush.bf16.msra.mxu0 %v2190
    %3439 = vmatpush.bf16.msra.mxu0 %v2188
    %3440 = vmatpush.bf16.msra.mxu0 %v2186
    %3441 = vmatpush.bf16.msra.mxu0 %v2184
    %3442 = vmatpush.bf16.msra.mxu0 %v2182
    %3443 = vmatmul.bf16.gmra.mxu0 %v783
    %v3444 = vpop.f32.mrf.mxu0
    %v3445 = vadd.f32 %v3426, %v3444
    %v3446 = vpop.f32.mrf.mxu0
    %v3447 = vadd.f32 %v3428, %v3446
    %3448 = vmatmul.bf16.gmra.mxu0 %v807
    %v3449 = vpop.f32.mrf.mxu0
    %v3450 = vadd.f32 %v3431, %v3449
    %v3451 = vpop.f32.mrf.mxu0
    %v3452 = vadd.f32 %v3433, %v3451
    %3453 = vdwg.mxu0
    %3454 = vmatpush.bf16.msra.mxu0 %v2212
    %3455 = vmatpush.bf16.msra.mxu0 %v2210
    %3456 = vmatpush.bf16.msra.mxu0 %v2208
    %3457 = vmatpush.bf16.msra.mxu0 %v2206
    %3458 = vmatpush.bf16.msra.mxu0 %v2204
    %3459 = vmatpush.bf16.msra.mxu0 %v2202
    %3460 = vmatpush.bf16.msra.mxu0 %v2200
    %3461 = vmatpush.bf16.msra.mxu0 %v2198
    %3462 = vmatmul.bf16.gmra.mxu0 %v784
    %v3463 = vpop.f32.mrf.mxu0
    %v3464 = vadd.f32 %v3445, %v3463
    %v3465 = vpop.f32.mrf.mxu0
    %v3466 = vadd.f32 %v3447, %v3465
    %3467 = vmatmul.bf16.gmra.mxu0 %v808
    %v3468 = vpop.f32.mrf.mxu0
    %v3469 = vadd.f32 %v3450, %v3468
    %v3470 = vpop.f32.mrf.mxu0
    %v3471 = vadd.f32 %v3452, %v3470
    %3472 = vdwg.mxu0
    %3473 = vmatpush.bf16.msra.mxu0 %v2228
    %3474 = vmatpush.bf16.msra.mxu0 %v2226
    %3475 = vmatpush.bf16.msra.mxu0 %v2224
    %3476 = vmatpush.bf16.msra.mxu0 %v2222
    %3477 = vmatpush.bf16.msra.mxu0 %v2220
    %3478 = vmatpush.bf16.msra.mxu0 %v2218
    %3479 = vmatpush.bf16.msra.mxu0 %v2216
    %3480 = vmatpush.bf16.msra.mxu0 %v2214
    %3481 = vmatmul.bf16.gmra.mxu0 %v785
    %v3482 = vpop.f32.mrf.mxu0
    %v3483 = vadd.f32 %v3464, %v3482
    %v3484 = vpop.f32.mrf.mxu0
    %v3485 = vadd.f32 %v3466, %v3484
    %3486 = vmatmul.bf16.gmra.mxu0 %v809
    %v3487 = vpop.f32.mrf.mxu0
    %v3488 = vadd.f32 %v3469, %v3487
    %v3489 = vpop.f32.mrf.mxu0
    %v3490 = vadd.f32 %v3471, %v3489
    %3491 = vdwg.mxu0
    %3492 = vmatpush.bf16.msra.mxu0 %v2244
    %3493 = vmatpush.bf16.msra.mxu0 %v2242
    %3494 = vmatpush.bf16.msra.mxu0 %v2240
    %3495 = vmatpush.bf16.msra.mxu0 %v2238
    %3496 = vmatpush.bf16.msra.mxu0 %v2236
    %3497 = vmatpush.bf16.msra.mxu0 %v2234
    %3498 = vmatpush.bf16.msra.mxu0 %v2232
    %3499 = vmatpush.bf16.msra.mxu0 %v2230
    %3500 = vmatmul.bf16.gmra.mxu0 %v786
    %v3501 = vpop.f32.mrf.mxu0
    %v3502 = vadd.f32 %v3483, %v3501
    %v3503 = vpop.f32.mrf.mxu0
    %v3504 = vadd.f32 %v3485, %v3503
    %3505 = vmatmul.bf16.gmra.mxu0 %v810
    %v3506 = vpop.f32.mrf.mxu0
    %v3507 = vadd.f32 %v3488, %v3506
    %v3508 = vpop.f32.mrf.mxu0
    %v3509 = vadd.f32 %v3490, %v3508
    %3510 = vdwg.mxu0
    %3511 = vmatpush.bf16.msra.mxu0 %v2260
    %3512 = vmatpush.bf16.msra.mxu0 %v2258
    %3513 = vmatpush.bf16.msra.mxu0 %v2256
    %3514 = vmatpush.bf16.msra.mxu0 %v2254
    %3515 = vmatpush.bf16.msra.mxu0 %v2252
    %3516 = vmatpush.bf16.msra.mxu0 %v2250
    %3517 = vmatpush.bf16.msra.mxu0 %v2248
    %3518 = vmatpush.bf16.msra.mxu0 %v2246
    %3519 = vmatmul.bf16.gmra.mxu0 %v787
    %v3520 = vpop.f32.mrf.mxu0
    %v3521 = vadd.f32 %v3502, %v3520
    %v3522 = vpop.f32.mrf.mxu0
    %v3523 = vadd.f32 %v3504, %v3522
    %3524 = vmatmul.bf16.gmra.mxu0 %v811
    %v3525 = vpop.f32.mrf.mxu0
    %v3526 = vadd.f32 %v3507, %v3525
    %v3527 = vpop.f32.mrf.mxu0
    %v3528 = vadd.f32 %v3509, %v3527
    %3529 = vdwg.mxu0
    %3530 = vmatpush.bf16.msra.mxu0 %v2276
    %3531 = vmatpush.bf16.msra.mxu0 %v2274
    %3532 = vmatpush.bf16.msra.mxu0 %v2272
    %3533 = vmatpush.bf16.msra.mxu0 %v2270
    %3534 = vmatpush.bf16.msra.mxu0 %v2268
    %3535 = vmatpush.bf16.msra.mxu0 %v2266
    %3536 = vmatpush.bf16.msra.mxu0 %v2264
    %3537 = vmatpush.bf16.msra.mxu0 %v2262
    %3538 = vmatmul.bf16.gmra.mxu0 %v788
    %v3539 = vpop.f32.mrf.mxu0
    %v3540 = vadd.f32 %v3521, %v3539
    %v3541 = vpop.f32.mrf.mxu0
    %v3542 = vadd.f32 %v3523, %v3541
    %3543 = vmatmul.bf16.gmra.mxu0 %v812
    %v3544 = vpop.f32.mrf.mxu0
    %v3545 = vadd.f32 %v3526, %v3544
    %v3546 = vpop.f32.mrf.mxu0
    %v3547 = vadd.f32 %v3528, %v3546
    %3548 = vdwg.mxu0
    %3549 = vmatpush.bf16.msra.mxu0 %v2292
    %3550 = vmatpush.bf16.msra.mxu0 %v2290
    %3551 = vmatpush.bf16.msra.mxu0 %v2288
    %3552 = vmatpush.bf16.msra.mxu0 %v2286
    %3553 = vmatpush.bf16.msra.mxu0 %v2284
    %3554 = vmatpush.bf16.msra.mxu0 %v2282
    %3555 = vmatpush.bf16.msra.mxu0 %v2280
    %3556 = vmatpush.bf16.msra.mxu0 %v2278
    %3557 = vmatmul.bf16.gmra.mxu0 %v789
    %v3558 = vpop.f32.mrf.mxu0
    %v3559 = vadd.f32 %v3540, %v3558
    %v3560 = vpop.f32.mrf.mxu0
    %v3561 = vadd.f32 %v3542, %v3560
    %3562 = vmatmul.bf16.gmra.mxu0 %v813
    %v3563 = vpop.f32.mrf.mxu0
    %v3564 = vadd.f32 %v3545, %v3563
    %v3565 = vpop.f32.mrf.mxu0
    %v3566 = vadd.f32 %v3547, %v3565
    %3567 = vdwg.mxu0
    %3568 = vmatpush.bf16.msra.mxu0 %v2308
    %3569 = vmatpush.bf16.msra.mxu0 %v2306
    %3570 = vmatpush.bf16.msra.mxu0 %v2304
    %3571 = vmatpush.bf16.msra.mxu0 %v2302
    %3572 = vmatpush.bf16.msra.mxu0 %v2300
    %3573 = vmatpush.bf16.msra.mxu0 %v2298
    %3574 = vmatpush.bf16.msra.mxu0 %v2296
    %3575 = vmatpush.bf16.msra.mxu0 %v2294
    %3576 = vmatmul.bf16.gmra.mxu0 %v790
    %v3577 = vpop.f32.mrf.mxu0
    %v3578 = vadd.f32 %v3559, %v3577
    %v3579 = vpop.f32.mrf.mxu0
    %v3580 = vadd.f32 %v3561, %v3579
    %3581 = vmatmul.bf16.gmra.mxu0 %v814
    %v3582 = vpop.f32.mrf.mxu0
    %v3583 = vadd.f32 %v3564, %v3582
    %v3584 = vpop.f32.mrf.mxu0
    %v3585 = vadd.f32 %v3566, %v3584
    %3586 = vdwg.mxu0
    %3587 = vmatpush.bf16.msra.mxu0 %v2324
    %3588 = vmatpush.bf16.msra.mxu0 %v2322
    %3589 = vmatpush.bf16.msra.mxu0 %v2320
    %3590 = vmatpush.bf16.msra.mxu0 %v2318
    %3591 = vmatpush.bf16.msra.mxu0 %v2316
    %3592 = vmatpush.bf16.msra.mxu0 %v2314
    %3593 = vmatpush.bf16.msra.mxu0 %v2312
    %3594 = vmatpush.bf16.msra.mxu0 %v2310
    %3595 = vmatmul.bf16.gmra.mxu0 %v791
    %v3596 = vpop.f32.mrf.mxu0
    %v3597 = vadd.f32 %v3578, %v3596
    %v3598 = vpop.f32.mrf.mxu0
    %v3599 = vadd.f32 %v3580, %v3598
    %3600 = vmatmul.bf16.gmra.mxu0 %v815
    %v3601 = vpop.f32.mrf.mxu0
    %v3602 = vadd.f32 %v3583, %v3601
    %v3603 = vpop.f32.mrf.mxu0
    %v3604 = vadd.f32 %v3585, %v3603
    %3605 = vdwg.mxu0
    %3606 = vmatpush.bf16.msra.mxu0 %v2340
    %3607 = vmatpush.bf16.msra.mxu0 %v2338
    %3608 = vmatpush.bf16.msra.mxu0 %v2336
    %3609 = vmatpush.bf16.msra.mxu0 %v2334
    %3610 = vmatpush.bf16.msra.mxu0 %v2332
    %3611 = vmatpush.bf16.msra.mxu0 %v2330
    %3612 = vmatpush.bf16.msra.mxu0 %v2328
    %3613 = vmatpush.bf16.msra.mxu0 %v2326
    %3614 = vmatmul.bf16.gmra.mxu0 %v792
    %v3615 = vpop.f32.mrf.mxu0
    %v3616 = vadd.f32 %v3597, %v3615
    %v3617 = vpop.f32.mrf.mxu0
    %v3618 = vadd.f32 %v3599, %v3617
    %3619 = vmatmul.bf16.gmra.mxu0 %v816
    %v3620 = vpop.f32.mrf.mxu0
    %v3621 = vadd.f32 %v3602, %v3620
    %v3622 = vpop.f32.mrf.mxu0
    %v3623 = vadd.f32 %v3604, %v3622
    %3624 = vdwg.mxu0
    %3625 = vmatpush.bf16.msra.mxu0 %v2356
    %3626 = vmatpush.bf16.msra.mxu0 %v2354
    %3627 = vmatpush.bf16.msra.mxu0 %v2352
    %3628 = vmatpush.bf16.msra.mxu0 %v2350
    %3629 = vmatpush.bf16.msra.mxu0 %v2348
    %3630 = vmatpush.bf16.msra.mxu0 %v2346
    %3631 = vmatpush.bf16.msra.mxu0 %v2344
    %3632 = vmatpush.bf16.msra.mxu0 %v2342
    %3633 = vmatmul.bf16.gmra.mxu0 %v793
    %v3634 = vpop.f32.mrf.mxu0
    %v3635 = vadd.f32 %v3616, %v3634
    %v3636 = vpop.f32.mrf.mxu0
    %v3637 = vadd.f32 %v3618, %v3636
    %3638 = vmatmul.bf16.gmra.mxu0 %v817
    %v3639 = vpop.f32.mrf.mxu0
    %v3640 = vadd.f32 %v3621, %v3639
    %v3641 = vpop.f32.mrf.mxu0
    %v3642 = vadd.f32 %v3623, %v3641
    %3643 = vdwg.mxu0
    %3644 = vmatpush.bf16.msra.mxu0 %v2372
    %3645 = vmatpush.bf16.msra.mxu0 %v2370
    %3646 = vmatpush.bf16.msra.mxu0 %v2368
    %3647 = vmatpush.bf16.msra.mxu0 %v2366
    %3648 = vmatpush.bf16.msra.mxu0 %v2364
    %3649 = vmatpush.bf16.msra.mxu0 %v2362
    %3650 = vmatpush.bf16.msra.mxu0 %v2360
    %3651 = vmatpush.bf16.msra.mxu0 %v2358
    %3652 = vmatmul.bf16.gmra.mxu0 %v794
    %v3653 = vpop.f32.mrf.mxu0
    %v3654 = vadd.f32 %v3635, %v3653
    %v3655 = vpop.f32.mrf.mxu0
    %v3656 = vadd.f32 %v3637, %v3655
    %3657 = vmatmul.bf16.gmra.mxu0 %v818
    %v3658 = vpop.f32.mrf.mxu0
    %v3659 = vadd.f32 %v3640, %v3658
    %v3660 = vpop.f32.mrf.mxu0
    %v3661 = vadd.f32 %v3642, %v3660
    %3662 = vdwg.mxu0
    %3663 = vmatpush.bf16.msra.mxu0 %v2388
    %3664 = vmatpush.bf16.msra.mxu0 %v2386
    %3665 = vmatpush.bf16.msra.mxu0 %v2384
    %3666 = vmatpush.bf16.msra.mxu0 %v2382
    %3667 = vmatpush.bf16.msra.mxu0 %v2380
    %3668 = vmatpush.bf16.msra.mxu0 %v2378
    %3669 = vmatpush.bf16.msra.mxu0 %v2376
    %3670 = vmatpush.bf16.msra.mxu0 %v2374
    %3671 = vmatmul.bf16.gmra.mxu0 %v795
    %v3672 = vpop.f32.mrf.mxu0
    %v3673 = vadd.f32 %v3654, %v3672
    %v3674 = vpop.f32.mrf.mxu0
    %v3675 = vadd.f32 %v3656, %v3674
    %3676 = vmatmul.bf16.gmra.mxu0 %v819
    %v3677 = vpop.f32.mrf.mxu0
    %v3678 = vadd.f32 %v3659, %v3677
    %v3679 = vpop.f32.mrf.mxu0
    %v3680 = vadd.f32 %v3661, %v3679
    %3681 = vdwg.mxu0
    %3682 = vmatpush.bf16.msra.mxu0 %v2404
    %3683 = vmatpush.bf16.msra.mxu0 %v2402
    %3684 = vmatpush.bf16.msra.mxu0 %v2400
    %3685 = vmatpush.bf16.msra.mxu0 %v2398
    %3686 = vmatpush.bf16.msra.mxu0 %v2396
    %3687 = vmatpush.bf16.msra.mxu0 %v2394
    %3688 = vmatpush.bf16.msra.mxu0 %v2392
    %3689 = vmatpush.bf16.msra.mxu0 %v2390
    %3690 = vmatmul.bf16.gmra.mxu0 %v796
    %v3691 = vpop.f32.mrf.mxu0
    %v3692 = vadd.f32 %v3673, %v3691
    %v3693 = vpop.f32.mrf.mxu0
    %v3694 = vadd.f32 %v3675, %v3693
    %3695 = vmatmul.bf16.gmra.mxu0 %v820
    %v3696 = vpop.f32.mrf.mxu0
    %v3697 = vadd.f32 %v3678, %v3696
    %v3698 = vpop.f32.mrf.mxu0
    %v3699 = vadd.f32 %v3680, %v3698
    %3700 = vdwg.mxu0
    %v3701 = vld [vmem:[%s1] sm:$0xff]
    %v3702 = vld [vmem:[%s1 + $0x8] sm:$0xff]
    %v3703 = vld [vmem:[%s1 + $0x10] sm:$0xff]
    %v3704 = vld [vmem:[%s1 + $0x18] sm:$0xff]
    %3706 = vset.pattern.permute.xlu0 0
    %3707 = vperm.xlu0 %3706, %v3701
    %v3708 = vpop.permute.xlu0 %3707
    %3711 = vset.pattern.permute.xlu0 0
    %3712 = vperm.xlu0 %3711, %v3702
    %v3713 = vpop.permute.xlu0 %3712
    %3716 = vset.pattern.permute.xlu0 0
    %3717 = vperm.xlu0 %3716, %v3703
    %v3718 = vpop.permute.xlu0 %3717
    %3721 = vset.pattern.permute.xlu0 0
    %3722 = vperm.xlu0 %3721, %v3704
    %v3723 = vpop.permute.xlu0 %3722
    %v3725 = vmul.f32 %v3236, %v3708
    %v3726 = vmul.f32 %v3692, %v3708
    %v3727 = vmul.f32 %v3238, %v3713
    %v3728 = vmul.f32 %v3694, %v3713
    %v3729 = vmul.f32 %v3241, %v3718
    %v3730 = vmul.f32 %v3697, %v3718
    %v3731 = vmul.f32 %v3243, %v3723
    %v3732 = vmul.f32 %v3699, %v3723
    %v3733 = vadd.f32 %v3725, %v619
    %v3734 = vadd.f32 %v3726, %v620
    %v3735 = vadd.f32 %v3727, %v621
    %v3736 = vadd.f32 %v3728, %v622
    %v3737 = vadd.f32 %v3729, %v619
    %v3738 = vadd.f32 %v3730, %v620
    %v3739 = vadd.f32 %v3731, %v621
    %v3740 = vadd.f32 %v3732, %v622
    %v3741 = vpack.c.bf16 %v3735, %v3733
    %v3742 = vpack.c.bf16 %v3736, %v3734
    %v3743 = vpack.c.bf16 %v3739, %v3737
    %v3744 = vpack.c.bf16 %v3740, %v3738
    %v3745 = vld [vmem:[#allocation10] sm:$0xff]
    %v3746 = vld [vmem:[#allocation10 + $0x8] sm:$0xff]
    %v3747 = vld [vmem:[#allocation10 + $0x10] sm:$0xff]
    %v3748 = vld [vmem:[#allocation10 + $0x18] sm:$0xff]
    %v3749 = vld [vmem:[#allocation10 + $0x20] sm:$0xff]
    %v3750 = vld [vmem:[#allocation10 + $0x28] sm:$0xff]
    %v3751 = vld [vmem:[#allocation10 + $0x30] sm:$0xff]
    %v3752 = vld [vmem:[#allocation10 + $0x38] sm:$0xff]
    %v3753 = vld [vmem:[#allocation10 + $0x40] sm:$0xff]
    %v3754 = vld [vmem:[#allocation10 + $0x48] sm:$0xff]
    %v3755 = vld [vmem:[#allocation10 + $0x50] sm:$0xff]
    %v3756 = vld [vmem:[#allocation10 + $0x58] sm:$0xff]
    %v3757 = vld [vmem:[#allocation10 + $0x60] sm:$0xff]
    %v3758 = vld [vmem:[#allocation10 + $0x68] sm:$0xff]
    %v3759 = vld [vmem:[#allocation10 + $0x70] sm:$0xff]
    %v3760 = vld [vmem:[#allocation10 + $0x78] sm:$0xff]
    %v3761 = vld [vmem:[#allocation10 + $0x80] sm:$0xff]
    %v3762 = vld [vmem:[#allocation10 + $0x88] sm:$0xff]
    %v3763 = vld [vmem:[#allocation10 + $0x90] sm:$0xff]
    %v3764 = vld [vmem:[#allocation10 + $0x98] sm:$0xff]
    %v3765 = vld [vmem:[#allocation10 + $0xa0] sm:$0xff]
    %v3766 = vld [vmem:[#allocation10 + $0xa8] sm:$0xff]
    %v3767 = vld [vmem:[#allocation10 + $0xb0] sm:$0xff]
    %v3768 = vld [vmem:[#allocation10 + $0xb8] sm:$0xff]
    %v3769 = vld [vmem:[#allocation10 + $0xc0] sm:$0xff]
    %v3770 = vld [vmem:[#allocation10 + $0xc8] sm:$0xff]
    %v3771 = vld [vmem:[#allocation10 + $0xd0] sm:$0xff]
    %v3772 = vld [vmem:[#allocation10 + $0xd8] sm:$0xff]
    %v3773 = vld [vmem:[#allocation10 + $0xe0] sm:$0xff]
    %v3774 = vld [vmem:[#allocation10 + $0xe8] sm:$0xff]
    %v3775 = vld [vmem:[#allocation10 + $0xf0] sm:$0xff]
    %v3776 = vld [vmem:[#allocation10 + $0xf8] sm:$0xff]
    %v3777 = vld [vmem:[#allocation11] sm:$0x3]
    %v3779 = vperm.slane %v3777, 0
    %v3780 = vperm.slane %v3777, 1
    %v3815 = vunpack.c.l.b16 %v3745
    %v3816 = vunpack.c.h.b16 %v3745
    %v3817 = vunpack.c.l.b16 %v3746
    %v3818 = vunpack.c.h.b16 %v3746
    %v3819 = vunpack.c.l.b16 %v3747
    %v3820 = vunpack.c.h.b16 %v3747
    %v3821 = vunpack.c.l.b16 %v3748
    %v3822 = vunpack.c.h.b16 %v3748
    %v3823 = vunpack.c.l.b16 %v3749
    %v3824 = vunpack.c.h.b16 %v3749
    %v3825 = vunpack.c.l.b16 %v3750
    %v3826 = vunpack.c.h.b16 %v3750
    %v3827 = vunpack.c.l.b16 %v3751
    %v3828 = vunpack.c.h.b16 %v3751
    %v3829 = vunpack.c.l.b16 %v3752
    %v3830 = vunpack.c.h.b16 %v3752
    %v3831 = vunpack.c.l.b16 %v3753
    %v3832 = vunpack.c.h.b16 %v3753
    %v3833 = vunpack.c.l.b16 %v3754
    %v3834 = vunpack.c.h.b16 %v3754
    %v3835 = vunpack.c.l.b16 %v3755
    %v3836 = vunpack.c.h.b16 %v3755
    %v3837 = vunpack.c.l.b16 %v3756
    %v3838 = vunpack.c.h.b16 %v3756
    %v3839 = vunpack.c.l.b16 %v3757
    %v3840 = vunpack.c.h.b16 %v3757
    %v3841 = vunpack.c.l.b16 %v3758
    %v3842 = vunpack.c.h.b16 %v3758
    %v3843 = vunpack.c.l.b16 %v3759
    %v3844 = vunpack.c.h.b16 %v3759
    %v3845 = vunpack.c.l.b16 %v3760
    %v3846 = vunpack.c.h.b16 %v3760
    %v3847 = vunpack.c.l.b16 %v3761
    %v3848 = vunpack.c.h.b16 %v3761
    %v3849 = vunpack.c.l.b16 %v3762
    %v3850 = vunpack.c.h.b16 %v3762
    %v3851 = vunpack.c.l.b16 %v3763
    %v3852 = vunpack.c.h.b16 %v3763
    %v3853 = vunpack.c.l.b16 %v3764
    %v3854 = vunpack.c.h.b16 %v3764
    %v3855 = vunpack.c.l.b16 %v3765
    %v3856 = vunpack.c.h.b16 %v3765
    %v3857 = vunpack.c.l.b16 %v3766
    %v3858 = vunpack.c.h.b16 %v3766
    %v3859 = vunpack.c.l.b16 %v3767
    %v3860 = vunpack.c.h.b16 %v3767
    %v3861 = vunpack.c.l.b16 %v3768
    %v3862 = vunpack.c.h.b16 %v3768
    %v3863 = vunpack.c.l.b16 %v3769
    %v3864 = vunpack.c.h.b16 %v3769
    %v3865 = vunpack.c.l.b16 %v3770
    %v3866 = vunpack.c.h.b16 %v3770
    %v3867 = vunpack.c.l.b16 %v3771
    %v3868 = vunpack.c.h.b16 %v3771
    %v3869 = vunpack.c.l.b16 %v3772
    %v3870 = vunpack.c.h.b16 %v3772
    %v3871 = vunpack.c.l.b16 %v3773
    %v3872 = vunpack.c.h.b16 %v3773
    %v3873 = vunpack.c.l.b16 %v3774
    %v3874 = vunpack.c.h.b16 %v3774
    %v3875 = vunpack.c.l.b16 %v3775
    %v3876 = vunpack.c.h.b16 %v3775
    %v3877 = vunpack.c.l.b16 %v3776
    %v3878 = vunpack.c.h.b16 %v3776
    %v3879 = vpack.c.b16 %v3817, %v3815
    %v3880 = vpack.c.b16 %v3818, %v3816
    %v3881 = vpack.c.b16 %v3821, %v3819
    %v3882 = vpack.c.b16 %v3822, %v3820
    %v3883 = vpack.c.b16 %v3825, %v3823
    %v3884 = vpack.c.b16 %v3826, %v3824
    %v3885 = vpack.c.b16 %v3829, %v3827
    %v3886 = vpack.c.b16 %v3830, %v3828
    %v3887 = vpack.c.b16 %v3833, %v3831
    %v3888 = vpack.c.b16 %v3834, %v3832
    %v3889 = vpack.c.b16 %v3837, %v3835
    %v3890 = vpack.c.b16 %v3838, %v3836
    %v3891 = vpack.c.b16 %v3841, %v3839
    %v3892 = vpack.c.b16 %v3842, %v3840
    %v3893 = vpack.c.b16 %v3845, %v3843
    %v3894 = vpack.c.b16 %v3846, %v3844
    %v3895 = vpack.c.b16 %v3849, %v3847
    %v3896 = vpack.c.b16 %v3850, %v3848
    %v3897 = vpack.c.b16 %v3853, %v3851
    %v3898 = vpack.c.b16 %v3854, %v3852
    %v3899 = vpack.c.b16 %v3857, %v3855
    %v3900 = vpack.c.b16 %v3858, %v3856
    %v3901 = vpack.c.b16 %v3861, %v3859
    %v3902 = vpack.c.b16 %v3862, %v3860
    %v3903 = vpack.c.b16 %v3865, %v3863
    %v3904 = vpack.c.b16 %v3866, %v3864
    %v3905 = vpack.c.b16 %v3869, %v3867
    %v3906 = vpack.c.b16 %v3870, %v3868
    %v3907 = vpack.c.b16 %v3873, %v3871
    %v3908 = vpack.c.b16 %v3874, %v3872
    %v3909 = vpack.c.b16 %v3877, %v3875
    %v3910 = vpack.c.b16 %v3878, %v3876
    %3943 = vmatpush.bf16.msra.mxu0 %v3893
    %3944 = vmatpush.bf16.msra.mxu0 %v3891
    %3945 = vmatpush.bf16.msra.mxu0 %v3889
    %3946 = vmatpush.bf16.msra.mxu0 %v3887
    %3947 = vmatpush.bf16.msra.mxu0 %v3885
    %3948 = vmatpush.bf16.msra.mxu0 %v3883
    %3949 = vmatpush.bf16.msra.mxu0 %v3881
    %3950 = vmatpush.bf16.msra.mxu0 %v3879
    %3951 = vmatmul.bf16.gmra.mxu0 %v3741
    %v3952 = vpop.f32.mrf.mxu0
    %v3953 = vadd.f32 %v3779, %v3952
    %v3954 = vpop.f32.mrf.mxu0
    %v3955 = vadd.f32 %v3779, %v3954
    %3956 = vmatmul.bf16.gmra.mxu0 %v3743
    %v3957 = vpop.f32.mrf.mxu0
    %v3958 = vadd.f32 %v3779, %v3957
    %v3959 = vpop.f32.mrf.mxu0
    %v3960 = vadd.f32 %v3779, %v3959
    %3961 = vdwg.mxu0
    %3962 = vmatpush.bf16.msra.mxu0 %v3909
    %3963 = vmatpush.bf16.msra.mxu0 %v3907
    %3964 = vmatpush.bf16.msra.mxu0 %v3905
    %3965 = vmatpush.bf16.msra.mxu0 %v3903
    %3966 = vmatpush.bf16.msra.mxu0 %v3901
    %3967 = vmatpush.bf16.msra.mxu0 %v3899
    %3968 = vmatpush.bf16.msra.mxu0 %v3897
    %3969 = vmatpush.bf16.msra.mxu0 %v3895
    %3970 = vmatmul.bf16.gmra.mxu0 %v3742
    %v3971 = vpop.f32.mrf.mxu0
    %v3972 = vadd.f32 %v3953, %v3971
    %v3973 = vpop.f32.mrf.mxu0
    %v3974 = vadd.f32 %v3955, %v3973
    %3975 = vmatmul.bf16.gmra.mxu0 %v3744
    %v3976 = vpop.f32.mrf.mxu0
    %v3977 = vadd.f32 %v3958, %v3976
    %v3978 = vpop.f32.mrf.mxu0
    %v3979 = vadd.f32 %v3960, %v3978
    %3980 = vdwg.mxu0
    %3981 = vmatpush.bf16.msra.mxu0 %v3894
    %3982 = vmatpush.bf16.msra.mxu0 %v3892
    %3983 = vmatpush.bf16.msra.mxu0 %v3890
    %3984 = vmatpush.bf16.msra.mxu0 %v3888
    %3985 = vmatpush.bf16.msra.mxu0 %v3886
    %3986 = vmatpush.bf16.msra.mxu0 %v3884
    %3987 = vmatpush.bf16.msra.mxu0 %v3882
    %3988 = vmatpush.bf16.msra.mxu0 %v3880
    %3989 = vmatmul.bf16.gmra.mxu0 %v3741
    %v3990 = vpop.f32.mrf.mxu0
    %v3991 = vadd.f32 %v3780, %v3990
    %v3992 = vpop.f32.mrf.mxu0
    %v3993 = vadd.f32 %v3780, %v3992
    %3994 = vmatmul.bf16.gmra.mxu0 %v3743
    %v3995 = vpop.f32.mrf.mxu0
    %v3996 = vadd.f32 %v3780, %v3995
    %v3997 = vpop.f32.mrf.mxu0
    %v3998 = vadd.f32 %v3780, %v3997
    %3999 = vdwg.mxu0
    %4000 = vmatpush.bf16.msra.mxu0 %v3910
    %4001 = vmatpush.bf16.msra.mxu0 %v3908
    %4002 = vmatpush.bf16.msra.mxu0 %v3906
    %4003 = vmatpush.bf16.msra.mxu0 %v3904
    %4004 = vmatpush.bf16.msra.mxu0 %v3902
    %4005 = vmatpush.bf16.msra.mxu0 %v3900
    %4006 = vmatpush.bf16.msra.mxu0 %v3898
    %4007 = vmatpush.bf16.msra.mxu0 %v3896
    %4008 = vmatmul.bf16.gmra.mxu0 %v3742
    %v4009 = vpop.f32.mrf.mxu0
    %v4010 = vadd.f32 %v3991, %v4009
    %v4011 = vpop.f32.mrf.mxu0
    %v4012 = vadd.f32 %v3993, %v4011
    %4013 = vmatmul.bf16.gmra.mxu0 %v3744
    %v4014 = vpop.f32.mrf.mxu0
    %v4015 = vadd.f32 %v3996, %v4014
    %v4016 = vpop.f32.mrf.mxu0
    %v4017 = vadd.f32 %v3998, %v4016
    %4018 = vdwg.mxu0
    %v4019 = vxor.u32 %v3972, 2147483648
    %v4020 = vxor.u32 %v4010, 2147483648
    %v4021 = vxor.u32 %v3974, 2147483648
    %v4022 = vxor.u32 %v4012, 2147483648
    %v4023 = vxor.u32 %v3977, 2147483648
    %v4024 = vxor.u32 %v4015, 2147483648
    %v4025 = vxor.u32 %v3979, 2147483648
    %v4026 = vxor.u32 %v4017, 2147483648
    %v4027 = vmul.f32 %v4019, 1.442695
    %v4028 = vpow.pop %v4027
    %v4029 = vmul.f32 %v4020, 1.442695
    %v4030 = vpow.pop %v4029
    %v4031 = vmul.f32 %v4021, 1.442695
    %v4032 = vpow.pop %v4031
    %v4033 = vmul.f32 %v4022, 1.442695
    %v4034 = vpow.pop %v4033
    %v4035 = vmul.f32 %v4023, 1.442695
    %v4036 = vpow.pop %v4035
    %v4037 = vmul.f32 %v4024, 1.442695
    %v4038 = vpow.pop %v4037
    %v4039 = vmul.f32 %v4025, 1.442695
    %v4040 = vpow.pop %v4039
    %v4041 = vmul.f32 %v4026, 1.442695
    %v4042 = vpow.pop %v4041
    %v4043 = vadd.f32 %v4028, 1.0
    %v4044 = vadd.f32 %v4030, 1.0
    %v4045 = vadd.f32 %v4032, 1.0
    %v4046 = vadd.f32 %v4034, 1.0
    %v4047 = vadd.f32 %v4036, 1.0
    %v4048 = vadd.f32 %v4038, 1.0
    %v4049 = vadd.f32 %v4040, 1.0
    %v4050 = vadd.f32 %v4042, 1.0
    %v4051 = vrcp.pop %v4043
    %v4052 = vmul.f32 %v4043, %v4051
    %v4053 = vsub.f32 1.0, %v4052
    %v4054 = vmul.f32 %v4051, %v4053
    %v4055 = vadd.f32 %v4051, %v4054
    %vm4056 = vweird.f32 %v4043
    %vm4057 = vweird.f32 %v4051
    %vm4058 = vmor %vm4056, %vm4057
    %v4059 = vsel %vm4058, %v4051, %v4055
    %v4060 = vand.u32 2147483647, %v4043
    %vm4061 = vcmp.eq.f32.partialorder %v4060, 8.507059e+37
    %v4062 = vand.u32 %v4043, 2147483648
    %v4063 = vor.u32 1.1754944e-38, %v4062
    %v4064 = vsel %vm4061, %v4063, %v4059
    %v4065 = vmul.f32 1.0, %v4064
    %v4066 = vrcp.pop %v4044
    %v4067 = vmul.f32 %v4044, %v4066
    %v4068 = vsub.f32 1.0, %v4067
    %v4069 = vmul.f32 %v4066, %v4068
    %v4070 = vadd.f32 %v4066, %v4069
    %vm4071 = vweird.f32 %v4044
    %vm4072 = vweird.f32 %v4066
    %vm4073 = vmor %vm4071, %vm4072
    %v4074 = vsel %vm4073, %v4066, %v4070
    %v4075 = vand.u32 2147483647, %v4044
    %vm4076 = vcmp.eq.f32.partialorder %v4075, 8.507059e+37
    %v4077 = vand.u32 %v4044, 2147483648
    %v4078 = vor.u32 1.1754944e-38, %v4077
    %v4079 = vsel %vm4076, %v4078, %v4074
    %v4080 = vmul.f32 1.0, %v4079
    %v4081 = vrcp.pop %v4045
    %v4082 = vmul.f32 %v4045, %v4081
    %v4083 = vsub.f32 1.0, %v4082
    %v4084 = vmul.f32 %v4081, %v4083
    %v4085 = vadd.f32 %v4081, %v4084
    %vm4086 = vweird.f32 %v4045
    %vm4087 = vweird.f32 %v4081
    %vm4088 = vmor %vm4086, %vm4087
    %v4089 = vsel %vm4088, %v4081, %v4085
    %v4090 = vand.u32 2147483647, %v4045
    %vm4091 = vcmp.eq.f32.partialorder %v4090, 8.507059e+37
    %v4092 = vand.u32 %v4045, 2147483648
    %v4093 = vor.u32 1.1754944e-38, %v4092
    %v4094 = vsel %vm4091, %v4093, %v4089
    %v4095 = vmul.f32 1.0, %v4094
    %v4096 = vrcp.pop %v4046
    %v4097 = vmul.f32 %v4046, %v4096
    %v4098 = vsub.f32 1.0, %v4097
    %v4099 = vmul.f32 %v4096, %v4098
    %v4100 = vadd.f32 %v4096, %v4099
    %vm4101 = vweird.f32 %v4046
    %vm4102 = vweird.f32 %v4096
    %vm4103 = vmor %vm4101, %vm4102
    %v4104 = vsel %vm4103, %v4096, %v4100
    %v4105 = vand.u32 2147483647, %v4046
    %vm4106 = vcmp.eq.f32.partialorder %v4105, 8.507059e+37
    %v4107 = vand.u32 %v4046, 2147483648
    %v4108 = vor.u32 1.1754944e-38, %v4107
    %v4109 = vsel %vm4106, %v4108, %v4104
    %v4110 = vmul.f32 1.0, %v4109
    %v4111 = vrcp.pop %v4047
    %v4112 = vmul.f32 %v4047, %v4111
    %v4113 = vsub.f32 1.0, %v4112
    %v4114 = vmul.f32 %v4111, %v4113
    %v4115 = vadd.f32 %v4111, %v4114
    %vm4116 = vweird.f32 %v4047
    %vm4117 = vweird.f32 %v4111
    %vm4118 = vmor %vm4116, %vm4117
    %v4119 = vsel %vm4118, %v4111, %v4115
    %v4120 = vand.u32 2147483647, %v4047
    %vm4121 = vcmp.eq.f32.partialorder %v4120, 8.507059e+37
    %v4122 = vand.u32 %v4047, 2147483648
    %v4123 = vor.u32 1.1754944e-38, %v4122
    %v4124 = vsel %vm4121, %v4123, %v4119
    %v4125 = vmul.f32 1.0, %v4124
    %v4126 = vrcp.pop %v4048
    %v4127 = vmul.f32 %v4048, %v4126
    %v4128 = vsub.f32 1.0, %v4127
    %v4129 = vmul.f32 %v4126, %v4128
    %v4130 = vadd.f32 %v4126, %v4129
    %vm4131 = vweird.f32 %v4048
    %vm4132 = vweird.f32 %v4126
    %vm4133 = vmor %vm4131, %vm4132
    %v4134 = vsel %vm4133, %v4126, %v4130
    %v4135 = vand.u32 2147483647, %v4048
    %vm4136 = vcmp.eq.f32.partialorder %v4135, 8.507059e+37
    %v4137 = vand.u32 %v4048, 2147483648
    %v4138 = vor.u32 1.1754944e-38, %v4137
    %v4139 = vsel %vm4136, %v4138, %v4134
    %v4140 = vmul.f32 1.0, %v4139
    %v4141 = vrcp.pop %v4049
    %v4142 = vmul.f32 %v4049, %v4141
    %v4143 = vsub.f32 1.0, %v4142
    %v4144 = vmul.f32 %v4141, %v4143
    %v4145 = vadd.f32 %v4141, %v4144
    %vm4146 = vweird.f32 %v4049
    %vm4147 = vweird.f32 %v4141
    %vm4148 = vmor %vm4146, %vm4147
    %v4149 = vsel %vm4148, %v4141, %v4145
    %v4150 = vand.u32 2147483647, %v4049
    %vm4151 = vcmp.eq.f32.partialorder %v4150, 8.507059e+37
    %v4152 = vand.u32 %v4049, 2147483648
    %v4153 = vor.u32 1.1754944e-38, %v4152
    %v4154 = vsel %vm4151, %v4153, %v4149
    %v4155 = vmul.f32 1.0, %v4154
    %v4156 = vrcp.pop %v4050
    %v4157 = vmul.f32 %v4050, %v4156
    %v4158 = vsub.f32 1.0, %v4157
    %v4159 = vmul.f32 %v4156, %v4158
    %v4160 = vadd.f32 %v4156, %v4159
    %vm4161 = vweird.f32 %v4050
    %vm4162 = vweird.f32 %v4156
    %vm4163 = vmor %vm4161, %vm4162
    %v4164 = vsel %vm4163, %v4156, %v4160
    %v4165 = vand.u32 2147483647, %v4050
    %vm4166 = vcmp.eq.f32.partialorder %v4165, 8.507059e+37
    %v4167 = vand.u32 %v4050, 2147483648
    %v4168 = vor.u32 1.1754944e-38, %v4167
    %v4169 = vsel %vm4166, %v4168, %v4164
    %v4170 = vmul.f32 1.0, %v4169
    %v4171 = vmul.f32 %v3972, %v4065
    %v4172 = vmul.f32 %v4010, %v4080
    %v4173 = vmul.f32 %v3974, %v4095
    %v4174 = vmul.f32 %v4012, %v4110
    %v4175 = vmul.f32 %v3977, %v4125
    %v4176 = vmul.f32 %v4015, %v4140
    %v4177 = vmul.f32 %v3979, %v4155
    %v4178 = vmul.f32 %v4017, %v4170
    %v4179 = vpack.c.bf16 %v4173, %v4171
    %v4180 = vpack.c.bf16 %v4174, %v4172
    %v4181 = vpack.c.bf16 %v4177, %v4175
    %v4182 = vpack.c.bf16 %v4178, %v4176
    %v4183 = vld [vmem:[#allocation13] sm:$0xff]
    %v4184 = vld [vmem:[#allocation13 + $0x8] sm:$0xff]
    %v4185 = vld [vmem:[#allocation13 + $0x10] sm:$0xff]
    %v4186 = vld [vmem:[#allocation13 + $0x18] sm:$0xff]
    %v4187 = vld [vmem:[#allocation13 + $0x20] sm:$0xff]
    %v4188 = vld [vmem:[#allocation13 + $0x28] sm:$0xff]
    %v4189 = vld [vmem:[#allocation13 + $0x30] sm:$0xff]
    %v4190 = vld [vmem:[#allocation13 + $0x38] sm:$0xff]
    %v4191 = vld [vmem:[#allocation13 + $0x40] sm:$0xff]
    %v4192 = vld [vmem:[#allocation13 + $0x48] sm:$0xff]
    %v4193 = vld [vmem:[#allocation13 + $0x50] sm:$0xff]
    %v4194 = vld [vmem:[#allocation13 + $0x58] sm:$0xff]
    %v4195 = vld [vmem:[#allocation13 + $0x60] sm:$0xff]
    %v4196 = vld [vmem:[#allocation13 + $0x68] sm:$0xff]
    %v4197 = vld [vmem:[#allocation13 + $0x70] sm:$0xff]
    %v4198 = vld [vmem:[#allocation13 + $0x78] sm:$0xff]
    %v4199 = vld [vmem:[#allocation13 + $0x80] sm:$0xff]
    %v4200 = vld [vmem:[#allocation13 + $0x88] sm:$0xff]
    %v4201 = vld [vmem:[#allocation13 + $0x90] sm:$0xff]
    %v4202 = vld [vmem:[#allocation13 + $0x98] sm:$0xff]
    %v4203 = vld [vmem:[#allocation13 + $0xa0] sm:$0xff]
    %v4204 = vld [vmem:[#allocation13 + $0xa8] sm:$0xff]
    %v4205 = vld [vmem:[#allocation13 + $0xb0] sm:$0xff]
    %v4206 = vld [vmem:[#allocation13 + $0xb8] sm:$0xff]
    %v4207 = vld [vmem:[#allocation13 + $0xc0] sm:$0xff]
    %v4208 = vld [vmem:[#allocation13 + $0xc8] sm:$0xff]
    %v4209 = vld [vmem:[#allocation13 + $0xd0] sm:$0xff]
    %v4210 = vld [vmem:[#allocation13 + $0xd8] sm:$0xff]
    %v4211 = vld [vmem:[#allocation13 + $0xe0] sm:$0xff]
    %v4212 = vld [vmem:[#allocation13 + $0xe8] sm:$0xff]
    %v4213 = vld [vmem:[#allocation13 + $0xf0] sm:$0xff]
    %v4214 = vld [vmem:[#allocation13 + $0xf8] sm:$0xff]
    %v4215 = vld [vmem:[#allocation14] sm:$0x3]
    %v4217 = vperm.slane %v4215, 0
    %v4218 = vperm.slane %v4215, 1
    %v4253 = vunpack.c.l.b16 %v4183
    %v4254 = vunpack.c.h.b16 %v4183
    %v4255 = vunpack.c.l.b16 %v4184
    %v4256 = vunpack.c.h.b16 %v4184
    %v4257 = vunpack.c.l.b16 %v4185
    %v4258 = vunpack.c.h.b16 %v4185
    %v4259 = vunpack.c.l.b16 %v4186
    %v4260 = vunpack.c.h.b16 %v4186
    %v4261 = vunpack.c.l.b16 %v4187
    %v4262 = vunpack.c.h.b16 %v4187
    %v4263 = vunpack.c.l.b16 %v4188
    %v4264 = vunpack.c.h.b16 %v4188
    %v4265 = vunpack.c.l.b16 %v4189
    %v4266 = vunpack.c.h.b16 %v4189
    %v4267 = vunpack.c.l.b16 %v4190
    %v4268 = vunpack.c.h.b16 %v4190
    %v4269 = vunpack.c.l.b16 %v4191
    %v4270 = vunpack.c.h.b16 %v4191
    %v4271 = vunpack.c.l.b16 %v4192
    %v4272 = vunpack.c.h.b16 %v4192
    %v4273 = vunpack.c.l.b16 %v4193
    %v4274 = vunpack.c.h.b16 %v4193
    %v4275 = vunpack.c.l.b16 %v4194
    %v4276 = vunpack.c.h.b16 %v4194
    %v4277 = vunpack.c.l.b16 %v4195
    %v4278 = vunpack.c.h.b16 %v4195
    %v4279 = vunpack.c.l.b16 %v4196
    %v4280 = vunpack.c.h.b16 %v4196
    %v4281 = vunpack.c.l.b16 %v4197
    %v4282 = vunpack.c.h.b16 %v4197
    %v4283 = vunpack.c.l.b16 %v4198
    %v4284 = vunpack.c.h.b16 %v4198
    %v4285 = vunpack.c.l.b16 %v4199
    %v4286 = vunpack.c.h.b16 %v4199
    %v4287 = vunpack.c.l.b16 %v4200
    %v4288 = vunpack.c.h.b16 %v4200
    %v4289 = vunpack.c.l.b16 %v4201
    %v4290 = vunpack.c.h.b16 %v4201
    %v4291 = vunpack.c.l.b16 %v4202
    %v4292 = vunpack.c.h.b16 %v4202
    %v4293 = vunpack.c.l.b16 %v4203
    %v4294 = vunpack.c.h.b16 %v4203
    %v4295 = vunpack.c.l.b16 %v4204
    %v4296 = vunpack.c.h.b16 %v4204
    %v4297 = vunpack.c.l.b16 %v4205
    %v4298 = vunpack.c.h.b16 %v4205
    %v4299 = vunpack.c.l.b16 %v4206
    %v4300 = vunpack.c.h.b16 %v4206
    %v4301 = vunpack.c.l.b16 %v4207
    %v4302 = vunpack.c.h.b16 %v4207
    %v4303 = vunpack.c.l.b16 %v4208
    %v4304 = vunpack.c.h.b16 %v4208
    %v4305 = vunpack.c.l.b16 %v4209
    %v4306 = vunpack.c.h.b16 %v4209
    %v4307 = vunpack.c.l.b16 %v4210
    %v4308 = vunpack.c.h.b16 %v4210
    %v4309 = vunpack.c.l.b16 %v4211
    %v4310 = vunpack.c.h.b16 %v4211
    %v4311 = vunpack.c.l.b16 %v4212
    %v4312 = vunpack.c.h.b16 %v4212
    %v4313 = vunpack.c.l.b16 %v4213
    %v4314 = vunpack.c.h.b16 %v4213
    %v4315 = vunpack.c.l.b16 %v4214
    %v4316 = vunpack.c.h.b16 %v4214
    %v4317 = vpack.c.b16 %v4255, %v4253
    %v4318 = vpack.c.b16 %v4256, %v4254
    %v4319 = vpack.c.b16 %v4259, %v4257
    %v4320 = vpack.c.b16 %v4260, %v4258
    %v4321 = vpack.c.b16 %v4263, %v4261
    %v4322 = vpack.c.b16 %v4264, %v4262
    %v4323 = vpack.c.b16 %v4267, %v4265
    %v4324 = vpack.c.b16 %v4268, %v4266
    %v4325 = vpack.c.b16 %v4271, %v4269
    %v4326 = vpack.c.b16 %v4272, %v4270
    %v4327 = vpack.c.b16 %v4275, %v4273
    %v4328 = vpack.c.b16 %v4276, %v4274
    %v4329 = vpack.c.b16 %v4279, %v4277
    %v4330 = vpack.c.b16 %v4280, %v4278
    %v4331 = vpack.c.b16 %v4283, %v4281
    %v4332 = vpack.c.b16 %v4284, %v4282
    %v4333 = vpack.c.b16 %v4287, %v4285
    %v4334 = vpack.c.b16 %v4288, %v4286
    %v4335 = vpack.c.b16 %v4291, %v4289
    %v4336 = vpack.c.b16 %v4292, %v4290
    %v4337 = vpack.c.b16 %v4295, %v4293
    %v4338 = vpack.c.b16 %v4296, %v4294
    %v4339 = vpack.c.b16 %v4299, %v4297
    %v4340 = vpack.c.b16 %v4300, %v4298
    %v4341 = vpack.c.b16 %v4303, %v4301
    %v4342 = vpack.c.b16 %v4304, %v4302
    %v4343 = vpack.c.b16 %v4307, %v4305
    %v4344 = vpack.c.b16 %v4308, %v4306
    %v4345 = vpack.c.b16 %v4311, %v4309
    %v4346 = vpack.c.b16 %v4312, %v4310
    %v4347 = vpack.c.b16 %v4315, %v4313
    %v4348 = vpack.c.b16 %v4316, %v4314
    %4381 = vmatpush.bf16.msra.mxu0 %v4331
    %4382 = vmatpush.bf16.msra.mxu0 %v4329
    %4383 = vmatpush.bf16.msra.mxu0 %v4327
    %4384 = vmatpush.bf16.msra.mxu0 %v4325
    %4385 = vmatpush.bf16.msra.mxu0 %v4323
    %4386 = vmatpush.bf16.msra.mxu0 %v4321
    %4387 = vmatpush.bf16.msra.mxu0 %v4319
    %4388 = vmatpush.bf16.msra.mxu0 %v4317
    %4389 = vmatmul.bf16.gmra.mxu0 %v4179
    %v4390 = vpop.f32.mrf.mxu0
    %v4391 = vadd.f32 %v4217, %v4390
    %v4392 = vpop.f32.mrf.mxu0
    %v4393 = vadd.f32 %v4217, %v4392
    %4394 = vmatmul.bf16.gmra.mxu0 %v4181
    %v4395 = vpop.f32.mrf.mxu0
    %v4396 = vadd.f32 %v4217, %v4395
    %v4397 = vpop.f32.mrf.mxu0
    %v4398 = vadd.f32 %v4217, %v4397
    %4399 = vdwg.mxu0
    %4400 = vmatpush.bf16.msra.mxu0 %v4347
    %4401 = vmatpush.bf16.msra.mxu0 %v4345
    %4402 = vmatpush.bf16.msra.mxu0 %v4343
    %4403 = vmatpush.bf16.msra.mxu0 %v4341
    %4404 = vmatpush.bf16.msra.mxu0 %v4339
    %4405 = vmatpush.bf16.msra.mxu0 %v4337
    %4406 = vmatpush.bf16.msra.mxu0 %v4335
    %4407 = vmatpush.bf16.msra.mxu0 %v4333
    %4408 = vmatmul.bf16.gmra.mxu0 %v4180
    %v4409 = vpop.f32.mrf.mxu0
    %v4410 = vadd.f32 %v4391, %v4409
    %v4411 = vpop.f32.mrf.mxu0
    %v4412 = vadd.f32 %v4393, %v4411
    %4413 = vmatmul.bf16.gmra.mxu0 %v4182
    %v4414 = vpop.f32.mrf.mxu0
    %v4415 = vadd.f32 %v4396, %v4414
    %v4416 = vpop.f32.mrf.mxu0
    %v4417 = vadd.f32 %v4398, %v4416
    %4418 = vdwg.mxu0
    %4419 = vmatpush.bf16.msra.mxu0 %v4332
    %4420 = vmatpush.bf16.msra.mxu0 %v4330
    %4421 = vmatpush.bf16.msra.mxu0 %v4328
    %4422 = vmatpush.bf16.msra.mxu0 %v4326
    %4423 = vmatpush.bf16.msra.mxu0 %v4324
    %4424 = vmatpush.bf16.msra.mxu0 %v4322
    %4425 = vmatpush.bf16.msra.mxu0 %v4320
    %4426 = vmatpush.bf16.msra.mxu0 %v4318
    %4427 = vmatmul.bf16.gmra.mxu0 %v4179
    %v4428 = vpop.f32.mrf.mxu0
    %v4429 = vadd.f32 %v4218, %v4428
    %v4430 = vpop.f32.mrf.mxu0
    %v4431 = vadd.f32 %v4218, %v4430
    %4432 = vmatmul.bf16.gmra.mxu0 %v4181
    %v4433 = vpop.f32.mrf.mxu0
    %v4434 = vadd.f32 %v4218, %v4433
    %v4435 = vpop.f32.mrf.mxu0
    %v4436 = vadd.f32 %v4218, %v4435
    %4437 = vdwg.mxu0
    %4438 = vmatpush.bf16.msra.mxu0 %v4348
    %4439 = vmatpush.bf16.msra.mxu0 %v4346
    %4440 = vmatpush.bf16.msra.mxu0 %v4344
    %4441 = vmatpush.bf16.msra.mxu0 %v4342
    %4442 = vmatpush.bf16.msra.mxu0 %v4340
    %4443 = vmatpush.bf16.msra.mxu0 %v4338
    %4444 = vmatpush.bf16.msra.mxu0 %v4336
    %4445 = vmatpush.bf16.msra.mxu0 %v4334
    %4446 = vmatmul.bf16.gmra.mxu0 %v4180
    %v4447 = vpop.f32.mrf.mxu0
    %v4448 = vadd.f32 %v4429, %v4447
    %v4449 = vpop.f32.mrf.mxu0
    %v4450 = vadd.f32 %v4431, %v4449
    %4451 = vmatmul.bf16.gmra.mxu0 %v4182
    %v4452 = vpop.f32.mrf.mxu0
    %v4453 = vadd.f32 %v4434, %v4452
    %v4454 = vpop.f32.mrf.mxu0
    %v4455 = vadd.f32 %v4436, %v4454
    %4456 = vdwg.mxu0
    %v4457 = vxor.u32 %v4410, 2147483648
    %v4458 = vxor.u32 %v4448, 2147483648
    %v4459 = vxor.u32 %v4412, 2147483648
    %v4460 = vxor.u32 %v4450, 2147483648
    %v4461 = vxor.u32 %v4415, 2147483648
    %v4462 = vxor.u32 %v4453, 2147483648
    %v4463 = vxor.u32 %v4417, 2147483648
    %v4464 = vxor.u32 %v4455, 2147483648
    %v4465 = vmul.f32 %v4457, 1.442695
    %v4466 = vpow.pop %v4465
    %v4467 = vmul.f32 %v4458, 1.442695
    %v4468 = vpow.pop %v4467
    %v4469 = vmul.f32 %v4459, 1.442695
    %v4470 = vpow.pop %v4469
    %v4471 = vmul.f32 %v4460, 1.442695
    %v4472 = vpow.pop %v4471
    %v4473 = vmul.f32 %v4461, 1.442695
    %v4474 = vpow.pop %v4473
    %v4475 = vmul.f32 %v4462, 1.442695
    %v4476 = vpow.pop %v4475
    %v4477 = vmul.f32 %v4463, 1.442695
    %v4478 = vpow.pop %v4477
    %v4479 = vmul.f32 %v4464, 1.442695
    %v4480 = vpow.pop %v4479
    %v4481 = vadd.f32 %v4466, 1.0
    %v4482 = vadd.f32 %v4468, 1.0
    %v4483 = vadd.f32 %v4470, 1.0
    %v4484 = vadd.f32 %v4472, 1.0
    %v4485 = vadd.f32 %v4474, 1.0
    %v4486 = vadd.f32 %v4476, 1.0
    %v4487 = vadd.f32 %v4478, 1.0
    %v4488 = vadd.f32 %v4480, 1.0
    %v4489 = vrcp.pop %v4481
    %v4490 = vmul.f32 %v4481, %v4489
    %v4491 = vsub.f32 1.0, %v4490
    %v4492 = vmul.f32 %v4489, %v4491
    %v4493 = vadd.f32 %v4489, %v4492
    %vm4494 = vweird.f32 %v4481
    %vm4495 = vweird.f32 %v4489
    %vm4496 = vmor %vm4494, %vm4495
    %v4497 = vsel %vm4496, %v4489, %v4493
    %v4498 = vand.u32 2147483647, %v4481
    %vm4499 = vcmp.eq.f32.partialorder %v4498, 8.507059e+37
    %v4500 = vand.u32 %v4481, 2147483648
    %v4501 = vor.u32 1.1754944e-38, %v4500
    %v4502 = vsel %vm4499, %v4501, %v4497
    %v4503 = vmul.f32 1.0, %v4502
    %v4504 = vrcp.pop %v4482
    %v4505 = vmul.f32 %v4482, %v4504
    %v4506 = vsub.f32 1.0, %v4505
    %v4507 = vmul.f32 %v4504, %v4506
    %v4508 = vadd.f32 %v4504, %v4507
    %vm4509 = vweird.f32 %v4482
    %vm4510 = vweird.f32 %v4504
    %vm4511 = vmor %vm4509, %vm4510
    %v4512 = vsel %vm4511, %v4504, %v4508
    %v4513 = vand.u32 2147483647, %v4482
    %vm4514 = vcmp.eq.f32.partialorder %v4513, 8.507059e+37
    %v4515 = vand.u32 %v4482, 2147483648
    %v4516 = vor.u32 1.1754944e-38, %v4515
    %v4517 = vsel %vm4514, %v4516, %v4512
    %v4518 = vmul.f32 1.0, %v4517
    %v4519 = vrcp.pop %v4483
    %v4520 = vmul.f32 %v4483, %v4519
    %v4521 = vsub.f32 1.0, %v4520
    %v4522 = vmul.f32 %v4519, %v4521
    %v4523 = vadd.f32 %v4519, %v4522
    %vm4524 = vweird.f32 %v4483
    %vm4525 = vweird.f32 %v4519
    %vm4526 = vmor %vm4524, %vm4525
    %v4527 = vsel %vm4526, %v4519, %v4523
    %v4528 = vand.u32 2147483647, %v4483
    %vm4529 = vcmp.eq.f32.partialorder %v4528, 8.507059e+37
    %v4530 = vand.u32 %v4483, 2147483648
    %v4531 = vor.u32 1.1754944e-38, %v4530
    %v4532 = vsel %vm4529, %v4531, %v4527
    %v4533 = vmul.f32 1.0, %v4532
    %v4534 = vrcp.pop %v4484
    %v4535 = vmul.f32 %v4484, %v4534
    %v4536 = vsub.f32 1.0, %v4535
    %v4537 = vmul.f32 %v4534, %v4536
    %v4538 = vadd.f32 %v4534, %v4537
    %vm4539 = vweird.f32 %v4484
    %vm4540 = vweird.f32 %v4534
    %vm4541 = vmor %vm4539, %vm4540
    %v4542 = vsel %vm4541, %v4534, %v4538
    %v4543 = vand.u32 2147483647, %v4484
    %vm4544 = vcmp.eq.f32.partialorder %v4543, 8.507059e+37
    %v4545 = vand.u32 %v4484, 2147483648
    %v4546 = vor.u32 1.1754944e-38, %v4545
    %v4547 = vsel %vm4544, %v4546, %v4542
    %v4548 = vmul.f32 1.0, %v4547
    %v4549 = vrcp.pop %v4485
    %v4550 = vmul.f32 %v4485, %v4549
    %v4551 = vsub.f32 1.0, %v4550
    %v4552 = vmul.f32 %v4549, %v4551
    %v4553 = vadd.f32 %v4549, %v4552
    %vm4554 = vweird.f32 %v4485
    %vm4555 = vweird.f32 %v4549
    %vm4556 = vmor %vm4554, %vm4555
    %v4557 = vsel %vm4556, %v4549, %v4553
    %v4558 = vand.u32 2147483647, %v4485
    %vm4559 = vcmp.eq.f32.partialorder %v4558, 8.507059e+37
    %v4560 = vand.u32 %v4485, 2147483648
    %v4561 = vor.u32 1.1754944e-38, %v4560
    %v4562 = vsel %vm4559, %v4561, %v4557
    %v4563 = vmul.f32 1.0, %v4562
    %v4564 = vrcp.pop %v4486
    %v4565 = vmul.f32 %v4486, %v4564
    %v4566 = vsub.f32 1.0, %v4565
    %v4567 = vmul.f32 %v4564, %v4566
    %v4568 = vadd.f32 %v4564, %v4567
    %vm4569 = vweird.f32 %v4486
    %vm4570 = vweird.f32 %v4564
    %vm4571 = vmor %vm4569, %vm4570
    %v4572 = vsel %vm4571, %v4564, %v4568
    %v4573 = vand.u32 2147483647, %v4486
    %vm4574 = vcmp.eq.f32.partialorder %v4573, 8.507059e+37
    %v4575 = vand.u32 %v4486, 2147483648
    %v4576 = vor.u32 1.1754944e-38, %v4575
    %v4577 = vsel %vm4574, %v4576, %v4572
    %v4578 = vmul.f32 1.0, %v4577
    %v4579 = vrcp.pop %v4487
    %v4580 = vmul.f32 %v4487, %v4579
    %v4581 = vsub.f32 1.0, %v4580
    %v4582 = vmul.f32 %v4579, %v4581
    %v4583 = vadd.f32 %v4579, %v4582
    %vm4584 = vweird.f32 %v4487
    %vm4585 = vweird.f32 %v4579
    %vm4586 = vmor %vm4584, %vm4585
    %v4587 = vsel %vm4586, %v4579, %v4583
    %v4588 = vand.u32 2147483647, %v4487
    %vm4589 = vcmp.eq.f32.partialorder %v4588, 8.507059e+37
    %v4590 = vand.u32 %v4487, 2147483648
    %v4591 = vor.u32 1.1754944e-38, %v4590
    %v4592 = vsel %vm4589, %v4591, %v4587
    %v4593 = vmul.f32 1.0, %v4592
    %v4594 = vrcp.pop %v4488
    %v4595 = vmul.f32 %v4488, %v4594
    %v4596 = vsub.f32 1.0, %v4595
    %v4597 = vmul.f32 %v4594, %v4596
    %v4598 = vadd.f32 %v4594, %v4597
    %vm4599 = vweird.f32 %v4488
    %vm4600 = vweird.f32 %v4594
    %vm4601 = vmor %vm4599, %vm4600
    %v4602 = vsel %vm4601, %v4594, %v4598
    %v4603 = vand.u32 2147483647, %v4488
    %vm4604 = vcmp.eq.f32.partialorder %v4603, 8.507059e+37
    %v4605 = vand.u32 %v4488, 2147483648
    %v4606 = vor.u32 1.1754944e-38, %v4605
    %v4607 = vsel %vm4604, %v4606, %v4602
    %v4608 = vmul.f32 1.0, %v4607
    %v4609 = vmul.f32 %v4410, %v4503
    %v4610 = vmul.f32 %v4448, %v4518
    %v4611 = vmul.f32 %v4412, %v4533
    %v4612 = vmul.f32 %v4450, %v4548
    %v4613 = vmul.f32 %v4415, %v4563
    %v4614 = vmul.f32 %v4453, %v4578
    %v4615 = vmul.f32 %v4417, %v4593
    %v4616 = vmul.f32 %v4455, %v4608
    %v4617 = vpack.c.bf16 %v4611, %v4609
    %v4618 = vpack.c.bf16 %v4612, %v4610
    %v4619 = vpack.c.bf16 %v4615, %v4613
    %v4620 = vpack.c.bf16 %v4616, %v4614
    %v4621 = vld [vmem:[#allocation16] sm:$0xf]
    %v4622 = vld [vmem:[#allocation16 + $0x4] sm:$0xf]
    %v4623 = vld [vmem:[#allocation16 + $0x8] sm:$0xf]
    %v4624 = vld [vmem:[#allocation16 + $0xc] sm:$0xf]
    %v4625 = vld [vmem:[#allocation16 + $0x10] sm:$0xf]
    %v4626 = vld [vmem:[#allocation16 + $0x14] sm:$0xf]
    %v4627 = vld [vmem:[#allocation16 + $0x18] sm:$0xf]
    %v4628 = vld [vmem:[#allocation16 + $0x1c] sm:$0xf]
    %v4629 = vld [vmem:[#allocation16 + $0x20] sm:$0xf]
    %v4630 = vld [vmem:[#allocation16 + $0x24] sm:$0xf]
    %v4631 = vld [vmem:[#allocation16 + $0x28] sm:$0xf]
    %v4632 = vld [vmem:[#allocation16 + $0x2c] sm:$0xf]
    %v4633 = vld [vmem:[#allocation16 + $0x30] sm:$0xf]
    %v4634 = vld [vmem:[#allocation16 + $0x34] sm:$0xf]
    %v4635 = vld [vmem:[#allocation16 + $0x38] sm:$0xf]
    %v4636 = vld [vmem:[#allocation16 + $0x3c] sm:$0xf]
    %v4637 = vld [vmem:[#allocation16 + $0x40] sm:$0xf]
    %v4638 = vld [vmem:[#allocation16 + $0x44] sm:$0xf]
    %v4639 = vld [vmem:[#allocation16 + $0x48] sm:$0xf]
    %v4640 = vld [vmem:[#allocation16 + $0x4c] sm:$0xf]
    %v4641 = vld [vmem:[#allocation16 + $0x50] sm:$0xf]
    %v4642 = vld [vmem:[#allocation16 + $0x54] sm:$0xf]
    %v4643 = vld [vmem:[#allocation16 + $0x58] sm:$0xf]
    %v4644 = vld [vmem:[#allocation16 + $0x5c] sm:$0xf]
    %v4645 = vld [vmem:[#allocation16 + $0x60] sm:$0xf]
    %v4646 = vld [vmem:[#allocation16 + $0x64] sm:$0xf]
    %v4647 = vld [vmem:[#allocation16 + $0x68] sm:$0xf]
    %v4648 = vld [vmem:[#allocation16 + $0x6c] sm:$0xf]
    %v4649 = vld [vmem:[#allocation16 + $0x70] sm:$0xf]
    %v4650 = vld [vmem:[#allocation16 + $0x74] sm:$0xf]
    %v4651 = vld [vmem:[#allocation16 + $0x78] sm:$0xf]
    %v4652 = vld [vmem:[#allocation16 + $0x7c] sm:$0xf]
    %v4653 = vld [vmem:[#allocation17] sm:$0x1]
    %v4655 = vperm.slane %v4653, 0
    %v4689 = vunpack.c.l.b16 %v4621
    %v4690 = vunpack.c.l.b16 %v4622
    %v4691 = vunpack.c.l.b16 %v4623
    %v4692 = vunpack.c.l.b16 %v4624
    %v4693 = vunpack.c.l.b16 %v4625
    %v4694 = vunpack.c.l.b16 %v4626
    %v4695 = vunpack.c.l.b16 %v4627
    %v4696 = vunpack.c.l.b16 %v4628
    %v4697 = vunpack.c.l.b16 %v4629
    %v4698 = vunpack.c.l.b16 %v4630
    %v4699 = vunpack.c.l.b16 %v4631
    %v4700 = vunpack.c.l.b16 %v4632
    %v4701 = vunpack.c.l.b16 %v4633
    %v4702 = vunpack.c.l.b16 %v4634
    %v4703 = vunpack.c.l.b16 %v4635
    %v4704 = vunpack.c.l.b16 %v4636
    %v4705 = vunpack.c.l.b16 %v4637
    %v4706 = vunpack.c.l.b16 %v4638
    %v4707 = vunpack.c.l.b16 %v4639
    %v4708 = vunpack.c.l.b16 %v4640
    %v4709 = vunpack.c.l.b16 %v4641
    %v4710 = vunpack.c.l.b16 %v4642
    %v4711 = vunpack.c.l.b16 %v4643
    %v4712 = vunpack.c.l.b16 %v4644
    %v4713 = vunpack.c.l.b16 %v4645
    %v4714 = vunpack.c.l.b16 %v4646
    %v4715 = vunpack.c.l.b16 %v4647
    %v4716 = vunpack.c.l.b16 %v4648
    %v4717 = vunpack.c.l.b16 %v4649
    %v4718 = vunpack.c.l.b16 %v4650
    %v4719 = vunpack.c.l.b16 %v4651
    %v4720 = vunpack.c.l.b16 %v4652
    %v4721 = vpack.c.b16 %v4690, %v4689
    %v4722 = vpack.c.b16 %v4692, %v4691
    %v4723 = vpack.c.b16 %v4694, %v4693
    %v4724 = vpack.c.b16 %v4696, %v4695
    %v4725 = vpack.c.b16 %v4698, %v4697
    %v4726 = vpack.c.b16 %v4700, %v4699
    %v4727 = vpack.c.b16 %v4702, %v4701
    %v4728 = vpack.c.b16 %v4704, %v4703
    %v4729 = vpack.c.b16 %v4706, %v4705
    %v4730 = vpack.c.b16 %v4708, %v4707
    %v4731 = vpack.c.b16 %v4710, %v4709
    %v4732 = vpack.c.b16 %v4712, %v4711
    %v4733 = vpack.c.b16 %v4714, %v4713
    %v4734 = vpack.c.b16 %v4716, %v4715
    %v4735 = vpack.c.b16 %v4718, %v4717
    %v4736 = vpack.c.b16 %v4720, %v4719
    %4753 = vmatpush.bf16.msra.mxu0 %v4728
    %4754 = vmatpush.bf16.msra.mxu0 %v4727
    %4755 = vmatpush.bf16.msra.mxu0 %v4726
    %4756 = vmatpush.bf16.msra.mxu0 %v4725
    %4757 = vmatpush.bf16.msra.mxu0 %v4724
    %4758 = vmatpush.bf16.msra.mxu0 %v4723
    %4759 = vmatpush.bf16.msra.mxu0 %v4722
    %4760 = vmatpush.bf16.msra.mxu0 %v4721
    %4761 = vmatmul.bf16.gmra.mxu0 %v4617
    %v4762 = vpop.f32.mrf.mxu0
    %v4763 = vadd.f32 %v4655, %v4762
    %v4764 = vpop.f32.mrf.mxu0
    %v4765 = vadd.f32 %v4655, %v4764
    %4766 = vmatmul.bf16.gmra.mxu0 %v4619
    %v4767 = vpop.f32.mrf.mxu0
    %v4768 = vadd.f32 %v4655, %v4767
    %v4769 = vpop.f32.mrf.mxu0
    %v4770 = vadd.f32 %v4655, %v4769
    %4771 = vdwg.mxu0
    %4772 = vmatpush.bf16.msra.mxu0 %v4736
    %4773 = vmatpush.bf16.msra.mxu0 %v4735
    %4774 = vmatpush.bf16.msra.mxu0 %v4734
    %4775 = vmatpush.bf16.msra.mxu0 %v4733
    %4776 = vmatpush.bf16.msra.mxu0 %v4732
    %4777 = vmatpush.bf16.msra.mxu0 %v4731
    %4778 = vmatpush.bf16.msra.mxu0 %v4730
    %4779 = vmatpush.bf16.msra.mxu0 %v4729
    %4780 = vmatmul.bf16.gmra.mxu0 %v4618
    %v4781 = vpop.f32.mrf.mxu0
    %v4782 = vadd.f32 %v4763, %v4781
    %v4783 = vpop.f32.mrf.mxu0
    %v4784 = vadd.f32 %v4765, %v4783
    %4785 = vmatmul.bf16.gmra.mxu0 %v4620
    %v4786 = vpop.f32.mrf.mxu0
    %v4787 = vadd.f32 %v4768, %v4786
    %v4788 = vpop.f32.mrf.mxu0
    %v4789 = vadd.f32 %v4770, %v4788
    %4790 = vdwg.mxu0
    %4791 = vst [vmem:[#allocation19] sm:$0xff] %v4782
    %4792 = vst [vmem:[#allocation19 + $0x8] sm:$0xff] %v4784
    %4793 = vst [vmem:[#allocation19 + $0x10] sm:$0xff] %v4787
    %4794 = vst [vmem:[#allocation19 + $0x18] sm:$0xff] %v4789
    // Predicated region
    $region86: #{tpu_custom_call.1} parent=1 // pred_check
      _
    $region87: #{tpu_custom_call.1} parent=1 // pred_check_branch
      %4796 = sbr.rel (0) target = $region89
    $region88: #{tpu_custom_call.1} parent=1 // pred_region
      %4798 = vsyncadd [#allocation4], 0
      %s4799 = sshll.u32 [#allocation19], 4
      %s4800 = int_to_ptr.vmem [resolvable:$true] %s4799
      %s4801 = sshll.u32 %s11, 4
      %s4802 = int_to_ptr.hbm [resolvable:$true] %s4801
      %4807 = dma.vmem_to_hbm [thread:$0]  %s4800, 512, %s4802, [#allocation4], 128, 128, 8
    $region89: #{tpu_custom_call.1} parent=1 // pred_fallthru
      _
    // Predicated region
    $region90: #{tpu_custom_call.1} parent=1 // pred_check
      _
    $region91: #{tpu_custom_call.1} parent=1 // pred_check_branch
      %4809 = sbr.rel (0) target = $region93
    $region92: #{tpu_custom_call.1} parent=1 // pred_region
      %4811 = dma.done [#allocation4], 512
    $region93: #{tpu_custom_call.1} parent=1 // pred_fallthru
      _
    %4812 = vsyncpa [#allocation3], 1
    %4813 = vsyncpa [#allocation6], 1
    %4814 = vsyncpa [#allocation9], 1
    %4815 = vsyncpa [#allocation12], 1
    %4816 = vsyncpa [#allocation15], 1
    %4817 = vsyncpa [#allocation18], 1
    %4818 = vsyncpa [#allocation4], 1

</llo_original>
